<compile_context>
chip_gen: v5e
topology: v5e:2x2
jax: 0.10.0
libtpu: 0.0.40
codegen_flags: <defaults>
</compile_context>

<pallas_src>
import jax
import jax.numpy as jnp
from jax.experimental import pallas as pl
from jax.experimental.pallas import tpu as pltpu


# ----------------------------------------------------------------------------
# Module geometry (static -- never part of the jitted pytree)
# ----------------------------------------------------------------------------
_LAYER_CFG = (
    (9, 32, 2),      # conv1: 9  -> 32,  k=s=2   (64x64 -> 32x32)
    (32, 64, 2),     # conv2: 32 -> 64,  k=s=2   (32x32 -> 16x16)
    (64, 128, 2),    # conv3: 64 -> 128, k=s=2   (16x16 -> 8x8)
    (128, 256, 8),   # conv4: 128-> 256, k=s=8   (8x8   -> 1x1)
)

# bf16 weight for the HBM-dominant conv4 stream (f32 MXU accumulation).
# Set to jnp.float32 for bit-exact parity with an f32 reference.
W4_DTYPE = jnp.bfloat16


# ----------------------------------------------------------------------------
# Kernel A: fused conv1+conv2+conv3, TB images per grid step, all in VMEM.
#
# Per image the patch matrix p1 has rows = (g2, m3) and lanes =
# (g1, dh, dw, ch16), where
#   i_in = 8*i3 + 4*a + 2*c + dh,  j_in = 8*j3 + 4*b + 2*d + dw
#   g1 = (c, d)   conv2 kernel offset of the conv1 output
#   g2 = (a, b)   conv3 kernel offset of the conv2 output
#   m3 = (i3, j3) conv3 / conv4 spatial position
# With this ordering every inter-layer step is a big matmul or a free
# leading-dim reshape.
# ----------------------------------------------------------------------------
def _layers123_kernel(p1_ref, w1_ref, b1_ref, w2_ref, b2_ref, w3_ref, b3_ref,
                      out_ref):
    tb = p1_ref.shape[0]

    # conv1: one block-diagonal matmul. rows = (img, g2, m3),
    # in-lanes = (g1, dh, dw, ch16), out-lanes = (g1, cout1)  -> lane-dense.
    p1 = p1_ref[...].reshape(tb * 256, 256)
    a1 = jnp.dot(p1, w1_ref[...], preferred_element_type=jnp.float32)
    a1 = jnp.maximum(a1 + b1_ref[...], 0.0)                    # (tb*256, 128)

    # conv2: one K-concat matmul; the sum over g1 is the MXU contraction.
    a2 = jnp.dot(a1, w2_ref[...], preferred_element_type=jnp.float32)
    a2 = jnp.maximum(a2 + b2_ref[...], 0.0)                    # (tb*256, 64)

    # conv3: sum over the 2x2 kernel offsets g2 (4 dots, no zeros init).
    a2 = a2.reshape(tb, 4, 64, 64)                             # (img, g2, m3, c)
    acc = jnp.dot(a2[:, 0].reshape(tb * 64, 64), w3_ref[0],
                  preferred_element_type=jnp.float32)
    for g2 in range(1, 4):
        acc = acc + jnp.dot(a2[:, g2].reshape(tb * 64, 64), w3_ref[g2],
                            preferred_element_type=jnp.float32)
    h3 = jnp.maximum(acc + b3_ref[...], 0.0)                   # (tb*64, 128)

    out_ref[...] = h3.reshape(tb, 64, 128).astype(out_ref.dtype)


def _pick_tb(batch):
    # Largest batch-tile that divides B; 8 keeps VMEM small on every gen
    # (p1 block 2 MiB x 2 buffers + ~2.5 MiB of intermediates).
    for tb in (8, 4, 2, 1):
        if batch % tb == 0:
            return tb
    return 1


def _fused_layers123(p1, w1, b1, w2, b2, w3, b3):
    batch = p1.shape[0]
    tb = _pick_tb(batch)
    flops = batch * 2 * (256 * 256 * 128 + 256 * 128 * 64 + 4 * 64 * 64 * 128)
    bytes_accessed = 4 * (p1.size + w1.size + b1.size + w2.size + b2.size
                          + w3.size + b3.size + batch * 64 * 128)
    return pl.pallas_call(
        _layers123_kernel,
        out_shape=jax.ShapeDtypeStruct((batch, 64, 128), jnp.float32),
        grid=(batch // tb,),
        in_specs=[
            pl.BlockSpec((tb, 256, 256), lambda n: (n, 0, 0)),   # patches
            pl.BlockSpec((256, 128), lambda n: (0, 0)),          # w1 block-diag
            pl.BlockSpec((1, 128), lambda n: (0, 0)),            # b1 tiled x4
            pl.BlockSpec((128, 64), lambda n: (0, 0)),           # w2 K-concat
            pl.BlockSpec((1, 64), lambda n: (0, 0)),             # b2
            pl.BlockSpec((4, 64, 128), lambda n: (0, 0, 0)),     # w3 per g2
            pl.BlockSpec((1, 128), lambda n: (0, 0)),            # b3
        ],
        out_specs=pl.BlockSpec((tb, 64, 128), lambda n: (n, 0, 0)),
        compiler_params=pltpu.CompilerParams(
            dimension_semantics=("parallel",)),
        cost_estimate=pl.CostEstimate(flops=flops, transcendentals=0,
                                      bytes_accessed=bytes_accessed),
    )(p1, w1, b1, w2, b2, w3, b3)


# ----------------------------------------------------------------------------
# Kernel B: conv4 as (B, 8192) @ (8192, 256), weight streamed over K.
# Output block index is constant over k -> o_ref is the VMEM accumulator.
# ----------------------------------------------------------------------------
def _layer4_kernel(x_ref, w_ref, b_ref, o_ref):
    k = pl.program_id(0)

    @pl.when(k == 0)
    def _():
        o_ref[...] = jnp.zeros_like(o_ref)

    o_ref[...] += jnp.dot(x_ref[...].astype(w_ref.dtype), w_ref[...],
                          preferred_element_type=jnp.float32)

    @pl.when(k == pl.num_programs(0) - 1)
    def _():
        o_ref[...] = jnp.maximum(o_ref[...] + b_ref[...], 0.0)


def _layer4_matmul(x4, w4, b4):
    B = x4.shape[0]
    K, N = w4.shape                        # (8192, 256)
    TK = 4096                              # 2 K steps, full-width N (no N split)
    flops = 2 * B * K * N
    bytes_accessed = (4 * B * K + w4.dtype.itemsize * K * N + 4 * N + 4 * B * N)
    return pl.pallas_call(
        _layer4_kernel,
        out_shape=jax.ShapeDtypeStruct((B, N), jnp.float32),
        grid=(K // TK,),
        in_specs=[
            pl.BlockSpec((B, TK), lambda k: (0, k)),
            pl.BlockSpec((TK, N), lambda k: (k, 0)),
            pl.BlockSpec((1, N), lambda k: (0, 0)),
        ],
        out_specs=pl.BlockSpec((B, N), lambda k: (0, 0)),
        compiler_params=pltpu.CompilerParams(
            dimension_semantics=("arbitrary",)),
        cost_estimate=pl.CostEstimate(flops=flops, transcendentals=0,
                                      bytes_accessed=bytes_accessed),
    )(x4, w4, b4)


# ----------------------------------------------------------------------------
# Parameter init (PyTorch layout) + one-time conversion to kernel layouts
# ----------------------------------------------------------------------------
def init_pyramid_raw_params(key):
    raw = {}
    for idx, (cin, cout, k) in enumerate(_LAYER_CFG, start=1):
        key, kw, kb = jax.random.split(key, 3)
        fan_in = cin * k * k
        bound = 1.0 / (fan_in ** 0.5)
        raw[f"w{idx}"] = jax.random.uniform(kw, (cout, cin, k, k), jnp.float32,
                                            -bound, bound)
        raw[f"b{idx}"] = jax.random.uniform(kb, (cout,), jnp.float32,
                                            -bound, bound)
    return raw


def prepare_params(raw):
    """(Cout, Cin, kh, kw) PyTorch weights -> matmul layouts, done once."""
    # conv1: (dh, dw, cin->16, cout) flattened (64, 32), replicated on the
    # block diagonal so the output lanes come out as (g1, cout1).
    w1 = jnp.transpose(raw["w1"], (2, 3, 1, 0))                 # (2,2,9,32)
    w1 = jnp.pad(w1, ((0, 0), (0, 0), (0, 16 - 9), (0, 0)))     # pad cin to 16
    w1 = w1.reshape(64, 32)
    w1_bd = jnp.zeros((256, 128), jnp.float32)
    for g1 in range(4):
        w1_bd = w1_bd.at[g1 * 64:(g1 + 1) * 64, g1 * 32:(g1 + 1) * 32].set(w1)

    w2 = jnp.transpose(raw["w2"], (2, 3, 1, 0)).reshape(128, 64)    # rows=(g1,cin)
    w3 = jnp.transpose(raw["w3"], (2, 3, 1, 0)).reshape(4, 64, 128)  # [g2]
    w4 = jnp.transpose(raw["w4"], (2, 3, 1, 0)).reshape(8192, 256)   # rows=(m3,cin)

    return {
        "w1": w1_bd,
        "b1": jnp.tile(raw["b1"], 4).reshape(1, 128),
        "w2": w2,
        "b2": raw["b2"].reshape(1, 64),
        "w3": w3,
        "b3": raw["b3"].reshape(1, 128),
        "w4": w4.astype(W4_DTYPE),
        "b4": raw["b4"].reshape(1, 256),
    }


# ----------------------------------------------------------------------------
# Forward: matches Pyramid.forward(x, v)
# ----------------------------------------------------------------------------
def pyramid_forward(params, x, v):
    """x: (B, 1, 64, 64) f32 NCHW, v: (B, 8) f32 -> (B, 256, 1, 1) f32."""
    B = x.shape[0]
    # 9-channel NHWC input, channel order [v(8), x(1)] as in torch.cat((v, x)),
    # padded to 16 channels so the patch matrix below is lane-dense.
    v_map = jnp.broadcast_to(v.reshape(B, 1, 1, 8), (B, 64, 64, 8))
    x_nhwc = jnp.transpose(x, (0, 2, 3, 1))
    inp = jnp.concatenate([v_map, x_nhwc], axis=-1)             # (B, 64, 64, 9)
    inp = jnp.pad(inp, ((0, 0), (0, 0), (0, 0), (0, 16 - 9)))   # (B, 64, 64, 16)

    # Hierarchical patch matrix: rows = (g2, m3), lanes = (g1, dh, dw, ch16).
    p = inp.reshape(B, 8, 2, 2, 2, 8, 2, 2, 2, 16)
    #     axes:      b  i3 a  c  dh j3 b' d  dw ch
    p = p.transpose(0, 2, 6, 1, 5, 3, 7, 4, 8, 9)
    #     axes:      b  a  b' i3 j3 c  d  dh dw ch
    p1 = p.reshape(B, 256, 256)

    act3 = _fused_layers123(p1, params["w1"], params["b1"],
                            params["w2"], params["b2"],
                            params["w3"], params["b3"])         # (B, 64, 128)

    # act3 rows are already (i3, j3) with lanes = cin3, so this reshape is free.
    x4 = act3.reshape(B, 64 * 128)
    out = _layer4_matmul(x4, params["w4"], params["b4"])        # (B, 256)
    return out.reshape(B, 256, 1, 1)


# ----------------------------------------------------------------------------
# Pure lax.conv reference (correctness check against the PyTorch semantics)
# ----------------------------------------------------------------------------
def pyramid_reference(raw, x, v):
    B = x.shape[0]
    v_map = jnp.broadcast_to(v.reshape(B, 8, 1, 1), (B, 8, 64, 64))
    h = jnp.concatenate([v_map, x], axis=1)                     # (B, 9, 64, 64)
    dn = ("NCHW", "OIHW", "NCHW")
    for idx, (_, _, k) in enumerate(_LAYER_CFG, start=1):
        h = jax.lax.conv_general_dilated(
            h, raw[f"w{idx}"], window_strides=(k, k), padding="VALID",
            dimension_numbers=dn, precision=jax.lax.Precision.HIGHEST)
        h = jnp.maximum(h + raw[f"b{idx}"].reshape(1, -1, 1, 1), 0.0)
    return h                                                    # (B, 256, 1, 1)


if __name__ == "__main__":
    key = jax.random.PRNGKey(0)
    kp, kx, kv = jax.random.split(key, 3)

    raw = init_pyramid_raw_params(kp)
    params = prepare_params(raw)

    B = 2
    x = jax.random.normal(kx, (B, 1, 64, 64), jnp.float32)  # 64x64 fixed by net
    v = jax.random.normal(kv, (B, 8), jnp.float32)

    out = jax.jit(pyramid_forward)(params, x, v)
    out = jax.block_until_ready(out)
    assert out.shape == (B, 256, 1, 1), out.shape
    assert out.dtype == jnp.float32

    ref = jax.block_until_ready(pyramid_reference(raw, x, v))
    max_err = float(jnp.max(jnp.abs(out - ref)))
    assert jnp.allclose(out, ref, rtol=2e-2, atol=2e-3), f"max_abs_err={max_err}"

    print("KERNEL_OK")
</pallas_src>

<mosaic_0001>
module attributes {stable_mosaic.version = 11 : i64} {
  func.func @_layers123_kernel(%arg0: i32, %arg1: memref<2x256x256xf32, #tpu.memory_space<vmem>>, %arg2: memref<256x128xf32, #tpu.memory_space<vmem>>, %arg3: memref<1x128xf32, #tpu.memory_space<vmem>>, %arg4: memref<128x64xf32, #tpu.memory_space<vmem>>, %arg5: memref<1x64xf32, #tpu.memory_space<vmem>>, %arg6: memref<4x64x128xf32, #tpu.memory_space<vmem>>, %arg7: memref<1x128xf32, #tpu.memory_space<vmem>>, %arg8: memref<2x64x128xf32, #tpu.memory_space<vmem>>) attributes {dimension_semantics = [#tpu.dimension_semantics<parallel>], iteration_bounds = array<i64: 1>, scalar_prefetch = 0 : i64, scratch_operands = 0 : i64, tpu.core_type = #tpu.core_type<tc>, window_params = [{transform_indices = @transform_0, window_bounds = array<i64: 2, 256, 256>}, {pipeline_mode = #tpu.pipeline_mode<synchronous>, transform_indices = @transform_1, window_bounds = array<i64: 256, 128>}, {pipeline_mode = #tpu.pipeline_mode<synchronous>, transform_indices = @transform_2, window_bounds = array<i64: 1, 128>}, {pipeline_mode = #tpu.pipeline_mode<synchronous>, transform_indices = @transform_3, window_bounds = array<i64: 128, 64>}, {pipeline_mode = #tpu.pipeline_mode<synchronous>, transform_indices = @transform_4, window_bounds = array<i64: 1, 64>}, {pipeline_mode = #tpu.pipeline_mode<synchronous>, transform_indices = @transform_5, window_bounds = array<i64: 4, 64, 128>}, {pipeline_mode = #tpu.pipeline_mode<synchronous>, transform_indices = @transform_6, window_bounds = array<i64: 1, 128>}, {transform_indices = @transform_7, window_bounds = array<i64: 2, 64, 128>}]} {
    %c0 = arith.constant 0 : index
    %c0_0 = arith.constant 0 : index
    %c0_1 = arith.constant 0 : index
    %0 = vector.load %arg1[%c0, %c0_0, %c0_1] : memref<2x256x256xf32, #tpu.memory_space<vmem>>, vector<2x256x256xf32>
    %1 = vector.shape_cast %0 : vector<2x256x256xf32> to vector<512x256xf32>
    %c0_2 = arith.constant 0 : index
    %c0_3 = arith.constant 0 : index
    %2 = vector.load %arg2[%c0_2, %c0_3] : memref<256x128xf32, #tpu.memory_space<vmem>>, vector<256x128xf32>
    %cst = arith.constant dense<0.000000e+00> : vector<512x128xf32>
    %3 = tpu.matmul %1, %2, %cst {dimension_numbers = #tpu.dot_dimension_numbers<[1], [0], [0], [1], [0, 0, 1, 1], [], []>} : vector<512x256xf32>, vector<256x128xf32>, vector<512x128xf32> -> vector<512x128xf32>
    %c0_4 = arith.constant 0 : index
    %c0_5 = arith.constant 0 : index
    %4 = vector.load %arg3[%c0_4, %c0_5] : memref<1x128xf32, #tpu.memory_space<vmem>>, vector<1x128xf32>
    %5 = vector.broadcast %4 : vector<1x128xf32> to vector<512x128xf32>
    %6 = arith.addf %3, %5 : vector<512x128xf32>
    %cst_6 = arith.constant 0.000000e+00 : f32
    %7 = vector.broadcast %cst_6 : f32 to vector<512x128xf32>
    %8 = arith.maximumf %6, %7 : vector<512x128xf32>
    %c0_7 = arith.constant 0 : index
    %c0_8 = arith.constant 0 : index
    %9 = vector.load %arg4[%c0_7, %c0_8] : memref<128x64xf32, #tpu.memory_space<vmem>>, vector<128x64xf32>
    %cst_9 = arith.constant dense<0.000000e+00> : vector<512x64xf32>
    %10 = tpu.matmul %8, %9, %cst_9 {dimension_numbers = #tpu.dot_dimension_numbers<[1], [0], [0], [1], [0, 0, 1, 1], [], []>} : vector<512x128xf32>, vector<128x64xf32>, vector<512x64xf32> -> vector<512x64xf32>
    %c0_10 = arith.constant 0 : index
    %c0_11 = arith.constant 0 : index
    %11 = vector.load %arg5[%c0_10, %c0_11] : memref<1x64xf32, #tpu.memory_space<vmem>>, vector<1x64xf32>
    %12 = vector.broadcast %11 : vector<1x64xf32> to vector<512x64xf32>
    %13 = arith.addf %10, %12 : vector<512x64xf32>
    %cst_12 = arith.constant 0.000000e+00 : f32
    %14 = vector.broadcast %cst_12 : f32 to vector<512x64xf32>
    %15 = arith.maximumf %13, %14 : vector<512x64xf32>
    %16 = vector.shape_cast %15 : vector<512x64xf32> to vector<2x4x64x64xf32>
    %17 = vector.extract_strided_slice %16 {offsets = [0, 0, 0, 0], sizes = [2, 1, 64, 64], strides = [1, 1, 1, 1]} : vector<2x4x64x64xf32> to vector<2x1x64x64xf32>
    %18 = vector.shape_cast %17 : vector<2x1x64x64xf32> to vector<2x64x64xf32>
    %19 = vector.shape_cast %18 : vector<2x64x64xf32> to vector<128x64xf32>
    %c0_13 = arith.constant 0 : index
    %c0_14 = arith.constant 0 : index
    %c0_15 = arith.constant 0 : index
    %20 = vector.load %arg6[%c0_13, %c0_14, %c0_15] : memref<4x64x128xf32, #tpu.memory_space<vmem>>, vector<1x64x128xf32>
    %21 = vector.shape_cast %20 : vector<1x64x128xf32> to vector<64x128xf32>
    %cst_16 = arith.constant dense<0.000000e+00> : vector<128x128xf32>
    %22 = tpu.matmul %19, %21, %cst_16 {dimension_numbers = #tpu.dot_dimension_numbers<[1], [0], [0], [1], [0, 0, 1, 1], [], []>} : vector<128x64xf32>, vector<64x128xf32>, vector<128x128xf32> -> vector<128x128xf32>
    %23 = vector.extract_strided_slice %16 {offsets = [0, 1, 0, 0], sizes = [2, 1, 64, 64], strides = [1, 1, 1, 1]} : vector<2x4x64x64xf32> to vector<2x1x64x64xf32>
    %24 = vector.shape_cast %23 : vector<2x1x64x64xf32> to vector<2x64x64xf32>
    %25 = vector.shape_cast %24 : vector<2x64x64xf32> to vector<128x64xf32>
    %c1 = arith.constant 1 : index
    %c0_17 = arith.constant 0 : index
    %c0_18 = arith.constant 0 : index
    %26 = vector.load %arg6[%c1, %c0_17, %c0_18] : memref<4x64x128xf32, #tpu.memory_space<vmem>>, vector<1x64x128xf32>
    %27 = vector.shape_cast %26 : vector<1x64x128xf32> to vector<64x128xf32>
    %cst_19 = arith.constant dense<0.000000e+00> : vector<128x128xf32>
    %28 = tpu.matmul %25, %27, %cst_19 {dimension_numbers = #tpu.dot_dimension_numbers<[1], [0], [0], [1], [0, 0, 1, 1], [], []>} : vector<128x64xf32>, vector<64x128xf32>, vector<128x128xf32> -> vector<128x128xf32>
    %29 = arith.addf %22, %28 : vector<128x128xf32>
    %30 = vector.extract_strided_slice %16 {offsets = [0, 2, 0, 0], sizes = [2, 1, 64, 64], strides = [1, 1, 1, 1]} : vector<2x4x64x64xf32> to vector<2x1x64x64xf32>
    %31 = vector.shape_cast %30 : vector<2x1x64x64xf32> to vector<2x64x64xf32>
    %32 = vector.shape_cast %31 : vector<2x64x64xf32> to vector<128x64xf32>
    %c2 = arith.constant 2 : index
    %c0_20 = arith.constant 0 : index
    %c0_21 = arith.constant 0 : index
    %33 = vector.load %arg6[%c2, %c0_20, %c0_21] : memref<4x64x128xf32, #tpu.memory_space<vmem>>, vector<1x64x128xf32>
    %34 = vector.shape_cast %33 : vector<1x64x128xf32> to vector<64x128xf32>
    %cst_22 = arith.constant dense<0.000000e+00> : vector<128x128xf32>
    %35 = tpu.matmul %32, %34, %cst_22 {dimension_numbers = #tpu.dot_dimension_numbers<[1], [0], [0], [1], [0, 0, 1, 1], [], []>} : vector<128x64xf32>, vector<64x128xf32>, vector<128x128xf32> -> vector<128x128xf32>
    %36 = arith.addf %29, %35 : vector<128x128xf32>
    %37 = vector.extract_strided_slice %16 {offsets = [0, 3, 0, 0], sizes = [2, 1, 64, 64], strides = [1, 1, 1, 1]} : vector<2x4x64x64xf32> to vector<2x1x64x64xf32>
    %38 = vector.shape_cast %37 : vector<2x1x64x64xf32> to vector<2x64x64xf32>
    %39 = vector.shape_cast %38 : vector<2x64x64xf32> to vector<128x64xf32>
    %c3 = arith.constant 3 : index
    %c0_23 = arith.constant 0 : index
    %c0_24 = arith.constant 0 : index
    %40 = vector.load %arg6[%c3, %c0_23, %c0_24] : memref<4x64x128xf32, #tpu.memory_space<vmem>>, vector<1x64x128xf32>
    %41 = vector.shape_cast %40 : vector<1x64x128xf32> to vector<64x128xf32>
    %cst_25 = arith.constant dense<0.000000e+00> : vector<128x128xf32>
    %42 = tpu.matmul %39, %41, %cst_25 {dimension_numbers = #tpu.dot_dimension_numbers<[1], [0], [0], [1], [0, 0, 1, 1], [], []>} : vector<128x64xf32>, vector<64x128xf32>, vector<128x128xf32> -> vector<128x128xf32>
    %43 = arith.addf %36, %42 : vector<128x128xf32>
    %c0_26 = arith.constant 0 : index
    %c0_27 = arith.constant 0 : index
    %44 = vector.load %arg7[%c0_26, %c0_27] : memref<1x128xf32, #tpu.memory_space<vmem>>, vector<1x128xf32>
    %45 = vector.broadcast %44 : vector<1x128xf32> to vector<128x128xf32>
    %46 = arith.addf %43, %45 : vector<128x128xf32>
    %cst_28 = arith.constant 0.000000e+00 : f32
    %47 = vector.broadcast %cst_28 : f32 to vector<128x128xf32>
    %48 = arith.maximumf %46, %47 : vector<128x128xf32>
    %49 = vector.shape_cast %48 : vector<128x128xf32> to vector<2x64x128xf32>
    %c0_29 = arith.constant 0 : index
    %c0_30 = arith.constant 0 : index
    %c0_31 = arith.constant 0 : index
    %50 = vector.load %arg8[%c0_29, %c0_30, %c0_31] : memref<2x64x128xf32, #tpu.memory_space<vmem>>, vector<2x64x128xf32>
    tpu.vector_store %arg8[%c0_29, %c0_30, %c0_31], %49 {strides = array<i32>} : memref<2x64x128xf32, #tpu.memory_space<vmem>>, vector<2x64x128xf32>,
    return
  }
  func.func @transform_0(%arg0: i32) -> (i32, i32, i32) {
    %c0_i32 = arith.constant 0 : i32
    %c0_i32_0 = arith.constant 0 : i32
    %c0_i32_1 = arith.constant 0 : i32
    return %arg0, %c0_i32, %c0_i32_0 : i32, i32, i32
  }
  func.func @transform_1(%arg0: i32) -> (i32, i32) {
    %c0_i32 = arith.constant 0 : i32
    %c0_i32_0 = arith.constant 0 : i32
    %c0_i32_1 = arith.constant 0 : i32
    return %c0_i32, %c0_i32_0 : i32, i32
  }
  func.func @transform_2(%arg0: i32) -> (i32, i32) {
    %c0_i32 = arith.constant 0 : i32
    %c0_i32_0 = arith.constant 0 : i32
    %c0_i32_1 = arith.constant 0 : i32
    return %c0_i32, %c0_i32_0 : i32, i32
  }
  func.func @transform_3(%arg0: i32) -> (i32, i32) {
    %c0_i32 = arith.constant 0 : i32
    %c0_i32_0 = arith.constant 0 : i32
    %c0_i32_1 = arith.constant 0 : i32
    return %c0_i32, %c0_i32_0 : i32, i32
  }
  func.func @transform_4(%arg0: i32) -> (i32, i32) {
    %c0_i32 = arith.constant 0 : i32
    %c0_i32_0 = arith.constant 0 : i32
    %c0_i32_1 = arith.constant 0 : i32
    return %c0_i32, %c0_i32_0 : i32, i32
  }
  func.func @transform_5(%arg0: i32) -> (i32, i32, i32) {
    %c0_i32 = arith.constant 0 : i32
    %c0_i32_0 = arith.constant 0 : i32
    %c0_i32_1 = arith.constant 0 : i32
    %c0_i32_2 = arith.constant 0 : i32
    return %c0_i32, %c0_i32_0, %c0_i32_1 : i32, i32, i32
  }
  func.func @transform_6(%arg0: i32) -> (i32, i32) {
    %c0_i32 = arith.constant 0 : i32
    %c0_i32_0 = arith.constant 0 : i32
    %c0_i32_1 = arith.constant 0 : i32
    return %c0_i32, %c0_i32_0 : i32, i32
  }
  func.func @transform_7(%arg0: i32) -> (i32, i32, i32) {
    %c0_i32 = arith.constant 0 : i32
    %c0_i32_0 = arith.constant 0 : i32
    %c0_i32_1 = arith.constant 0 : i32
    return %arg0, %c0_i32, %c0_i32_0 : i32, i32, i32
  }
}

module attributes {stable_mosaic.version = 11 : i64} {
  func.func @_layer4_kernel(%arg0: i32, %arg1: memref<2x4096xf32, #tpu.memory_space<vmem>>, %arg2: memref<4096x256xbf16, #tpu.memory_space<vmem>>, %arg3: memref<1x256xf32, #tpu.memory_space<vmem>>, %arg4: memref<2x256xf32, #tpu.memory_space<vmem>>) attributes {dimension_semantics = [#tpu.dimension_semantics<arbitrary>], iteration_bounds = array<i64: 2>, scalar_prefetch = 0 : i64, scratch_operands = 0 : i64, tpu.core_type = #tpu.core_type<tc>, window_params = [{transform_indices = @transform_0, window_bounds = array<i64: 2, 4096>}, {transform_indices = @transform_1, window_bounds = array<i64: 4096, 256>}, {pipeline_mode = #tpu.pipeline_mode<synchronous>, transform_indices = @transform_2, window_bounds = array<i64: 1, 256>}, {pipeline_mode = #tpu.pipeline_mode<synchronous>, transform_indices = @transform_3, window_bounds = array<i64: 2, 256>}]} {
    %c0_i32 = arith.constant 0 : i32
    %0 = arith.cmpi eq, %arg0, %c0_i32 : i32
    %1 = arith.extui %0 : i1 to i32
    %c0_i32_0 = arith.constant 0 : i32
    %2 = arith.cmpi ne, %1, %c0_i32_0 : i32
    scf.if %2 {
      %cst_9 = arith.constant 0.000000e+00 : f32
      %13 = vector.broadcast %cst_9 : f32 to vector<2x256xf32>
      %c0_10 = arith.constant 0 : index
      %c0_11 = arith.constant 0 : index
      %14 = vector.load %arg4[%c0_10, %c0_11] : memref<2x256xf32, #tpu.memory_space<vmem>>, vector<2x256xf32>
      tpu.vector_store %arg4[%c0_10, %c0_11], %13 {strides = array<i32>} : memref<2x256xf32, #tpu.memory_space<vmem>>, vector<2x256xf32>,
    } else {
    }
    %c0 = arith.constant 0 : index
    %c0_1 = arith.constant 0 : index
    %3 = vector.load %arg4[%c0, %c0_1] : memref<2x256xf32, #tpu.memory_space<vmem>>, vector<2x256xf32>
    %c0_2 = arith.constant 0 : index
    %c0_3 = arith.constant 0 : index
    %4 = vector.load %arg1[%c0_2, %c0_3] : memref<2x4096xf32, #tpu.memory_space<vmem>>, vector<2x4096xf32>
    %5 = arith.truncf %4 : vector<2x4096xf32> to vector<2x4096xbf16>
    %c0_4 = arith.constant 0 : index
    %c0_5 = arith.constant 0 : index
    %6 = vector.load %arg2[%c0_4, %c0_5] : memref<4096x256xbf16, #tpu.memory_space<vmem>>, vector<4096x256xbf16>
    %cst = arith.constant dense<0.000000e+00> : vector<2x256xf32>
    %7 = tpu.matmul %5, %6, %cst {dimension_numbers = #tpu.dot_dimension_numbers<[1], [0], [0], [1], [0, 0, 1, 1], [], []>} : vector<2x4096xbf16>, vector<4096x256xbf16>, vector<2x256xf32> -> vector<2x256xf32>
    %8 = arith.addf %3, %7 : vector<2x256xf32>
    %c0_6 = arith.constant 0 : index
    %c0_7 = arith.constant 0 : index
    %9 = vector.load %arg4[%c0_6, %c0_7] : memref<2x256xf32, #tpu.memory_space<vmem>>, vector<2x256xf32>
    tpu.vector_store %arg4[%c0_6, %c0_7], %8 {strides = array<i32>} : memref<2x256xf32, #tpu.memory_space<vmem>>, vector<2x256xf32>,
    %c1_i32 = arith.constant 1 : i32
    %10 = arith.cmpi eq, %arg0, %c1_i32 : i32
    %11 = arith.extui %10 : i1 to i32
    %c0_i32_8 = arith.constant 0 : i32
    %12 = arith.cmpi ne, %11, %c0_i32_8 : i32
    scf.if %12 {
      %c0_9 = arith.constant 0 : index
      %c0_10 = arith.constant 0 : index
      %13 = vector.load %arg4[%c0_9, %c0_10] : memref<2x256xf32, #tpu.memory_space<vmem>>, vector<2x256xf32>
      %c0_11 = arith.constant 0 : index
      %c0_12 = arith.constant 0 : index
      %14 = vector.load %arg3[%c0_11, %c0_12] : memref<1x256xf32, #tpu.memory_space<vmem>>, vector<1x256xf32>
      %15 = vector.broadcast %14 : vector<1x256xf32> to vector<2x256xf32>
      %16 = arith.addf %13, %15 : vector<2x256xf32>
      %cst_13 = arith.constant 0.000000e+00 : f32
      %17 = vector.broadcast %cst_13 : f32 to vector<2x256xf32>
      %18 = arith.maximumf %16, %17 : vector<2x256xf32>
      %c0_14 = arith.constant 0 : index
      %c0_15 = arith.constant 0 : index
      %19 = vector.load %arg4[%c0_14, %c0_15] : memref<2x256xf32, #tpu.memory_space<vmem>>, vector<2x256xf32>
      tpu.vector_store %arg4[%c0_14, %c0_15], %18 {strides = array<i32>} : memref<2x256xf32, #tpu.memory_space<vmem>>, vector<2x256xf32>,
    } else {
    }
    return
  }
  func.func @transform_0(%arg0: i32) -> (i32, i32) {
    %c0_i32 = arith.constant 0 : i32
    %c0_i32_0 = arith.constant 0 : i32
    return %c0_i32, %arg0 : i32, i32
  }
  func.func @transform_1(%arg0: i32) -> (i32, i32) {
    %c0_i32 = arith.constant 0 : i32
    %c0_i32_0 = arith.constant 0 : i32
    return %arg0, %c0_i32 : i32, i32
  }
  func.func @transform_2(%arg0: i32) -> (i32, i32) {
    %c0_i32 = arith.constant 0 : i32
    %c0_i32_0 = arith.constant 0 : i32
    %c0_i32_1 = arith.constant 0 : i32
    return %c0_i32, %c0_i32_0 : i32, i32
  }
  func.func @transform_3(%arg0: i32) -> (i32, i32) {
    %c0_i32 = arith.constant 0 : i32
    %c0_i32_0 = arith.constant 0 : i32
    %c0_i32_1 = arith.constant 0 : i32
    return %c0_i32, %c0_i32_0 : i32, i32
  }
}

</mosaic_0001>

<llo_original>
// kernel: pyramid_forward.2
$region0: #{pyramid_forward.2}
  #allocation0 [shape = 'u32[]', space=smem, size = 0x4, offset = 0x4, fixed_abs, tag = 'smem constant byte address 0x4 - core index']
  #allocation1 [shape = 'u32[72,128]{1,0:T(1,128)}', space=vmem, size = 0x9000, scoped, tag = 'internal scratch']
  %s0 = inlined_call_operand.vmem [shape: f32[2,256,256], index: 0, kind: input, shape index: {}]
  %s1 = inlined_call_operand.vmem [shape: f32[256,128], index: 1, kind: input, shape index: {}]
  %s2 = inlined_call_operand.vmem [shape: f32[1,128], index: 2, kind: input, shape index: {}]
  %s3 = inlined_call_operand.vmem [shape: f32[128,64], index: 3, kind: input, shape index: {}]
  %s4 = inlined_call_operand.vmem [shape: f32[1,64], index: 4, kind: input, shape index: {}]
  %s5 = inlined_call_operand.vmem [shape: f32[4,64,128], index: 5, kind: input, shape index: {}]
  %s6 = inlined_call_operand.vmem [shape: f32[1,128], index: 6, kind: input, shape index: {}]
  %s7 = inlined_call_operand.vmem [shape: f32[2,64,128], index: 7, kind: output, shape index: {}]
  %s8 = sld [smem:[#allocation0]]
  $region38: #{pyramid_forward.2} parent=0
    _
  %s10 = ssub.s32 1, %s8
  %s11 = scalar_select 0, %s10, %s8
  // Predicated region
  $region2: #{pyramid_forward.2} parent=0 // pred_check
    _
  $region3: #{pyramid_forward.2} parent=0 // pred_check_branch
    %13 = sbr.rel (0) target = $region5
  $region4: #{pyramid_forward.2} parent=0 // pred_region
    _
  $region5: #{pyramid_forward.2} parent=0 // pred_fallthru
    _
  // Predicated region
  $region6: #{pyramid_forward.2} parent=0 // pred_check
    _
  $region7: #{pyramid_forward.2} parent=0 // pred_check_branch
    %15 = sbr.rel (0) target = $region9
  $region8: #{pyramid_forward.2} parent=0 // pred_region
    _
  $region9: #{pyramid_forward.2} parent=0 // pred_fallthru
    _
  // Predicated region
  $region10: #{pyramid_forward.2} parent=0 // pred_check
    _
  $region11: #{pyramid_forward.2} parent=0 // pred_check_branch
    %17 = sbr.rel (0) target = $region13
  $region12: #{pyramid_forward.2} parent=0 // pred_region
    _
  $region13: #{pyramid_forward.2} parent=0 // pred_fallthru
    _
  // Predicated region
  $region14: #{pyramid_forward.2} parent=0 // pred_check
    _
  $region15: #{pyramid_forward.2} parent=0 // pred_check_branch
    %19 = sbr.rel (0) target = $region17
  $region16: #{pyramid_forward.2} parent=0 // pred_region
    _
  $region17: #{pyramid_forward.2} parent=0 // pred_fallthru
    _
  // Predicated region
  $region18: #{pyramid_forward.2} parent=0 // pred_check
    _
  $region19: #{pyramid_forward.2} parent=0 // pred_check_branch
    %21 = sbr.rel (0) target = $region21
  $region20: #{pyramid_forward.2} parent=0 // pred_region
    _
  $region21: #{pyramid_forward.2} parent=0 // pred_fallthru
    _
  // Predicated region
  $region22: #{pyramid_forward.2} parent=0 // pred_check
    _
  $region23: #{pyramid_forward.2} parent=0 // pred_check_branch
    %23 = sbr.rel (0) target = $region25
  $region24: #{pyramid_forward.2} parent=0 // pred_region
    _
  $region25: #{pyramid_forward.2} parent=0 // pred_fallthru
    _
  // Predicated region
  $region26: #{pyramid_forward.2} parent=0 // pred_check
    _
  $region27: #{pyramid_forward.2} parent=0 // pred_check_branch
    %25 = sbr.rel (0) target = $region29
  $region28: #{pyramid_forward.2} parent=0 // pred_region
    _
  $region29: #{pyramid_forward.2} parent=0 // pred_fallthru
    _
  %v26 = vld [vmem:[%s0] sm:$0xff]
  %v27 = vld [vmem:[%s0 + $0x8] sm:$0xff]
  %v28 = vld [vmem:[%s0 + $0x10] sm:$0xff]
  %v29 = vld [vmem:[%s0 + $0x18] sm:$0xff]
  %v30 = vld [vmem:[%s0 + $0x20] sm:$0xff]
  %v31 = vld [vmem:[%s0 + $0x28] sm:$0xff]
  %v32 = vld [vmem:[%s0 + $0x30] sm:$0xff]
  %v33 = vld [vmem:[%s0 + $0x38] sm:$0xff]
  %v34 = vld [vmem:[%s0 + $0x40] sm:$0xff]
  %v35 = vld [vmem:[%s0 + $0x48] sm:$0xff]
  %v36 = vld [vmem:[%s0 + $0x50] sm:$0xff]
  %v37 = vld [vmem:[%s0 + $0x58] sm:$0xff]
  %v38 = vld [vmem:[%s0 + $0x60] sm:$0xff]
  %v39 = vld [vmem:[%s0 + $0x68] sm:$0xff]
  %v40 = vld [vmem:[%s0 + $0x70] sm:$0xff]
  %v41 = vld [vmem:[%s0 + $0x78] sm:$0xff]
  %v42 = vld [vmem:[%s0 + $0x80] sm:$0xff]
  %v43 = vld [vmem:[%s0 + $0x88] sm:$0xff]
  %v44 = vld [vmem:[%s0 + $0x90] sm:$0xff]
  %v45 = vld [vmem:[%s0 + $0x98] sm:$0xff]
  %v46 = vld [vmem:[%s0 + $0xa0] sm:$0xff]
  %v47 = vld [vmem:[%s0 + $0xa8] sm:$0xff]
  %v48 = vld [vmem:[%s0 + $0xb0] sm:$0xff]
  %v49 = vld [vmem:[%s0 + $0xb8] sm:$0xff]
  %v50 = vld [vmem:[%s0 + $0xc0] sm:$0xff]
  %v51 = vld [vmem:[%s0 + $0xc8] sm:$0xff]
  %v52 = vld [vmem:[%s0 + $0xd0] sm:$0xff]
  %v53 = vld [vmem:[%s0 + $0xd8] sm:$0xff]
  %v54 = vld [vmem:[%s0 + $0xe0] sm:$0xff]
  %v55 = vld [vmem:[%s0 + $0xe8] sm:$0xff]
  %v56 = vld [vmem:[%s0 + $0xf0] sm:$0xff]
  %v57 = vld [vmem:[%s0 + $0xf8] sm:$0xff]
  %v58 = vld [vmem:[%s0 + $0x100] sm:$0xff]
  %v59 = vld [vmem:[%s0 + $0x108] sm:$0xff]
  %v60 = vld [vmem:[%s0 + $0x110] sm:$0xff]
  %v61 = vld [vmem:[%s0 + $0x118] sm:$0xff]
  %v62 = vld [vmem:[%s0 + $0x120] sm:$0xff]
  %v63 = vld [vmem:[%s0 + $0x128] sm:$0xff]
  %v64 = vld [vmem:[%s0 + $0x130] sm:$0xff]
  %v65 = vld [vmem:[%s0 + $0x138] sm:$0xff]
  %v66 = vld [vmem:[%s0 + $0x140] sm:$0xff]
  %v67 = vld [vmem:[%s0 + $0x148] sm:$0xff]
  %v68 = vld [vmem:[%s0 + $0x150] sm:$0xff]
  %v69 = vld [vmem:[%s0 + $0x158] sm:$0xff]
  %v70 = vld [vmem:[%s0 + $0x160] sm:$0xff]
  %v71 = vld [vmem:[%s0 + $0x168] sm:$0xff]
  %v72 = vld [vmem:[%s0 + $0x170] sm:$0xff]
  %v73 = vld [vmem:[%s0 + $0x178] sm:$0xff]
  %v74 = vld [vmem:[%s0 + $0x180] sm:$0xff]
  %v75 = vld [vmem:[%s0 + $0x188] sm:$0xff]
  %v76 = vld [vmem:[%s0 + $0x190] sm:$0xff]
  %v77 = vld [vmem:[%s0 + $0x198] sm:$0xff]
  %v78 = vld [vmem:[%s0 + $0x1a0] sm:$0xff]
  %v79 = vld [vmem:[%s0 + $0x1a8] sm:$0xff]
  %v80 = vld [vmem:[%s0 + $0x1b0] sm:$0xff]
  %v81 = vld [vmem:[%s0 + $0x1b8] sm:$0xff]
  %v82 = vld [vmem:[%s0 + $0x1c0] sm:$0xff]
  %v83 = vld [vmem:[%s0 + $0x1c8] sm:$0xff]
  %v84 = vld [vmem:[%s0 + $0x1d0] sm:$0xff]
  %v85 = vld [vmem:[%s0 + $0x1d8] sm:$0xff]
  %v86 = vld [vmem:[%s0 + $0x1e0] sm:$0xff]
  %v87 = vld [vmem:[%s0 + $0x1e8] sm:$0xff]
  %v88 = vld [vmem:[%s0 + $0x1f0] sm:$0xff]
  %v89 = vld [vmem:[%s0 + $0x1f8] sm:$0xff]
  %v90 = vld [vmem:[%s0 + $0x200] sm:$0xff]
  %v91 = vld [vmem:[%s0 + $0x208] sm:$0xff]
  %v92 = vld [vmem:[%s0 + $0x210] sm:$0xff]
  %v93 = vld [vmem:[%s0 + $0x218] sm:$0xff]
  %v94 = vld [vmem:[%s0 + $0x220] sm:$0xff]
  %v95 = vld [vmem:[%s0 + $0x228] sm:$0xff]
  %v96 = vld [vmem:[%s0 + $0x230] sm:$0xff]
  %v97 = vld [vmem:[%s0 + $0x238] sm:$0xff]
  %v98 = vld [vmem:[%s0 + $0x240] sm:$0xff]
  %v99 = vld [vmem:[%s0 + $0x248] sm:$0xff]
  %v100 = vld [vmem:[%s0 + $0x250] sm:$0xff]
  %v101 = vld [vmem:[%s0 + $0x258] sm:$0xff]
  %v102 = vld [vmem:[%s0 + $0x260] sm:$0xff]
  %v103 = vld [vmem:[%s0 + $0x268] sm:$0xff]
  %v104 = vld [vmem:[%s0 + $0x270] sm:$0xff]
  %v105 = vld [vmem:[%s0 + $0x278] sm:$0xff]
  %v106 = vld [vmem:[%s0 + $0x280] sm:$0xff]
  %v107 = vld [vmem:[%s0 + $0x288] sm:$0xff]
  %v108 = vld [vmem:[%s0 + $0x290] sm:$0xff]
  %v109 = vld [vmem:[%s0 + $0x298] sm:$0xff]
  %v110 = vld [vmem:[%s0 + $0x2a0] sm:$0xff]
  %v111 = vld [vmem:[%s0 + $0x2a8] sm:$0xff]
  %v112 = vld [vmem:[%s0 + $0x2b0] sm:$0xff]
  %v113 = vld [vmem:[%s0 + $0x2b8] sm:$0xff]
  %v114 = vld [vmem:[%s0 + $0x2c0] sm:$0xff]
  %v115 = vld [vmem:[%s0 + $0x2c8] sm:$0xff]
  %v116 = vld [vmem:[%s0 + $0x2d0] sm:$0xff]
  %v117 = vld [vmem:[%s0 + $0x2d8] sm:$0xff]
  %v118 = vld [vmem:[%s0 + $0x2e0] sm:$0xff]
  %v119 = vld [vmem:[%s0 + $0x2e8] sm:$0xff]
  %v120 = vld [vmem:[%s0 + $0x2f0] sm:$0xff]
  %v121 = vld [vmem:[%s0 + $0x2f8] sm:$0xff]
  %v122 = vld [vmem:[%s0 + $0x300] sm:$0xff]
  %v123 = vld [vmem:[%s0 + $0x308] sm:$0xff]
  %v124 = vld [vmem:[%s0 + $0x310] sm:$0xff]
  %v125 = vld [vmem:[%s0 + $0x318] sm:$0xff]
  %v126 = vld [vmem:[%s0 + $0x320] sm:$0xff]
  %v127 = vld [vmem:[%s0 + $0x328] sm:$0xff]
  %v128 = vld [vmem:[%s0 + $0x330] sm:$0xff]
  %v129 = vld [vmem:[%s0 + $0x338] sm:$0xff]
  %v130 = vld [vmem:[%s0 + $0x340] sm:$0xff]
  %v131 = vld [vmem:[%s0 + $0x348] sm:$0xff]
  %v132 = vld [vmem:[%s0 + $0x350] sm:$0xff]
  %v133 = vld [vmem:[%s0 + $0x358] sm:$0xff]
  %v134 = vld [vmem:[%s0 + $0x360] sm:$0xff]
  %v135 = vld [vmem:[%s0 + $0x368] sm:$0xff]
  %v136 = vld [vmem:[%s0 + $0x370] sm:$0xff]
  %v137 = vld [vmem:[%s0 + $0x378] sm:$0xff]
  %v138 = vld [vmem:[%s0 + $0x380] sm:$0xff]
  %v139 = vld [vmem:[%s0 + $0x388] sm:$0xff]
  %v140 = vld [vmem:[%s0 + $0x390] sm:$0xff]
  %v141 = vld [vmem:[%s0 + $0x398] sm:$0xff]
  %v142 = vld [vmem:[%s0 + $0x3a0] sm:$0xff]
  %v143 = vld [vmem:[%s0 + $0x3a8] sm:$0xff]
  %v144 = vld [vmem:[%s0 + $0x3b0] sm:$0xff]
  %v145 = vld [vmem:[%s0 + $0x3b8] sm:$0xff]
  %v146 = vld [vmem:[%s0 + $0x3c0] sm:$0xff]
  %v147 = vld [vmem:[%s0 + $0x3c8] sm:$0xff]
  %v148 = vld [vmem:[%s0 + $0x3d0] sm:$0xff]
  %v149 = vld [vmem:[%s0 + $0x3d8] sm:$0xff]
  %v150 = vld [vmem:[%s0 + $0x3e0] sm:$0xff]
  %v151 = vld [vmem:[%s0 + $0x3e8] sm:$0xff]
  %v152 = vld [vmem:[%s0 + $0x3f0] sm:$0xff]
  %v153 = vld [vmem:[%s0 + $0x3f8] sm:$0xff]
  %v154 = vld [vmem:[%s1] sm:$0xff]
  %v155 = vld [vmem:[%s1 + $0x8] sm:$0xff]
  %v156 = vld [vmem:[%s1 + $0x10] sm:$0xff]
  %v157 = vld [vmem:[%s1 + $0x18] sm:$0xff]
  %v158 = vld [vmem:[%s1 + $0x20] sm:$0xff]
  %v159 = vld [vmem:[%s1 + $0x28] sm:$0xff]
  %v160 = vld [vmem:[%s1 + $0x30] sm:$0xff]
  %v161 = vld [vmem:[%s1 + $0x38] sm:$0xff]
  %v162 = vld [vmem:[%s1 + $0x40] sm:$0xff]
  %v163 = vld [vmem:[%s1 + $0x48] sm:$0xff]
  %v164 = vld [vmem:[%s1 + $0x50] sm:$0xff]
  %v165 = vld [vmem:[%s1 + $0x58] sm:$0xff]
  %v166 = vld [vmem:[%s1 + $0x60] sm:$0xff]
  %v167 = vld [vmem:[%s1 + $0x68] sm:$0xff]
  %v168 = vld [vmem:[%s1 + $0x70] sm:$0xff]
  %v169 = vld [vmem:[%s1 + $0x78] sm:$0xff]
  %v170 = vld [vmem:[%s1 + $0x80] sm:$0xff]
  %v171 = vld [vmem:[%s1 + $0x88] sm:$0xff]
  %v172 = vld [vmem:[%s1 + $0x90] sm:$0xff]
  %v173 = vld [vmem:[%s1 + $0x98] sm:$0xff]
  %v174 = vld [vmem:[%s1 + $0xa0] sm:$0xff]
  %v175 = vld [vmem:[%s1 + $0xa8] sm:$0xff]
  %v176 = vld [vmem:[%s1 + $0xb0] sm:$0xff]
  %v177 = vld [vmem:[%s1 + $0xb8] sm:$0xff]
  %v178 = vld [vmem:[%s1 + $0xc0] sm:$0xff]
  %v179 = vld [vmem:[%s1 + $0xc8] sm:$0xff]
  %v180 = vld [vmem:[%s1 + $0xd0] sm:$0xff]
  %v181 = vld [vmem:[%s1 + $0xd8] sm:$0xff]
  %v182 = vld [vmem:[%s1 + $0xe0] sm:$0xff]
  %v183 = vld [vmem:[%s1 + $0xe8] sm:$0xff]
  %v184 = vld [vmem:[%s1 + $0xf0] sm:$0xff]
  %v185 = vld [vmem:[%s1 + $0xf8] sm:$0xff]
  %v186 = vld [vmem:[%s2] sm:$0x1]
  %v188 = vperm.slane %v186, 0
  %190 = vmatpush.msra.mxu0 %v169
  %191 = vmatpush.msra.mxu0 %v168
  %192 = vmatpush.msra.mxu0 %v167
  %193 = vmatpush.msra.mxu0 %v166
  %194 = vmatpush.msra.mxu0 %v165
  %195 = vmatpush.msra.mxu0 %v164
  %196 = vmatpush.msra.mxu0 %v163
  %197 = vmatpush.msra.mxu0 %v162
  %198 = vmatpush.msra.mxu0 %v161
  %199 = vmatpush.msra.mxu0 %v160
  %200 = vmatpush.msra.mxu0 %v159
  %201 = vmatpush.msra.mxu0 %v158
  %202 = vmatpush.msra.mxu0 %v157
  %203 = vmatpush.msra.mxu0 %v156
  %204 = vmatpush.msra.mxu0 %v155
  %205 = vmatpush.msra.mxu0 %v154
  %206 = vmatmul.f32.gmra.mxu0 %v26
  %v207 = vpop.f32.mrf.mxu0
  %v208 = vadd.f32 %v188, %v207
  %209 = vmatmul.f32.gmra.mxu0 %v28
  %v210 = vpop.f32.mrf.mxu0
  %v211 = vadd.f32 %v188, %v210
  %212 = vmatmul.f32.gmra.mxu0 %v30
  %v213 = vpop.f32.mrf.mxu0
  %v214 = vadd.f32 %v188, %v213
  %215 = vmatmul.f32.gmra.mxu0 %v32
  %v216 = vpop.f32.mrf.mxu0
  %v217 = vadd.f32 %v188, %v216
  %218 = vmatmul.f32.gmra.mxu0 %v34
  %v219 = vpop.f32.mrf.mxu0
  %v220 = vadd.f32 %v188, %v219
  %221 = vmatmul.f32.gmra.mxu0 %v36
  %v222 = vpop.f32.mrf.mxu0
  %v223 = vadd.f32 %v188, %v222
  %224 = vmatmul.f32.gmra.mxu0 %v38
  %v225 = vpop.f32.mrf.mxu0
  %v226 = vadd.f32 %v188, %v225
  %227 = vmatmul.f32.gmra.mxu0 %v40
  %v228 = vpop.f32.mrf.mxu0
  %v229 = vadd.f32 %v188, %v228
  %230 = vmatmul.f32.gmra.mxu0 %v42
  %v231 = vpop.f32.mrf.mxu0
  %v232 = vadd.f32 %v188, %v231
  %233 = vmatmul.f32.gmra.mxu0 %v44
  %v234 = vpop.f32.mrf.mxu0
  %v235 = vadd.f32 %v188, %v234
  %236 = vmatmul.f32.gmra.mxu0 %v46
  %v237 = vpop.f32.mrf.mxu0
  %v238 = vadd.f32 %v188, %v237
  %239 = vmatmul.f32.gmra.mxu0 %v48
  %v240 = vpop.f32.mrf.mxu0
  %v241 = vadd.f32 %v188, %v240
  %242 = vmatmul.f32.gmra.mxu0 %v50
  %v243 = vpop.f32.mrf.mxu0
  %v244 = vadd.f32 %v188, %v243
  %245 = vmatmul.f32.gmra.mxu0 %v52
  %v246 = vpop.f32.mrf.mxu0
  %v247 = vadd.f32 %v188, %v246
  %248 = vmatmul.f32.gmra.mxu0 %v54
  %v249 = vpop.f32.mrf.mxu0
  %v250 = vadd.f32 %v188, %v249
  %251 = vmatmul.f32.gmra.mxu0 %v56
  %v252 = vpop.f32.mrf.mxu0
  %v253 = vadd.f32 %v188, %v252
  %254 = vmatmul.f32.gmra.mxu0 %v58
  %v255 = vpop.f32.mrf.mxu0
  %v256 = vadd.f32 %v188, %v255
  %257 = vmatmul.f32.gmra.mxu0 %v60
  %v258 = vpop.f32.mrf.mxu0
  %v259 = vadd.f32 %v188, %v258
  %260 = vmatmul.f32.gmra.mxu0 %v62
  %v261 = vpop.f32.mrf.mxu0
  %v262 = vadd.f32 %v188, %v261
  %263 = vmatmul.f32.gmra.mxu0 %v64
  %v264 = vpop.f32.mrf.mxu0
  %v265 = vadd.f32 %v188, %v264
  %266 = vmatmul.f32.gmra.mxu0 %v66
  %v267 = vpop.f32.mrf.mxu0
  %v268 = vadd.f32 %v188, %v267
  %269 = vmatmul.f32.gmra.mxu0 %v68
  %v270 = vpop.f32.mrf.mxu0
  %v271 = vadd.f32 %v188, %v270
  %272 = vmatmul.f32.gmra.mxu0 %v70
  %v273 = vpop.f32.mrf.mxu0
  %v274 = vadd.f32 %v188, %v273
  %275 = vmatmul.f32.gmra.mxu0 %v72
  %v276 = vpop.f32.mrf.mxu0
  %v277 = vadd.f32 %v188, %v276
  %278 = vmatmul.f32.gmra.mxu0 %v74
  %v279 = vpop.f32.mrf.mxu0
  %v280 = vadd.f32 %v188, %v279
  %281 = vmatmul.f32.gmra.mxu0 %v76
  %v282 = vpop.f32.mrf.mxu0
  %v283 = vadd.f32 %v188, %v282
  %284 = vmatmul.f32.gmra.mxu0 %v78
  %v285 = vpop.f32.mrf.mxu0
  %v286 = vadd.f32 %v188, %v285
  %287 = vmatmul.f32.gmra.mxu0 %v80
  %v288 = vpop.f32.mrf.mxu0
  %v289 = vadd.f32 %v188, %v288
  %290 = vmatmul.f32.gmra.mxu0 %v82
  %v291 = vpop.f32.mrf.mxu0
  %v292 = vadd.f32 %v188, %v291
  %293 = vmatmul.f32.gmra.mxu0 %v84
  %v294 = vpop.f32.mrf.mxu0
  %v295 = vadd.f32 %v188, %v294
  %296 = vmatmul.f32.gmra.mxu0 %v86
  %v297 = vpop.f32.mrf.mxu0
  %v298 = vadd.f32 %v188, %v297
  %299 = vmatmul.f32.gmra.mxu0 %v88
  %v300 = vpop.f32.mrf.mxu0
  %v301 = vadd.f32 %v188, %v300
  %302 = vmatmul.f32.gmra.mxu0 %v90
  %v303 = vpop.f32.mrf.mxu0
  %v304 = vadd.f32 %v188, %v303
  %305 = vmatmul.f32.gmra.mxu0 %v92
  %v306 = vpop.f32.mrf.mxu0
  %v307 = vadd.f32 %v188, %v306
  %308 = vmatmul.f32.gmra.mxu0 %v94
  %v309 = vpop.f32.mrf.mxu0
  %v310 = vadd.f32 %v188, %v309
  %311 = vmatmul.f32.gmra.mxu0 %v96
  %v312 = vpop.f32.mrf.mxu0
  %v313 = vadd.f32 %v188, %v312
  %314 = vmatmul.f32.gmra.mxu0 %v98
  %v315 = vpop.f32.mrf.mxu0
  %v316 = vadd.f32 %v188, %v315
  %317 = vmatmul.f32.gmra.mxu0 %v100
  %v318 = vpop.f32.mrf.mxu0
  %v319 = vadd.f32 %v188, %v318
  %320 = vmatmul.f32.gmra.mxu0 %v102
  %v321 = vpop.f32.mrf.mxu0
  %v322 = vadd.f32 %v188, %v321
  %323 = vmatmul.f32.gmra.mxu0 %v104
  %v324 = vpop.f32.mrf.mxu0
  %v325 = vadd.f32 %v188, %v324
  %326 = vmatmul.f32.gmra.mxu0 %v106
  %v327 = vpop.f32.mrf.mxu0
  %v328 = vadd.f32 %v188, %v327
  %329 = vmatmul.f32.gmra.mxu0 %v108
  %v330 = vpop.f32.mrf.mxu0
  %v331 = vadd.f32 %v188, %v330
  %332 = vmatmul.f32.gmra.mxu0 %v110
  %v333 = vpop.f32.mrf.mxu0
  %v334 = vadd.f32 %v188, %v333
  %335 = vmatmul.f32.gmra.mxu0 %v112
  %v336 = vpop.f32.mrf.mxu0
  %v337 = vadd.f32 %v188, %v336
  %338 = vmatmul.f32.gmra.mxu0 %v114
  %v339 = vpop.f32.mrf.mxu0
  %v340 = vadd.f32 %v188, %v339
  %341 = vmatmul.f32.gmra.mxu0 %v116
  %v342 = vpop.f32.mrf.mxu0
  %v343 = vadd.f32 %v188, %v342
  %344 = vmatmul.f32.gmra.mxu0 %v118
  %v345 = vpop.f32.mrf.mxu0
  %v346 = vadd.f32 %v188, %v345
  %347 = vmatmul.f32.gmra.mxu0 %v120
  %v348 = vpop.f32.mrf.mxu0
  %v349 = vadd.f32 %v188, %v348
  %350 = vmatmul.f32.gmra.mxu0 %v122
  %v351 = vpop.f32.mrf.mxu0
  %v352 = vadd.f32 %v188, %v351
  %353 = vmatmul.f32.gmra.mxu0 %v124
  %v354 = vpop.f32.mrf.mxu0
  %v355 = vadd.f32 %v188, %v354
  %356 = vmatmul.f32.gmra.mxu0 %v126
  %v357 = vpop.f32.mrf.mxu0
  %v358 = vadd.f32 %v188, %v357
  %359 = vmatmul.f32.gmra.mxu0 %v128
  %v360 = vpop.f32.mrf.mxu0
  %v361 = vadd.f32 %v188, %v360
  %362 = vmatmul.f32.gmra.mxu0 %v130
  %v363 = vpop.f32.mrf.mxu0
  %v364 = vadd.f32 %v188, %v363
  %365 = vmatmul.f32.gmra.mxu0 %v132
  %v366 = vpop.f32.mrf.mxu0
  %v367 = vadd.f32 %v188, %v366
  %368 = vmatmul.f32.gmra.mxu0 %v134
  %v369 = vpop.f32.mrf.mxu0
  %v370 = vadd.f32 %v188, %v369
  %371 = vmatmul.f32.gmra.mxu0 %v136
  %v372 = vpop.f32.mrf.mxu0
  %v373 = vadd.f32 %v188, %v372
  %374 = vmatmul.f32.gmra.mxu0 %v138
  %v375 = vpop.f32.mrf.mxu0
  %v376 = vadd.f32 %v188, %v375
  %377 = vmatmul.f32.gmra.mxu0 %v140
  %v378 = vpop.f32.mrf.mxu0
  %v379 = vadd.f32 %v188, %v378
  %380 = vmatmul.f32.gmra.mxu0 %v142
  %v381 = vpop.f32.mrf.mxu0
  %v382 = vadd.f32 %v188, %v381
  %383 = vmatmul.f32.gmra.mxu0 %v144
  %v384 = vpop.f32.mrf.mxu0
  %v385 = vadd.f32 %v188, %v384
  %386 = vmatmul.f32.gmra.mxu0 %v146
  %v387 = vpop.f32.mrf.mxu0
  %v388 = vadd.f32 %v188, %v387
  %389 = vmatmul.f32.gmra.mxu0 %v148
  %v390 = vpop.f32.mrf.mxu0
  %v391 = vadd.f32 %v188, %v390
  %392 = vmatmul.f32.gmra.mxu0 %v150
  %v393 = vpop.f32.mrf.mxu0
  %v394 = vadd.f32 %v188, %v393
  %395 = vmatmul.f32.gmra.mxu0 %v152
  %v396 = vpop.f32.mrf.mxu0
  %v397 = vadd.f32 %v188, %v396
  %398 = vdwg.mxu0
  %399 = vmatpush.msra.mxu0 %v185
  %400 = vmatpush.msra.mxu0 %v184
  %401 = vmatpush.msra.mxu0 %v183
  %402 = vmatpush.msra.mxu0 %v182
  %403 = vmatpush.msra.mxu0 %v181
  %404 = vmatpush.msra.mxu0 %v180
  %405 = vmatpush.msra.mxu0 %v179
  %406 = vmatpush.msra.mxu0 %v178
  %407 = vmatpush.msra.mxu0 %v177
  %408 = vmatpush.msra.mxu0 %v176
  %409 = vmatpush.msra.mxu0 %v175
  %410 = vmatpush.msra.mxu0 %v174
  %411 = vmatpush.msra.mxu0 %v173
  %412 = vmatpush.msra.mxu0 %v172
  %413 = vmatpush.msra.mxu0 %v171
  %414 = vmatpush.msra.mxu0 %v170
  %415 = vmatmul.f32.gmra.mxu0 %v27
  %v416 = vpop.f32.mrf.mxu0
  %v417 = vadd.f32 %v208, %v416
  %418 = vmatmul.f32.gmra.mxu0 %v29
  %v419 = vpop.f32.mrf.mxu0
  %v420 = vadd.f32 %v211, %v419
  %421 = vmatmul.f32.gmra.mxu0 %v31
  %v422 = vpop.f32.mrf.mxu0
  %v423 = vadd.f32 %v214, %v422
  %424 = vmatmul.f32.gmra.mxu0 %v33
  %v425 = vpop.f32.mrf.mxu0
  %v426 = vadd.f32 %v217, %v425
  %427 = vmatmul.f32.gmra.mxu0 %v35
  %v428 = vpop.f32.mrf.mxu0
  %v429 = vadd.f32 %v220, %v428
  %430 = vmatmul.f32.gmra.mxu0 %v37
  %v431 = vpop.f32.mrf.mxu0
  %v432 = vadd.f32 %v223, %v431
  %433 = vmatmul.f32.gmra.mxu0 %v39
  %v434 = vpop.f32.mrf.mxu0
  %v435 = vadd.f32 %v226, %v434
  %436 = vmatmul.f32.gmra.mxu0 %v41
  %v437 = vpop.f32.mrf.mxu0
  %v438 = vadd.f32 %v229, %v437
  %439 = vmatmul.f32.gmra.mxu0 %v43
  %v440 = vpop.f32.mrf.mxu0
  %v441 = vadd.f32 %v232, %v440
  %442 = vmatmul.f32.gmra.mxu0 %v45
  %v443 = vpop.f32.mrf.mxu0
  %v444 = vadd.f32 %v235, %v443
  %445 = vmatmul.f32.gmra.mxu0 %v47
  %v446 = vpop.f32.mrf.mxu0
  %v447 = vadd.f32 %v238, %v446
  %448 = vmatmul.f32.gmra.mxu0 %v49
  %v449 = vpop.f32.mrf.mxu0
  %v450 = vadd.f32 %v241, %v449
  %451 = vmatmul.f32.gmra.mxu0 %v51
  %v452 = vpop.f32.mrf.mxu0
  %v453 = vadd.f32 %v244, %v452
  %454 = vmatmul.f32.gmra.mxu0 %v53
  %v455 = vpop.f32.mrf.mxu0
  %v456 = vadd.f32 %v247, %v455
  %457 = vmatmul.f32.gmra.mxu0 %v55
  %v458 = vpop.f32.mrf.mxu0
  %v459 = vadd.f32 %v250, %v458
  %460 = vmatmul.f32.gmra.mxu0 %v57
  %v461 = vpop.f32.mrf.mxu0
  %v462 = vadd.f32 %v253, %v461
  %463 = vmatmul.f32.gmra.mxu0 %v59
  %v464 = vpop.f32.mrf.mxu0
  %v465 = vadd.f32 %v256, %v464
  %466 = vmatmul.f32.gmra.mxu0 %v61
  %v467 = vpop.f32.mrf.mxu0
  %v468 = vadd.f32 %v259, %v467
  %469 = vmatmul.f32.gmra.mxu0 %v63
  %v470 = vpop.f32.mrf.mxu0
  %v471 = vadd.f32 %v262, %v470
  %472 = vmatmul.f32.gmra.mxu0 %v65
  %v473 = vpop.f32.mrf.mxu0
  %v474 = vadd.f32 %v265, %v473
  %475 = vmatmul.f32.gmra.mxu0 %v67
  %v476 = vpop.f32.mrf.mxu0
  %v477 = vadd.f32 %v268, %v476
  %478 = vmatmul.f32.gmra.mxu0 %v69
  %v479 = vpop.f32.mrf.mxu0
  %v480 = vadd.f32 %v271, %v479
  %481 = vmatmul.f32.gmra.mxu0 %v71
  %v482 = vpop.f32.mrf.mxu0
  %v483 = vadd.f32 %v274, %v482
  %484 = vmatmul.f32.gmra.mxu0 %v73
  %v485 = vpop.f32.mrf.mxu0
  %v486 = vadd.f32 %v277, %v485
  %487 = vmatmul.f32.gmra.mxu0 %v75
  %v488 = vpop.f32.mrf.mxu0
  %v489 = vadd.f32 %v280, %v488
  %490 = vmatmul.f32.gmra.mxu0 %v77
  %v491 = vpop.f32.mrf.mxu0
  %v492 = vadd.f32 %v283, %v491
  %493 = vmatmul.f32.gmra.mxu0 %v79
  %v494 = vpop.f32.mrf.mxu0
  %v495 = vadd.f32 %v286, %v494
  %496 = vmatmul.f32.gmra.mxu0 %v81
  %v497 = vpop.f32.mrf.mxu0
  %v498 = vadd.f32 %v289, %v497
  %499 = vmatmul.f32.gmra.mxu0 %v83
  %v500 = vpop.f32.mrf.mxu0
  %v501 = vadd.f32 %v292, %v500
  %502 = vmatmul.f32.gmra.mxu0 %v85
  %v503 = vpop.f32.mrf.mxu0
  %v504 = vadd.f32 %v295, %v503
  %505 = vmatmul.f32.gmra.mxu0 %v87
  %v506 = vpop.f32.mrf.mxu0
  %v507 = vadd.f32 %v298, %v506
  %508 = vmatmul.f32.gmra.mxu0 %v89
  %v509 = vpop.f32.mrf.mxu0
  %v510 = vadd.f32 %v301, %v509
  %511 = vmatmul.f32.gmra.mxu0 %v91
  %v512 = vpop.f32.mrf.mxu0
  %v513 = vadd.f32 %v304, %v512
  %514 = vmatmul.f32.gmra.mxu0 %v93
  %v515 = vpop.f32.mrf.mxu0
  %v516 = vadd.f32 %v307, %v515
  %517 = vmatmul.f32.gmra.mxu0 %v95
  %v518 = vpop.f32.mrf.mxu0
  %v519 = vadd.f32 %v310, %v518
  %520 = vmatmul.f32.gmra.mxu0 %v97
  %v521 = vpop.f32.mrf.mxu0
  %v522 = vadd.f32 %v313, %v521
  %523 = vmatmul.f32.gmra.mxu0 %v99
  %v524 = vpop.f32.mrf.mxu0
  %v525 = vadd.f32 %v316, %v524
  %526 = vmatmul.f32.gmra.mxu0 %v101
  %v527 = vpop.f32.mrf.mxu0
  %v528 = vadd.f32 %v319, %v527
  %529 = vmatmul.f32.gmra.mxu0 %v103
  %v530 = vpop.f32.mrf.mxu0
  %v531 = vadd.f32 %v322, %v530
  %532 = vmatmul.f32.gmra.mxu0 %v105
  %v533 = vpop.f32.mrf.mxu0
  %v534 = vadd.f32 %v325, %v533
  %535 = vmatmul.f32.gmra.mxu0 %v107
  %v536 = vpop.f32.mrf.mxu0
  %v537 = vadd.f32 %v328, %v536
  %538 = vmatmul.f32.gmra.mxu0 %v109
  %v539 = vpop.f32.mrf.mxu0
  %v540 = vadd.f32 %v331, %v539
  %541 = vmatmul.f32.gmra.mxu0 %v111
  %v542 = vpop.f32.mrf.mxu0
  %v543 = vadd.f32 %v334, %v542
  %544 = vmatmul.f32.gmra.mxu0 %v113
  %v545 = vpop.f32.mrf.mxu0
  %v546 = vadd.f32 %v337, %v545
  %547 = vmatmul.f32.gmra.mxu0 %v115
  %v548 = vpop.f32.mrf.mxu0
  %v549 = vadd.f32 %v340, %v548
  %550 = vmatmul.f32.gmra.mxu0 %v117
  %v551 = vpop.f32.mrf.mxu0
  %v552 = vadd.f32 %v343, %v551
  %553 = vmatmul.f32.gmra.mxu0 %v119
  %v554 = vpop.f32.mrf.mxu0
  %v555 = vadd.f32 %v346, %v554
  %556 = vmatmul.f32.gmra.mxu0 %v121
  %v557 = vpop.f32.mrf.mxu0
  %v558 = vadd.f32 %v349, %v557
  %559 = vmatmul.f32.gmra.mxu0 %v123
  %v560 = vpop.f32.mrf.mxu0
  %v561 = vadd.f32 %v352, %v560
  %562 = vmatmul.f32.gmra.mxu0 %v125
  %v563 = vpop.f32.mrf.mxu0
  %v564 = vadd.f32 %v355, %v563
  %565 = vmatmul.f32.gmra.mxu0 %v127
  %v566 = vpop.f32.mrf.mxu0
  %v567 = vadd.f32 %v358, %v566
  %568 = vmatmul.f32.gmra.mxu0 %v129
  %v569 = vpop.f32.mrf.mxu0
  %v570 = vadd.f32 %v361, %v569
  %571 = vmatmul.f32.gmra.mxu0 %v131
  %v572 = vpop.f32.mrf.mxu0
  %v573 = vadd.f32 %v364, %v572
  %574 = vmatmul.f32.gmra.mxu0 %v133
  %v575 = vpop.f32.mrf.mxu0
  %v576 = vadd.f32 %v367, %v575
  %577 = vmatmul.f32.gmra.mxu0 %v135
  %v578 = vpop.f32.mrf.mxu0
  %v579 = vadd.f32 %v370, %v578
  %580 = vmatmul.f32.gmra.mxu0 %v137
  %v581 = vpop.f32.mrf.mxu0
  %v582 = vadd.f32 %v373, %v581
  %583 = vmatmul.f32.gmra.mxu0 %v139
  %v584 = vpop.f32.mrf.mxu0
  %v585 = vadd.f32 %v376, %v584
  %586 = vmatmul.f32.gmra.mxu0 %v141
  %v587 = vpop.f32.mrf.mxu0
  %v588 = vadd.f32 %v379, %v587
  %589 = vmatmul.f32.gmra.mxu0 %v143
  %v590 = vpop.f32.mrf.mxu0
  %v591 = vadd.f32 %v382, %v590
  %592 = vmatmul.f32.gmra.mxu0 %v145
  %v593 = vpop.f32.mrf.mxu0
  %v594 = vadd.f32 %v385, %v593
  %595 = vmatmul.f32.gmra.mxu0 %v147
  %v596 = vpop.f32.mrf.mxu0
  %v597 = vadd.f32 %v388, %v596
  %598 = vmatmul.f32.gmra.mxu0 %v149
  %v599 = vpop.f32.mrf.mxu0
  %v600 = vadd.f32 %v391, %v599
  %601 = vmatmul.f32.gmra.mxu0 %v151
  %v602 = vpop.f32.mrf.mxu0
  %v603 = vadd.f32 %v394, %v602
  %604 = vmatmul.f32.gmra.mxu0 %v153
  %v605 = vpop.f32.mrf.mxu0
  %v606 = vadd.f32 %v397, %v605
  %607 = vdwg.mxu0
  %v608 = vmax.f32 %v417, 0.0
  %v609 = vmax.f32 %v420, 0.0
  %v610 = vmax.f32 %v423, 0.0
  %v611 = vmax.f32 %v426, 0.0
  %v612 = vmax.f32 %v429, 0.0
  %v613 = vmax.f32 %v432, 0.0
  %v614 = vmax.f32 %v435, 0.0
  %v615 = vmax.f32 %v438, 0.0
  %v616 = vmax.f32 %v441, 0.0
  %v617 = vmax.f32 %v444, 0.0
  %v618 = vmax.f32 %v447, 0.0
  %v619 = vmax.f32 %v450, 0.0
  %v620 = vmax.f32 %v453, 0.0
  %v621 = vmax.f32 %v456, 0.0
  %v622 = vmax.f32 %v459, 0.0
  %v623 = vmax.f32 %v462, 0.0
  %v624 = vmax.f32 %v465, 0.0
  %v625 = vmax.f32 %v468, 0.0
  %v626 = vmax.f32 %v471, 0.0
  %v627 = vmax.f32 %v474, 0.0
  %v628 = vmax.f32 %v477, 0.0
  %v629 = vmax.f32 %v480, 0.0
  %v630 = vmax.f32 %v483, 0.0
  %v631 = vmax.f32 %v486, 0.0
  %v632 = vmax.f32 %v489, 0.0
  %v633 = vmax.f32 %v492, 0.0
  %v634 = vmax.f32 %v495, 0.0
  %v635 = vmax.f32 %v498, 0.0
  %v636 = vmax.f32 %v501, 0.0
  %v637 = vmax.f32 %v504, 0.0
  %v638 = vmax.f32 %v507, 0.0
  %v639 = vmax.f32 %v510, 0.0
  %v640 = vmax.f32 %v513, 0.0
  %v641 = vmax.f32 %v516, 0.0
  %v642 = vmax.f32 %v519, 0.0
  %v643 = vmax.f32 %v522, 0.0
  %v644 = vmax.f32 %v525, 0.0
  %v645 = vmax.f32 %v528, 0.0
  %v646 = vmax.f32 %v531, 0.0
  %v647 = vmax.f32 %v534, 0.0
  %v648 = vmax.f32 %v537, 0.0
  %v649 = vmax.f32 %v540, 0.0
  %v650 = vmax.f32 %v543, 0.0
  %v651 = vmax.f32 %v546, 0.0
  %v652 = vmax.f32 %v549, 0.0
  %v653 = vmax.f32 %v552, 0.0
  %v654 = vmax.f32 %v555, 0.0
  %v655 = vmax.f32 %v558, 0.0
  %v656 = vmax.f32 %v561, 0.0
  %v657 = vmax.f32 %v564, 0.0
  %v658 = vmax.f32 %v567, 0.0
  %v659 = vmax.f32 %v570, 0.0
  %v660 = vmax.f32 %v573, 0.0
  %v661 = vmax.f32 %v576, 0.0
  %v662 = vmax.f32 %v579, 0.0
  %v663 = vmax.f32 %v582, 0.0
  %v664 = vmax.f32 %v585, 0.0
  %v665 = vmax.f32 %v588, 0.0
  %v666 = vmax.f32 %v591, 0.0
  %v667 = vmax.f32 %v594, 0.0
  %v668 = vmax.f32 %v597, 0.0
  %v669 = vmax.f32 %v600, 0.0
  %v670 = vmax.f32 %v603, 0.0
  %v671 = vmax.f32 %v606, 0.0
  %v672 = vld [vmem:[%s3] sm:$0xff]
  %v673 = vld [vmem:[%s3 + $0x8] sm:$0xff]
  %v674 = vld [vmem:[%s3 + $0x10] sm:$0xff]
  %v675 = vld [vmem:[%s3 + $0x18] sm:$0xff]
  %v676 = vld [vmem:[%s3 + $0x20] sm:$0xff]
  %v677 = vld [vmem:[%s3 + $0x28] sm:$0xff]
  %v678 = vld [vmem:[%s3 + $0x30] sm:$0xff]
  %v679 = vld [vmem:[%s3 + $0x38] sm:$0xff]
  %v680 = vld [vmem:[%s3 + $0x40] sm:$0xff]
  %v681 = vld [vmem:[%s3 + $0x48] sm:$0xff]
  %v682 = vld [vmem:[%s3 + $0x50] sm:$0xff]
  %v683 = vld [vmem:[%s3 + $0x58] sm:$0xff]
  %v684 = vld [vmem:[%s3 + $0x60] sm:$0xff]
  %v685 = vld [vmem:[%s3 + $0x68] sm:$0xff]
  %v686 = vld [vmem:[%s3 + $0x70] sm:$0xff]
  %v687 = vld [vmem:[%s3 + $0x78] sm:$0xff]
  %v688 = vld [vmem:[%s4] sm:$0x1]
  %v690 = vperm.slane %v688, 0
  %692 = vmatpush.msra.mxu0 %v687
  %693 = vmatpush.msra.mxu0 %v686
  %694 = vmatpush.msra.mxu0 %v685
  %695 = vmatpush.msra.mxu0 %v684
  %696 = vmatpush.msra.mxu0 %v683
  %697 = vmatpush.msra.mxu0 %v682
  %698 = vmatpush.msra.mxu0 %v681
  %699 = vmatpush.msra.mxu0 %v680
  %700 = vmatpush.msra.mxu0 %v679
  %701 = vmatpush.msra.mxu0 %v678
  %702 = vmatpush.msra.mxu0 %v677
  %703 = vmatpush.msra.mxu0 %v676
  %704 = vmatpush.msra.mxu0 %v675
  %705 = vmatpush.msra.mxu0 %v674
  %706 = vmatpush.msra.mxu0 %v673
  %707 = vmatpush.msra.mxu0 %v672
  %708 = vmatmul.f32.gmra.mxu0 %v608
  %v709 = vpop.f32.mrf.mxu0
  %v710 = vadd.f32 %v690, %v709
  %711 = vmatmul.f32.gmra.mxu0 %v609
  %v712 = vpop.f32.mrf.mxu0
  %v713 = vadd.f32 %v690, %v712
  %714 = vmatmul.f32.gmra.mxu0 %v610
  %v715 = vpop.f32.mrf.mxu0
  %v716 = vadd.f32 %v690, %v715
  %717 = vmatmul.f32.gmra.mxu0 %v611
  %v718 = vpop.f32.mrf.mxu0
  %v719 = vadd.f32 %v690, %v718
  %720 = vmatmul.f32.gmra.mxu0 %v612
  %v721 = vpop.f32.mrf.mxu0
  %v722 = vadd.f32 %v690, %v721
  %723 = vmatmul.f32.gmra.mxu0 %v613
  %v724 = vpop.f32.mrf.mxu0
  %v725 = vadd.f32 %v690, %v724
  %726 = vmatmul.f32.gmra.mxu0 %v614
  %v727 = vpop.f32.mrf.mxu0
  %v728 = vadd.f32 %v690, %v727
  %729 = vmatmul.f32.gmra.mxu0 %v615
  %v730 = vpop.f32.mrf.mxu0
  %v731 = vadd.f32 %v690, %v730
  %732 = vmatmul.f32.gmra.mxu0 %v616
  %v733 = vpop.f32.mrf.mxu0
  %v734 = vadd.f32 %v690, %v733
  %735 = vmatmul.f32.gmra.mxu0 %v617
  %v736 = vpop.f32.mrf.mxu0
  %v737 = vadd.f32 %v690, %v736
  %738 = vmatmul.f32.gmra.mxu0 %v618
  %v739 = vpop.f32.mrf.mxu0
  %v740 = vadd.f32 %v690, %v739
  %741 = vmatmul.f32.gmra.mxu0 %v619
  %v742 = vpop.f32.mrf.mxu0
  %v743 = vadd.f32 %v690, %v742
  %744 = vmatmul.f32.gmra.mxu0 %v620
  %v745 = vpop.f32.mrf.mxu0
  %v746 = vadd.f32 %v690, %v745
  %747 = vmatmul.f32.gmra.mxu0 %v621
  %v748 = vpop.f32.mrf.mxu0
  %v749 = vadd.f32 %v690, %v748
  %750 = vmatmul.f32.gmra.mxu0 %v622
  %v751 = vpop.f32.mrf.mxu0
  %v752 = vadd.f32 %v690, %v751
  %753 = vmatmul.f32.gmra.mxu0 %v623
  %v754 = vpop.f32.mrf.mxu0
  %v755 = vadd.f32 %v690, %v754
  %756 = vmatmul.f32.gmra.mxu0 %v624
  %v757 = vpop.f32.mrf.mxu0
  %v758 = vadd.f32 %v690, %v757
  %759 = vmatmul.f32.gmra.mxu0 %v625
  %v760 = vpop.f32.mrf.mxu0
  %v761 = vadd.f32 %v690, %v760
  %762 = vmatmul.f32.gmra.mxu0 %v626
  %v763 = vpop.f32.mrf.mxu0
  %v764 = vadd.f32 %v690, %v763
  %765 = vmatmul.f32.gmra.mxu0 %v627
  %v766 = vpop.f32.mrf.mxu0
  %v767 = vadd.f32 %v690, %v766
  %768 = vmatmul.f32.gmra.mxu0 %v628
  %v769 = vpop.f32.mrf.mxu0
  %v770 = vadd.f32 %v690, %v769
  %771 = vmatmul.f32.gmra.mxu0 %v629
  %v772 = vpop.f32.mrf.mxu0
  %v773 = vadd.f32 %v690, %v772
  %774 = vmatmul.f32.gmra.mxu0 %v630
  %v775 = vpop.f32.mrf.mxu0
  %v776 = vadd.f32 %v690, %v775
  %777 = vmatmul.f32.gmra.mxu0 %v631
  %v778 = vpop.f32.mrf.mxu0
  %v779 = vadd.f32 %v690, %v778
  %780 = vmatmul.f32.gmra.mxu0 %v632
  %v781 = vpop.f32.mrf.mxu0
  %v782 = vadd.f32 %v690, %v781
  %783 = vmatmul.f32.gmra.mxu0 %v633
  %v784 = vpop.f32.mrf.mxu0
  %v785 = vadd.f32 %v690, %v784
  %786 = vmatmul.f32.gmra.mxu0 %v634
  %v787 = vpop.f32.mrf.mxu0
  %v788 = vadd.f32 %v690, %v787
  %789 = vmatmul.f32.gmra.mxu0 %v635
  %v790 = vpop.f32.mrf.mxu0
  %v791 = vadd.f32 %v690, %v790
  %792 = vmatmul.f32.gmra.mxu0 %v636
  %v793 = vpop.f32.mrf.mxu0
  %v794 = vadd.f32 %v690, %v793
  %795 = vmatmul.f32.gmra.mxu0 %v637
  %v796 = vpop.f32.mrf.mxu0
  %v797 = vadd.f32 %v690, %v796
  %798 = vmatmul.f32.gmra.mxu0 %v638
  %v799 = vpop.f32.mrf.mxu0
  %v800 = vadd.f32 %v690, %v799
  %801 = vmatmul.f32.gmra.mxu0 %v639
  %v802 = vpop.f32.mrf.mxu0
  %v803 = vadd.f32 %v690, %v802
  %804 = vmatmul.f32.gmra.mxu0 %v640
  %v805 = vpop.f32.mrf.mxu0
  %v806 = vadd.f32 %v690, %v805
  %807 = vmatmul.f32.gmra.mxu0 %v641
  %v808 = vpop.f32.mrf.mxu0
  %v809 = vadd.f32 %v690, %v808
  %810 = vmatmul.f32.gmra.mxu0 %v642
  %v811 = vpop.f32.mrf.mxu0
  %v812 = vadd.f32 %v690, %v811
  %813 = vmatmul.f32.gmra.mxu0 %v643
  %v814 = vpop.f32.mrf.mxu0
  %v815 = vadd.f32 %v690, %v814
  %816 = vmatmul.f32.gmra.mxu0 %v644
  %v817 = vpop.f32.mrf.mxu0
  %v818 = vadd.f32 %v690, %v817
  %819 = vmatmul.f32.gmra.mxu0 %v645
  %v820 = vpop.f32.mrf.mxu0
  %v821 = vadd.f32 %v690, %v820
  %822 = vmatmul.f32.gmra.mxu0 %v646
  %v823 = vpop.f32.mrf.mxu0
  %v824 = vadd.f32 %v690, %v823
  %825 = vmatmul.f32.gmra.mxu0 %v647
  %v826 = vpop.f32.mrf.mxu0
  %v827 = vadd.f32 %v690, %v826
  %828 = vmatmul.f32.gmra.mxu0 %v648
  %v829 = vpop.f32.mrf.mxu0
  %v830 = vadd.f32 %v690, %v829
  %831 = vmatmul.f32.gmra.mxu0 %v649
  %v832 = vpop.f32.mrf.mxu0
  %v833 = vadd.f32 %v690, %v832
  %834 = vmatmul.f32.gmra.mxu0 %v650
  %v835 = vpop.f32.mrf.mxu0
  %v836 = vadd.f32 %v690, %v835
  %837 = vmatmul.f32.gmra.mxu0 %v651
  %v838 = vpop.f32.mrf.mxu0
  %v839 = vadd.f32 %v690, %v838
  %840 = vmatmul.f32.gmra.mxu0 %v652
  %v841 = vpop.f32.mrf.mxu0
  %v842 = vadd.f32 %v690, %v841
  %843 = vmatmul.f32.gmra.mxu0 %v653
  %v844 = vpop.f32.mrf.mxu0
  %v845 = vadd.f32 %v690, %v844
  %846 = vmatmul.f32.gmra.mxu0 %v654
  %v847 = vpop.f32.mrf.mxu0
  %v848 = vadd.f32 %v690, %v847
  %849 = vmatmul.f32.gmra.mxu0 %v655
  %v850 = vpop.f32.mrf.mxu0
  %v851 = vadd.f32 %v690, %v850
  %852 = vmatmul.f32.gmra.mxu0 %v656
  %v853 = vpop.f32.mrf.mxu0
  %v854 = vadd.f32 %v690, %v853
  %855 = vmatmul.f32.gmra.mxu0 %v657
  %v856 = vpop.f32.mrf.mxu0
  %v857 = vadd.f32 %v690, %v856
  %858 = vmatmul.f32.gmra.mxu0 %v658
  %v859 = vpop.f32.mrf.mxu0
  %v860 = vadd.f32 %v690, %v859
  %861 = vmatmul.f32.gmra.mxu0 %v659
  %v862 = vpop.f32.mrf.mxu0
  %v863 = vadd.f32 %v690, %v862
  %864 = vmatmul.f32.gmra.mxu0 %v660
  %v865 = vpop.f32.mrf.mxu0
  %v866 = vadd.f32 %v690, %v865
  %867 = vmatmul.f32.gmra.mxu0 %v661
  %v868 = vpop.f32.mrf.mxu0
  %v869 = vadd.f32 %v690, %v868
  %870 = vmatmul.f32.gmra.mxu0 %v662
  %v871 = vpop.f32.mrf.mxu0
  %v872 = vadd.f32 %v690, %v871
  %873 = vmatmul.f32.gmra.mxu0 %v663
  %v874 = vpop.f32.mrf.mxu0
  %v875 = vadd.f32 %v690, %v874
  %876 = vmatmul.f32.gmra.mxu0 %v664
  %v877 = vpop.f32.mrf.mxu0
  %v878 = vadd.f32 %v690, %v877
  %879 = vmatmul.f32.gmra.mxu0 %v665
  %v880 = vpop.f32.mrf.mxu0
  %v881 = vadd.f32 %v690, %v880
  %882 = vmatmul.f32.gmra.mxu0 %v666
  %v883 = vpop.f32.mrf.mxu0
  %v884 = vadd.f32 %v690, %v883
  %885 = vmatmul.f32.gmra.mxu0 %v667
  %v886 = vpop.f32.mrf.mxu0
  %v887 = vadd.f32 %v690, %v886
  %888 = vmatmul.f32.gmra.mxu0 %v668
  %v889 = vpop.f32.mrf.mxu0
  %v890 = vadd.f32 %v690, %v889
  %891 = vmatmul.f32.gmra.mxu0 %v669
  %v892 = vpop.f32.mrf.mxu0
  %v893 = vadd.f32 %v690, %v892
  %894 = vmatmul.f32.gmra.mxu0 %v670
  %v895 = vpop.f32.mrf.mxu0
  %v896 = vadd.f32 %v690, %v895
  %897 = vmatmul.f32.gmra.mxu0 %v671
  %v898 = vpop.f32.mrf.mxu0
  %v899 = vadd.f32 %v690, %v898
  %900 = vdwg.mxu0
  %v901 = vmax.f32 %v710, 0.0
  %v902 = vmax.f32 %v713, 0.0
  %v903 = vmax.f32 %v716, 0.0
  %v904 = vmax.f32 %v719, 0.0
  %v905 = vmax.f32 %v722, 0.0
  %v906 = vmax.f32 %v725, 0.0
  %v907 = vmax.f32 %v728, 0.0
  %v908 = vmax.f32 %v731, 0.0
  %v909 = vmax.f32 %v734, 0.0
  %v910 = vmax.f32 %v737, 0.0
  %v911 = vmax.f32 %v740, 0.0
  %v912 = vmax.f32 %v743, 0.0
  %v913 = vmax.f32 %v746, 0.0
  %v914 = vmax.f32 %v749, 0.0
  %v915 = vmax.f32 %v752, 0.0
  %v916 = vmax.f32 %v755, 0.0
  %v917 = vmax.f32 %v758, 0.0
  %v918 = vmax.f32 %v761, 0.0
  %v919 = vmax.f32 %v764, 0.0
  %v920 = vmax.f32 %v767, 0.0
  %v921 = vmax.f32 %v770, 0.0
  %v922 = vmax.f32 %v773, 0.0
  %v923 = vmax.f32 %v776, 0.0
  %v924 = vmax.f32 %v779, 0.0
  %v925 = vmax.f32 %v782, 0.0
  %v926 = vmax.f32 %v785, 0.0
  %v927 = vmax.f32 %v788, 0.0
  %v928 = vmax.f32 %v791, 0.0
  %v929 = vmax.f32 %v794, 0.0
  %v930 = vmax.f32 %v797, 0.0
  %v931 = vmax.f32 %v800, 0.0
  %v932 = vmax.f32 %v803, 0.0
  %v933 = vmax.f32 %v806, 0.0
  %v934 = vmax.f32 %v809, 0.0
  %v935 = vmax.f32 %v812, 0.0
  %v936 = vmax.f32 %v815, 0.0
  %v937 = vmax.f32 %v818, 0.0
  %v938 = vmax.f32 %v821, 0.0
  %v939 = vmax.f32 %v824, 0.0
  %v940 = vmax.f32 %v827, 0.0
  %v941 = vmax.f32 %v830, 0.0
  %v942 = vmax.f32 %v833, 0.0
  %v943 = vmax.f32 %v836, 0.0
  %v944 = vmax.f32 %v839, 0.0
  %v945 = vmax.f32 %v842, 0.0
  %v946 = vmax.f32 %v845, 0.0
  %v947 = vmax.f32 %v848, 0.0
  %v948 = vmax.f32 %v851, 0.0
  %v949 = vmax.f32 %v854, 0.0
  %v950 = vmax.f32 %v857, 0.0
  %v951 = vmax.f32 %v860, 0.0
  %v952 = vmax.f32 %v863, 0.0
  %v953 = vmax.f32 %v866, 0.0
  %v954 = vmax.f32 %v869, 0.0
  %v955 = vmax.f32 %v872, 0.0
  %v956 = vmax.f32 %v875, 0.0
  %v957 = vmax.f32 %v878, 0.0
  %v958 = vmax.f32 %v881, 0.0
  %v959 = vmax.f32 %v884, 0.0
  %v960 = vmax.f32 %v887, 0.0
  %v961 = vmax.f32 %v890, 0.0
  %v962 = vmax.f32 %v893, 0.0
  %v963 = vmax.f32 %v896, 0.0
  %v964 = vmax.f32 %v899, 0.0
  %v965 = vld [vmem:[%s5] sm:$0xff]
  %v966 = vld [vmem:[%s5 + $0x8] sm:$0xff]
  %v967 = vld [vmem:[%s5 + $0x10] sm:$0xff]
  %v968 = vld [vmem:[%s5 + $0x18] sm:$0xff]
  %v969 = vld [vmem:[%s5 + $0x20] sm:$0xff]
  %v970 = vld [vmem:[%s5 + $0x28] sm:$0xff]
  %v971 = vld [vmem:[%s5 + $0x30] sm:$0xff]
  %v972 = vld [vmem:[%s5 + $0x38] sm:$0xff]
  %s973 = scalar_lea.vmem %s5, 64
  %v974 = vld [vmem:[%s973] sm:$0xff]
  %v975 = vld [vmem:[%s973 + $0x8] sm:$0xff]
  %v976 = vld [vmem:[%s973 + $0x10] sm:$0xff]
  %v977 = vld [vmem:[%s973 + $0x18] sm:$0xff]
  %v978 = vld [vmem:[%s973 + $0x20] sm:$0xff]
  %v979 = vld [vmem:[%s973 + $0x28] sm:$0xff]
  %v980 = vld [vmem:[%s973 + $0x30] sm:$0xff]
  %v981 = vld [vmem:[%s973 + $0x38] sm:$0xff]
  %vm982 = vcmask 523264
  %v984 = vsel %vm982, %v909, 0
  %v987 = vsel %vm982, %v910, 0
  %v990 = vsel %vm982, %v911, 0
  %v993 = vsel %vm982, %v912, 0
  %v996 = vsel %vm982, %v913, 0
  %v999 = vsel %vm982, %v914, 0
  %v1002 = vsel %vm982, %v915, 0
  %v1005 = vsel %vm982, %v916, 0
  %v1008 = vsel %vm982, %v941, 0
  %v1011 = vsel %vm982, %v942, 0
  %v1014 = vsel %vm982, %v943, 0
  %v1017 = vsel %vm982, %v944, 0
  %v1020 = vsel %vm982, %v945, 0
  %v1023 = vsel %vm982, %v946, 0
  %v1026 = vsel %vm982, %v947, 0
  %v1029 = vsel %vm982, %v948, 0
  %1031 = vmatpush.msra.mxu0 0.0
  %1032 = vmatpush.msra.mxu0 0.0
  %1033 = vmatpush.msra.mxu0 0.0
  %1034 = vmatpush.msra.mxu0 0.0
  %1035 = vmatpush.msra.mxu0 0.0
  %1036 = vmatpush.msra.mxu0 0.0
  %1037 = vmatpush.msra.mxu0 0.0
  %1038 = vmatpush.msra.mxu0 0.0
  %1039 = vmatpush.msra.mxu0 %v981
  %1040 = vmatpush.msra.mxu0 %v980
  %1041 = vmatpush.msra.mxu0 %v979
  %1042 = vmatpush.msra.mxu0 %v978
  %1043 = vmatpush.msra.mxu0 %v977
  %1044 = vmatpush.msra.mxu0 %v976
  %1045 = vmatpush.msra.mxu0 %v975
  %1046 = vmatpush.msra.mxu0 %v974
  %1047 = vmatmul.f32.gmra.mxu0 %v984
  %v1048 = vpop.f32.mrf.mxu0
  %v1049 = vadd.f32 0.0, %v1048
  %1050 = vmatmul.f32.gmra.mxu0 %v987
  %v1051 = vpop.f32.mrf.mxu0
  %v1052 = vadd.f32 0.0, %v1051
  %1053 = vmatmul.f32.gmra.mxu0 %v990
  %v1054 = vpop.f32.mrf.mxu0
  %v1055 = vadd.f32 0.0, %v1054
  %1056 = vmatmul.f32.gmra.mxu0 %v993
  %v1057 = vpop.f32.mrf.mxu0
  %v1058 = vadd.f32 0.0, %v1057
  %1059 = vmatmul.f32.gmra.mxu0 %v996
  %v1060 = vpop.f32.mrf.mxu0
  %v1061 = vadd.f32 0.0, %v1060
  %1062 = vmatmul.f32.gmra.mxu0 %v999
  %v1063 = vpop.f32.mrf.mxu0
  %v1064 = vadd.f32 0.0, %v1063
  %1065 = vmatmul.f32.gmra.mxu0 %v1002
  %v1066 = vpop.f32.mrf.mxu0
  %v1067 = vadd.f32 0.0, %v1066
  %1068 = vmatmul.f32.gmra.mxu0 %v1005
  %v1069 = vpop.f32.mrf.mxu0
  %v1070 = vadd.f32 0.0, %v1069
  %1071 = vmatmul.f32.gmra.mxu0 %v1008
  %v1072 = vpop.f32.mrf.mxu0
  %v1073 = vadd.f32 0.0, %v1072
  %1074 = vmatmul.f32.gmra.mxu0 %v1011
  %v1075 = vpop.f32.mrf.mxu0
  %v1076 = vadd.f32 0.0, %v1075
  %1077 = vmatmul.f32.gmra.mxu0 %v1014
  %v1078 = vpop.f32.mrf.mxu0
  %v1079 = vadd.f32 0.0, %v1078
  %1080 = vmatmul.f32.gmra.mxu0 %v1017
  %v1081 = vpop.f32.mrf.mxu0
  %v1082 = vadd.f32 0.0, %v1081
  %1083 = vmatmul.f32.gmra.mxu0 %v1020
  %v1084 = vpop.f32.mrf.mxu0
  %v1085 = vadd.f32 0.0, %v1084
  %1086 = vmatmul.f32.gmra.mxu0 %v1023
  %v1087 = vpop.f32.mrf.mxu0
  %v1088 = vadd.f32 0.0, %v1087
  %1089 = vmatmul.f32.gmra.mxu0 %v1026
  %v1090 = vpop.f32.mrf.mxu0
  %v1091 = vadd.f32 0.0, %v1090
  %1092 = vmatmul.f32.gmra.mxu0 %v1029
  %v1093 = vpop.f32.mrf.mxu0
  %v1094 = vadd.f32 0.0, %v1093
  %1095 = vdwg.mxu0
  %v1097 = vsel %vm982, %v901, 0
  %v1100 = vsel %vm982, %v902, 0
  %v1103 = vsel %vm982, %v903, 0
  %v1106 = vsel %vm982, %v904, 0
  %v1109 = vsel %vm982, %v905, 0
  %v1112 = vsel %vm982, %v906, 0
  %v1115 = vsel %vm982, %v907, 0
  %v1118 = vsel %vm982, %v908, 0
  %v1121 = vsel %vm982, %v933, 0
  %v1124 = vsel %vm982, %v934, 0
  %v1127 = vsel %vm982, %v935, 0
  %v1130 = vsel %vm982, %v936, 0
  %v1133 = vsel %vm982, %v937, 0
  %v1136 = vsel %vm982, %v938, 0
  %v1139 = vsel %vm982, %v939, 0
  %v1142 = vsel %vm982, %v940, 0
  %1144 = vmatpush.msra.mxu0 0.0
  %1145 = vmatpush.msra.mxu0 0.0
  %1146 = vmatpush.msra.mxu0 0.0
  %1147 = vmatpush.msra.mxu0 0.0
  %1148 = vmatpush.msra.mxu0 0.0
  %1149 = vmatpush.msra.mxu0 0.0
  %1150 = vmatpush.msra.mxu0 0.0
  %1151 = vmatpush.msra.mxu0 0.0
  %1152 = vmatpush.msra.mxu0 %v972
  %1153 = vmatpush.msra.mxu0 %v971
  %1154 = vmatpush.msra.mxu0 %v970
  %1155 = vmatpush.msra.mxu0 %v969
  %1156 = vmatpush.msra.mxu0 %v968
  %1157 = vmatpush.msra.mxu0 %v967
  %1158 = vmatpush.msra.mxu0 %v966
  %1159 = vmatpush.msra.mxu0 %v965
  %1160 = vmatmul.f32.gmra.mxu0 %v1097
  %v1161 = vpop.f32.mrf.mxu0
  %v1162 = vadd.f32 %v1049, %v1161
  %1163 = vmatmul.f32.gmra.mxu0 %v1100
  %v1164 = vpop.f32.mrf.mxu0
  %v1165 = vadd.f32 %v1052, %v1164
  %1166 = vmatmul.f32.gmra.mxu0 %v1103
  %v1167 = vpop.f32.mrf.mxu0
  %v1168 = vadd.f32 %v1055, %v1167
  %1169 = vmatmul.f32.gmra.mxu0 %v1106
  %v1170 = vpop.f32.mrf.mxu0
  %v1171 = vadd.f32 %v1058, %v1170
  %1172 = vmatmul.f32.gmra.mxu0 %v1109
  %v1173 = vpop.f32.mrf.mxu0
  %v1174 = vadd.f32 %v1061, %v1173
  %1175 = vmatmul.f32.gmra.mxu0 %v1112
  %v1176 = vpop.f32.mrf.mxu0
  %v1177 = vadd.f32 %v1064, %v1176
  %1178 = vmatmul.f32.gmra.mxu0 %v1115
  %v1179 = vpop.f32.mrf.mxu0
  %v1180 = vadd.f32 %v1067, %v1179
  %1181 = vmatmul.f32.gmra.mxu0 %v1118
  %v1182 = vpop.f32.mrf.mxu0
  %v1183 = vadd.f32 %v1070, %v1182
  %1184 = vmatmul.f32.gmra.mxu0 %v1121
  %v1185 = vpop.f32.mrf.mxu0
  %v1186 = vadd.f32 %v1073, %v1185
  %1187 = vmatmul.f32.gmra.mxu0 %v1124
  %v1188 = vpop.f32.mrf.mxu0
  %v1189 = vadd.f32 %v1076, %v1188
  %1190 = vmatmul.f32.gmra.mxu0 %v1127
  %v1191 = vpop.f32.mrf.mxu0
  %v1192 = vadd.f32 %v1079, %v1191
  %1193 = vmatmul.f32.gmra.mxu0 %v1130
  %v1194 = vpop.f32.mrf.mxu0
  %v1195 = vadd.f32 %v1082, %v1194
  %1196 = vmatmul.f32.gmra.mxu0 %v1133
  %v1197 = vpop.f32.mrf.mxu0
  %v1198 = vadd.f32 %v1085, %v1197
  %1199 = vmatmul.f32.gmra.mxu0 %v1136
  %v1200 = vpop.f32.mrf.mxu0
  %v1201 = vadd.f32 %v1088, %v1200
  %1202 = vmatmul.f32.gmra.mxu0 %v1139
  %v1203 = vpop.f32.mrf.mxu0
  %v1204 = vadd.f32 %v1091, %v1203
  %1205 = vmatmul.f32.gmra.mxu0 %v1142
  %v1206 = vpop.f32.mrf.mxu0
  %v1207 = vadd.f32 %v1094, %v1206
  %1208 = vdwg.mxu0
  %s1209 = scalar_lea.vmem %s5, 128
  %v1210 = vld [vmem:[%s1209] sm:$0xff]
  %v1211 = vld [vmem:[%s1209 + $0x8] sm:$0xff]
  %v1212 = vld [vmem:[%s1209 + $0x10] sm:$0xff]
  %v1213 = vld [vmem:[%s1209 + $0x18] sm:$0xff]
  %v1214 = vld [vmem:[%s1209 + $0x20] sm:$0xff]
  %v1215 = vld [vmem:[%s1209 + $0x28] sm:$0xff]
  %v1216 = vld [vmem:[%s1209 + $0x30] sm:$0xff]
  %v1217 = vld [vmem:[%s1209 + $0x38] sm:$0xff]
  %v1219 = vsel %vm982, %v917, 0
  %v1222 = vsel %vm982, %v918, 0
  %v1225 = vsel %vm982, %v919, 0
  %v1228 = vsel %vm982, %v920, 0
  %v1231 = vsel %vm982, %v921, 0
  %v1234 = vsel %vm982, %v922, 0
  %v1237 = vsel %vm982, %v923, 0
  %v1240 = vsel %vm982, %v924, 0
  %v1243 = vsel %vm982, %v949, 0
  %v1246 = vsel %vm982, %v950, 0
  %v1249 = vsel %vm982, %v951, 0
  %v1252 = vsel %vm982, %v952, 0
  %v1255 = vsel %vm982, %v953, 0
  %v1258 = vsel %vm982, %v954, 0
  %v1261 = vsel %vm982, %v955, 0
  %v1264 = vsel %vm982, %v956, 0
  %1266 = vmatpush.msra.mxu0 0.0
  %1267 = vmatpush.msra.mxu0 0.0
  %1268 = vmatpush.msra.mxu0 0.0
  %1269 = vmatpush.msra.mxu0 0.0
  %1270 = vmatpush.msra.mxu0 0.0
  %1271 = vmatpush.msra.mxu0 0.0
  %1272 = vmatpush.msra.mxu0 0.0
  %1273 = vmatpush.msra.mxu0 0.0
  %1274 = vmatpush.msra.mxu0 %v1217
  %1275 = vmatpush.msra.mxu0 %v1216
  %1276 = vmatpush.msra.mxu0 %v1215
  %1277 = vmatpush.msra.mxu0 %v1214
  %1278 = vmatpush.msra.mxu0 %v1213
  %1279 = vmatpush.msra.mxu0 %v1212
  %1280 = vmatpush.msra.mxu0 %v1211
  %1281 = vmatpush.msra.mxu0 %v1210
  %1282 = vmatmul.f32.gmra.mxu0 %v1219
  %v1283 = vpop.f32.mrf.mxu0
  %v1284 = vadd.f32 0.0, %v1283
  %1285 = vmatmul.f32.gmra.mxu0 %v1222
  %v1286 = vpop.f32.mrf.mxu0
  %v1287 = vadd.f32 0.0, %v1286
  %1288 = vmatmul.f32.gmra.mxu0 %v1225
  %v1289 = vpop.f32.mrf.mxu0
  %v1290 = vadd.f32 0.0, %v1289
  %1291 = vmatmul.f32.gmra.mxu0 %v1228
  %v1292 = vpop.f32.mrf.mxu0
  %v1293 = vadd.f32 0.0, %v1292
  %1294 = vmatmul.f32.gmra.mxu0 %v1231
  %v1295 = vpop.f32.mrf.mxu0
  %v1296 = vadd.f32 0.0, %v1295
  %1297 = vmatmul.f32.gmra.mxu0 %v1234
  %v1298 = vpop.f32.mrf.mxu0
  %v1299 = vadd.f32 0.0, %v1298
  %1300 = vmatmul.f32.gmra.mxu0 %v1237
  %v1301 = vpop.f32.mrf.mxu0
  %v1302 = vadd.f32 0.0, %v1301
  %1303 = vmatmul.f32.gmra.mxu0 %v1240
  %v1304 = vpop.f32.mrf.mxu0
  %v1305 = vadd.f32 0.0, %v1304
  %1306 = vmatmul.f32.gmra.mxu0 %v1243
  %v1307 = vpop.f32.mrf.mxu0
  %v1308 = vadd.f32 0.0, %v1307
  %1309 = vmatmul.f32.gmra.mxu0 %v1246
  %v1310 = vpop.f32.mrf.mxu0
  %v1311 = vadd.f32 0.0, %v1310
  %1312 = vmatmul.f32.gmra.mxu0 %v1249
  %v1313 = vpop.f32.mrf.mxu0
  %v1314 = vadd.f32 0.0, %v1313
  %1315 = vmatmul.f32.gmra.mxu0 %v1252
  %v1316 = vpop.f32.mrf.mxu0
  %v1317 = vadd.f32 0.0, %v1316
  %1318 = vmatmul.f32.gmra.mxu0 %v1255
  %v1319 = vpop.f32.mrf.mxu0
  %v1320 = vadd.f32 0.0, %v1319
  %1321 = vmatmul.f32.gmra.mxu0 %v1258
  %v1322 = vpop.f32.mrf.mxu0
  %v1323 = vadd.f32 0.0, %v1322
  %1324 = vmatmul.f32.gmra.mxu0 %v1261
  %v1325 = vpop.f32.mrf.mxu0
  %v1326 = vadd.f32 0.0, %v1325
  %1327 = vmatmul.f32.gmra.mxu0 %v1264
  %v1328 = vpop.f32.mrf.mxu0
  %v1329 = vadd.f32 0.0, %v1328
  %1330 = vdwg.mxu0
  %v1331 = vadd.f32 %v1162, %v1284
  %v1332 = vadd.f32 %v1165, %v1287
  %v1333 = vadd.f32 %v1168, %v1290
  %v1334 = vadd.f32 %v1171, %v1293
  %v1335 = vadd.f32 %v1174, %v1296
  %v1336 = vadd.f32 %v1177, %v1299
  %v1337 = vadd.f32 %v1180, %v1302
  %v1338 = vadd.f32 %v1183, %v1305
  %v1339 = vadd.f32 %v1186, %v1308
  %v1340 = vadd.f32 %v1189, %v1311
  %v1341 = vadd.f32 %v1192, %v1314
  %v1342 = vadd.f32 %v1195, %v1317
  %v1343 = vadd.f32 %v1198, %v1320
  %v1344 = vadd.f32 %v1201, %v1323
  %v1345 = vadd.f32 %v1204, %v1326
  %v1346 = vadd.f32 %v1207, %v1329
  %s1347 = scalar_lea.vmem %s5, 192
  %v1348 = vld [vmem:[%s1347] sm:$0xff]
  %v1349 = vld [vmem:[%s1347 + $0x8] sm:$0xff]
  %v1350 = vld [vmem:[%s1347 + $0x10] sm:$0xff]
  %v1351 = vld [vmem:[%s1347 + $0x18] sm:$0xff]
  %v1352 = vld [vmem:[%s1347 + $0x20] sm:$0xff]
  %v1353 = vld [vmem:[%s1347 + $0x28] sm:$0xff]
  %v1354 = vld [vmem:[%s1347 + $0x30] sm:$0xff]
  %v1355 = vld [vmem:[%s1347 + $0x38] sm:$0xff]
  %v1357 = vsel %vm982, %v925, 0
  %v1360 = vsel %vm982, %v926, 0
  %v1363 = vsel %vm982, %v927, 0
  %v1366 = vsel %vm982, %v928, 0
  %v1369 = vsel %vm982, %v929, 0
  %v1372 = vsel %vm982, %v930, 0
  %v1375 = vsel %vm982, %v931, 0
  %v1378 = vsel %vm982, %v932, 0
  %v1381 = vsel %vm982, %v957, 0
  %v1384 = vsel %vm982, %v958, 0
  %v1387 = vsel %vm982, %v959, 0
  %v1390 = vsel %vm982, %v960, 0
  %v1393 = vsel %vm982, %v961, 0
  %v1396 = vsel %vm982, %v962, 0
  %v1399 = vsel %vm982, %v963, 0
  %v1402 = vsel %vm982, %v964, 0
  %1404 = vmatpush.msra.mxu0 0.0
  %1405 = vmatpush.msra.mxu0 0.0
  %1406 = vmatpush.msra.mxu0 0.0
  %1407 = vmatpush.msra.mxu0 0.0
  %1408 = vmatpush.msra.mxu0 0.0
  %1409 = vmatpush.msra.mxu0 0.0
  %1410 = vmatpush.msra.mxu0 0.0
  %1411 = vmatpush.msra.mxu0 0.0
  %1412 = vmatpush.msra.mxu0 %v1355
  %1413 = vmatpush.msra.mxu0 %v1354
  %1414 = vmatpush.msra.mxu0 %v1353
  %1415 = vmatpush.msra.mxu0 %v1352
  %1416 = vmatpush.msra.mxu0 %v1351
  %1417 = vmatpush.msra.mxu0 %v1350
  %1418 = vmatpush.msra.mxu0 %v1349
  %1419 = vmatpush.msra.mxu0 %v1348
  %1420 = vmatmul.f32.gmra.mxu0 %v1357
  %v1421 = vpop.f32.mrf.mxu0
  %v1422 = vadd.f32 0.0, %v1421
  %1423 = vmatmul.f32.gmra.mxu0 %v1360
  %v1424 = vpop.f32.mrf.mxu0
  %v1425 = vadd.f32 0.0, %v1424
  %1426 = vmatmul.f32.gmra.mxu0 %v1363
  %v1427 = vpop.f32.mrf.mxu0
  %v1428 = vadd.f32 0.0, %v1427
  %1429 = vmatmul.f32.gmra.mxu0 %v1366
  %v1430 = vpop.f32.mrf.mxu0
  %v1431 = vadd.f32 0.0, %v1430
  %1432 = vmatmul.f32.gmra.mxu0 %v1369
  %v1433 = vpop.f32.mrf.mxu0
  %v1434 = vadd.f32 0.0, %v1433
  %1435 = vmatmul.f32.gmra.mxu0 %v1372
  %v1436 = vpop.f32.mrf.mxu0
  %v1437 = vadd.f32 0.0, %v1436
  %1438 = vmatmul.f32.gmra.mxu0 %v1375
  %v1439 = vpop.f32.mrf.mxu0
  %v1440 = vadd.f32 0.0, %v1439
  %1441 = vmatmul.f32.gmra.mxu0 %v1378
  %v1442 = vpop.f32.mrf.mxu0
  %v1443 = vadd.f32 0.0, %v1442
  %1444 = vmatmul.f32.gmra.mxu0 %v1381
  %v1445 = vpop.f32.mrf.mxu0
  %v1446 = vadd.f32 0.0, %v1445
  %1447 = vmatmul.f32.gmra.mxu0 %v1384
  %v1448 = vpop.f32.mrf.mxu0
  %v1449 = vadd.f32 0.0, %v1448
  %1450 = vmatmul.f32.gmra.mxu0 %v1387
  %v1451 = vpop.f32.mrf.mxu0
  %v1452 = vadd.f32 0.0, %v1451
  %1453 = vmatmul.f32.gmra.mxu0 %v1390
  %v1454 = vpop.f32.mrf.mxu0
  %v1455 = vadd.f32 0.0, %v1454
  %1456 = vmatmul.f32.gmra.mxu0 %v1393
  %v1457 = vpop.f32.mrf.mxu0
  %v1458 = vadd.f32 0.0, %v1457
  %1459 = vmatmul.f32.gmra.mxu0 %v1396
  %v1460 = vpop.f32.mrf.mxu0
  %v1461 = vadd.f32 0.0, %v1460
  %1462 = vmatmul.f32.gmra.mxu0 %v1399
  %v1463 = vpop.f32.mrf.mxu0
  %v1464 = vadd.f32 0.0, %v1463
  %1465 = vmatmul.f32.gmra.mxu0 %v1402
  %v1466 = vpop.f32.mrf.mxu0
  %v1467 = vadd.f32 0.0, %v1466
  %1468 = vdwg.mxu0
  %v1469 = vadd.f32 %v1331, %v1422
  %v1470 = vadd.f32 %v1332, %v1425
  %v1471 = vadd.f32 %v1333, %v1428
  %v1472 = vadd.f32 %v1334, %v1431
  %v1473 = vadd.f32 %v1335, %v1434
  %v1474 = vadd.f32 %v1336, %v1437
  %v1475 = vadd.f32 %v1337, %v1440
  %v1476 = vadd.f32 %v1338, %v1443
  %v1477 = vadd.f32 %v1339, %v1446
  %v1478 = vadd.f32 %v1340, %v1449
  %v1479 = vadd.f32 %v1341, %v1452
  %v1480 = vadd.f32 %v1342, %v1455
  %v1481 = vadd.f32 %v1343, %v1458
  %v1482 = vadd.f32 %v1344, %v1461
  %v1483 = vadd.f32 %v1345, %v1464
  %v1484 = vadd.f32 %v1346, %v1467
  %v1485 = vld [vmem:[%s6] sm:$0x1]
  %v1487 = vperm.slane %v1485, 0
  %v1489 = vadd.f32 %v1469, %v1487
  %v1490 = vadd.f32 %v1470, %v1487
  %v1491 = vadd.f32 %v1471, %v1487
  %v1492 = vadd.f32 %v1472, %v1487
  %v1493 = vadd.f32 %v1473, %v1487
  %v1494 = vadd.f32 %v1474, %v1487
  %v1495 = vadd.f32 %v1475, %v1487
  %v1496 = vadd.f32 %v1476, %v1487
  %v1497 = vadd.f32 %v1477, %v1487
  %v1498 = vadd.f32 %v1478, %v1487
  %v1499 = vadd.f32 %v1479, %v1487
  %v1500 = vadd.f32 %v1480, %v1487
  %v1501 = vadd.f32 %v1481, %v1487
  %v1502 = vadd.f32 %v1482, %v1487
  %v1503 = vadd.f32 %v1483, %v1487
  %v1504 = vadd.f32 %v1484, %v1487
  %v1505 = vmax.f32 %v1489, 0.0
  %v1506 = vmax.f32 %v1490, 0.0
  %v1507 = vmax.f32 %v1491, 0.0
  %v1508 = vmax.f32 %v1492, 0.0
  %v1509 = vmax.f32 %v1493, 0.0
  %v1510 = vmax.f32 %v1494, 0.0
  %v1511 = vmax.f32 %v1495, 0.0
  %v1512 = vmax.f32 %v1496, 0.0
  %v1513 = vmax.f32 %v1497, 0.0
  %v1514 = vmax.f32 %v1498, 0.0
  %v1515 = vmax.f32 %v1499, 0.0
  %v1516 = vmax.f32 %v1500, 0.0
  %v1517 = vmax.f32 %v1501, 0.0
  %v1518 = vmax.f32 %v1502, 0.0
  %v1519 = vmax.f32 %v1503, 0.0
  %v1520 = vmax.f32 %v1504, 0.0
  %1521 = vst [vmem:[%s7] sm:$0xff] %v1505
  %1522 = vst [vmem:[%s7 + $0x8] sm:$0xff] %v1506
  %1523 = vst [vmem:[%s7 + $0x10] sm:$0xff] %v1507
  %1524 = vst [vmem:[%s7 + $0x18] sm:$0xff] %v1508
  %1525 = vst [vmem:[%s7 + $0x20] sm:$0xff] %v1509
  %1526 = vst [vmem:[%s7 + $0x28] sm:$0xff] %v1510
  %1527 = vst [vmem:[%s7 + $0x30] sm:$0xff] %v1511
  %1528 = vst [vmem:[%s7 + $0x38] sm:$0xff] %v1512
  %1529 = vst [vmem:[%s7 + $0x40] sm:$0xff] %v1513
  %1530 = vst [vmem:[%s7 + $0x48] sm:$0xff] %v1514
  %1531 = vst [vmem:[%s7 + $0x50] sm:$0xff] %v1515
  %1532 = vst [vmem:[%s7 + $0x58] sm:$0xff] %v1516
  %1533 = vst [vmem:[%s7 + $0x60] sm:$0xff] %v1517
  %1534 = vst [vmem:[%s7 + $0x68] sm:$0xff] %v1518
  %1535 = vst [vmem:[%s7 + $0x70] sm:$0xff] %v1519
  %1536 = vst [vmem:[%s7 + $0x78] sm:$0xff] %v1520
  // Predicated region
  $region30: #{pyramid_forward.2} parent=0 // pred_check
    _
  $region31: #{pyramid_forward.2} parent=0 // pred_check_branch
    %1538 = sbr.rel (0) target = $region33
  $region32: #{pyramid_forward.2} parent=0 // pred_region
    _
  $region33: #{pyramid_forward.2} parent=0 // pred_fallthru
    _
  // Predicated region
  $region34: #{pyramid_forward.2} parent=0 // pred_check
    _
  $region35: #{pyramid_forward.2} parent=0 // pred_check_branch
    %1540 = sbr.rel (0) target = $region37
  $region36: #{pyramid_forward.2} parent=0 // pred_region
    _
  $region37: #{pyramid_forward.2} parent=0 // pred_fallthru
    _

// kernel: pyramid_forward.3
$region0: #{pyramid_forward.3}
  #allocation0 [shape = 'u32[]', space=smem, size = 0x4, offset = 0x4, fixed_abs, tag = 'smem constant byte address 0x4 - core index']
  #allocation1 [shape = 'u32[72,128]{1,0:T(1,128)}', space=vmem, size = 0x9000, scoped, tag = 'internal scratch']
  %s0 = inlined_call_operand.vmem [shape: f32[2,8192], index: 0, kind: input, shape index: {}]
  %s1 = inlined_call_operand.vmem [shape: bf16[8192,256], index: 1, kind: input, shape index: {}]
  %s2 = inlined_call_operand.vmem [shape: f32[1,256], index: 2, kind: input, shape index: {}]
  %s3 = inlined_call_operand.vmem [shape: f32[2,256], index: 3, kind: output, shape index: {}]
  %s4 = sld [smem:[#allocation0]]
  $region53: #{pyramid_forward.3} parent=0
    _
  %s6 = ssub.s32 1, %s4
  %s7 = scalar_select 0, %s6, %s4
  loop: start=0, step=1, limit=4
  $region2: #{pyramid_forward.3} parent=0 // loop_pre_header
    _
  $region3: #{pyramid_forward.3} parent=0 // loop_header
    %s9 = sphi 0, %s13
    %p10 = scmp.ge.s32.totalorder %s9, 4
    %s19 = sphi 0, %s21
    %s22 = sphi 0, %s19
    %s23 = sphi 0, %s22
    %s39 = sphi 0, %s23
    %s45 = sphi 0, %s47
    %s48 = sphi 0, %s45
    %s49 = sphi 0, %s48
    %s65 = sphi 0, %s49
    %s69 = sphi 0, %s69
    %s71 = sphi 0, %s69
    %s72 = sphi 0, %s71
    %s86 = sphi 0, %s72
    %s90 = sphi 0, %s90
    %s92 = sphi 0, %s90
    %s93 = sphi 0, %s92
    %s107 = sphi 0, %s93
  $region4: #{pyramid_forward.3} parent=0 // loop_header_branch
    %12 = sbr.rel (%p10) target = $region8
  $region5: #{pyramid_forward.3} parent=0 // loop_body
    %s14 = ssub.s32 %s9, 1
    %s15 = ssub.s32 %s9, 2
    %s16 = sadd.s32 %s9, 1
    %s17 = ssub.s32 %s9, %s16
    %p18 = scmp.eq.s32.totalorder %s17, 0
    %s20 = sadd.s32 %s19, 1
    %s21 = scalar_select %p18, %s19, %s20
    %p24 = pneg %p18
    %p25 = scmp.eq.s32.totalorder %s9, 1
    %p26 = por %p24, %p25
    %p27 = scmp.ne.s32.totalorder %s19, %s22
    %p28 = scmp.eq.s32.totalorder %s9, 0
    %p29 = por %p27, %p28
    %p30 = scmp.ne.s32.totalorder %s19, %s22
    %p31 = scmp.eq.s32.totalorder %s14, 1
    %p32 = por %p30, %p31
    %p33 = scmp.ne.s32.totalorder %s22, %s23
    %p34 = scmp.eq.s32.totalorder %s14, 0
    %p35 = por %p33, %p34
    %p36 = scmp.ne.s32.totalorder %s22, %s23
    %p37 = scmp.eq.s32.totalorder %s15, 1
    %p38 = por %p36, %p37
    %p40 = scmp.ne.s32.totalorder %s23, %s39
    %p41 = scmp.eq.s32.totalorder %s15, 0
    %p42 = por %p40, %p41
    %s43 = ssub.s32 %s9, %s16
    %p44 = scmp.eq.s32.totalorder %s43, 0
    %s46 = sadd.s32 %s45, 1
    %s47 = scalar_select %p44, %s45, %s46
    %p50 = pneg %p44
    %p51 = scmp.eq.s32.totalorder %s9, 1
    %p52 = por %p50, %p51
    %p53 = scmp.ne.s32.totalorder %s45, %s48
    %p54 = scmp.eq.s32.totalorder %s9, 0
    %p55 = por %p53, %p54
    %p56 = scmp.ne.s32.totalorder %s45, %s48
    %p57 = scmp.eq.s32.totalorder %s14, 1
    %p58 = por %p56, %p57
    %p59 = scmp.ne.s32.totalorder %s48, %s49
    %p60 = scmp.eq.s32.totalorder %s14, 0
    %p61 = por %p59, %p60
    %p62 = scmp.ne.s32.totalorder %s48, %s49
    %p63 = scmp.eq.s32.totalorder %s15, 1
    %p64 = por %p62, %p63
    %p66 = scmp.ne.s32.totalorder %s49, %s65
    %p67 = scmp.eq.s32.totalorder %s15, 0
    %p68 = por %p66, %p67
    %s70 = sadd.s32 %s69, 1
    %p73 = scmp.eq.s32.totalorder %s9, 1
    %p74 = scmp.ne.s32.totalorder %s69, %s71
    %p75 = scmp.eq.s32.totalorder %s9, 0
    %p76 = por %p74, %p75
    %p77 = scmp.ne.s32.totalorder %s69, %s71
    %p78 = scmp.eq.s32.totalorder %s14, 1
    %p79 = por %p77, %p78
    %p80 = scmp.ne.s32.totalorder %s71, %s72
    %p81 = scmp.eq.s32.totalorder %s14, 0
    %p82 = por %p80, %p81
    %p83 = scmp.ne.s32.totalorder %s71, %s72
    %p84 = scmp.eq.s32.totalorder %s15, 1
    %p85 = por %p83, %p84
    %p87 = scmp.ne.s32.totalorder %s72, %s86
    %p88 = scmp.eq.s32.totalorder %s15, 0
    %p89 = por %p87, %p88
    %s91 = sadd.s32 %s90, 1
    %p94 = scmp.eq.s32.totalorder %s9, 1
    %p95 = scmp.ne.s32.totalorder %s90, %s92
    %p96 = scmp.eq.s32.totalorder %s9, 0
    %p97 = por %p95, %p96
    %p98 = scmp.ne.s32.totalorder %s90, %s92
    %p99 = scmp.eq.s32.totalorder %s14, 1
    %p100 = por %p98, %p99
    %p101 = scmp.ne.s32.totalorder %s92, %s93
    %p102 = scmp.eq.s32.totalorder %s14, 0
    %p103 = por %p101, %p102
    %p104 = scmp.ne.s32.totalorder %s92, %s93
    %p105 = scmp.eq.s32.totalorder %s15, 1
    %p106 = por %p104, %p105
    %p108 = scmp.ne.s32.totalorder %s93, %s107
    %p109 = scmp.eq.s32.totalorder %s15, 0
    %p110 = por %p108, %p109
    %p111 = scmp.le.s32.totalorder 1, %s9
    %p112 = scmp.lt.s32.totalorder %s9, 3
    %p113 = pnand %p111, %p112
    %p114 = pneg %p113
    // Predicated region
    $region9: #{pyramid_forward.3} parent=5 // pred_check
      _
    $region10: #{pyramid_forward.3} parent=5 // pred_check_branch
      %116 = sbr.rel (%p113) target = $region12
    $region11: #{pyramid_forward.3} parent=5 // pred_region
      %s117 = ssub.s32 %s9, 1
      // Predicated region
      $region13: #{pyramid_forward.3} parent=11 // pred_check
        %p118 = pneg %p82
      $region14: #{pyramid_forward.3} parent=11 // pred_check_branch
        %120 = sbr.rel (%p118) target = $region16
      $region15: #{pyramid_forward.3} parent=11 // pred_region
        _
      $region16: #{pyramid_forward.3} parent=11 // pred_fallthru
        _
    $region12: #{pyramid_forward.3} parent=5 // pred_fallthru
      _
    %p121 = scmp.lt.s32.totalorder %s9, 2
    // Predicated region
    $region17: #{pyramid_forward.3} parent=5 // pred_check
      %p122 = pneg %p121
    $region18: #{pyramid_forward.3} parent=5 // pred_check_branch
      %124 = sbr.rel (%p122) target = $region20
    $region19: #{pyramid_forward.3} parent=5 // pred_region
      // Predicated region
      $region21: #{pyramid_forward.3} parent=19 // pred_check
        %p125 = pneg %p29
      $region22: #{pyramid_forward.3} parent=19 // pred_check_branch
        %127 = sbr.rel (%p125) target = $region24
      $region23: #{pyramid_forward.3} parent=19 // pred_region
        %s128 = smul.u32 32, %s9
        %p129 = scmp.lt.s32.totalorder %s128, 63
        %s130 = scalar_select %p129, %s128, 63
        %s131 = smul.addr %s130, 2
        %s132 = scalar_lea.vmem %s0, %s131
        %s133 = smul.u32 32, %s9
      $region24: #{pyramid_forward.3} parent=19 // pred_fallthru
        _
      // Predicated region
      $region25: #{pyramid_forward.3} parent=19 // pred_check
        %p134 = pneg %p55
      $region26: #{pyramid_forward.3} parent=19 // pred_check_branch
        %136 = sbr.rel (%p134) target = $region28
      $region27: #{pyramid_forward.3} parent=19 // pred_region
        %s137 = smul.u32 512, %s9
        %p138 = scmp.lt.s32.totalorder %s137, 1023
        %s139 = scalar_select %p138, %s137, 1023
        %s140 = smul.addr %s139, 2
        %s141 = smul.addr %s140, 4
        %s142 = scalar_lea.vmem %s1, %s141
        %s143 = smul.u32 512, %s9
      $region28: #{pyramid_forward.3} parent=19 // pred_fallthru
        _
    $region20: #{pyramid_forward.3} parent=5 // pred_fallthru
      _
    %p144 = scmp.le.s32.totalorder 1, %s9
    %p145 = scmp.lt.s32.totalorder %s9, 3
    %p146 = pnand %p144, %p145
    %p147 = pneg %p146
    // Predicated region
    $region29: #{pyramid_forward.3} parent=5 // pred_check
      _
    $region30: #{pyramid_forward.3} parent=5 // pred_check_branch
      %149 = sbr.rel (%p146) target = $region32
    $region31: #{pyramid_forward.3} parent=5 // pred_region
      %s150 = ssub.s32 %s9, 1
      %s151 = smul.u32 32, %s14
      %p152 = scmp.lt.s32.totalorder %s151, 63
      %s153 = scalar_select %p152, %s151, 63
      %s154 = smul.addr %s153, 2
      %s155 = scalar_lea.vmem %s0, %s154
      %p156 = pneg %p35
      %p157 = pneg %p32
      %s158 = smul.u32 512, %s14
      %p159 = scmp.lt.s32.totalorder %s158, 1023
      %s160 = scalar_select %p159, %s158, 1023
      %s161 = smul.addr %s160, 2
      %s162 = smul.addr %s161, 4
      %s163 = scalar_lea.vmem %s1, %s162
      %p164 = pneg %p61
      %p165 = pneg %p58
      %p166 = pneg %p82
      %p167 = pneg %p79
      %p168 = pneg %p103
      %p169 = pneg %p100
      %s170 = smul.u32 32, %s14
      %p171 = scmp.lt.s32.totalorder %s170, 63
      %s172 = scalar_select %p171, %s170, 63
      %s173 = smul.addr %s172, 2
      %s174 = scalar_lea.vmem %s0, %s173
      %s175 = smul.u32 32, %s14
      %s176 = smul.u32 512, %s14
      %p177 = scmp.lt.s32.totalorder %s176, 1023
      %s178 = scalar_select %p177, %s176, 1023
      %s179 = smul.addr %s178, 2
      %s180 = smul.addr %s179, 4
      %s181 = scalar_lea.vmem %s1, %s180
      %s182 = smul.u32 512, %s14
      %p183 = scmp.eq.s32.totalorder %s14, 0
      // Predicated region
      $region33: #{pyramid_forward.3} parent=31 // pred_check
        %p184 = pneg %p183
      $region34: #{pyramid_forward.3} parent=31 // pred_check_branch
        %186 = sbr.rel (%p184) target = $region36
      $region35: #{pyramid_forward.3} parent=31 // pred_region
        %187 = vst [vmem:[%s3] sm:$0xf] 0.0
      $region36: #{pyramid_forward.3} parent=31 // pred_fallthru
        _
      %v188 = vld [vmem:[%s3] sm:$0xf]
      %v189 = vld [vmem:[%s174] sm:$0xff]
      %v190 = vld [vmem:[%s174 + $0x8] sm:$0xff]
      %v191 = vld [vmem:[%s174 + $0x10] sm:$0xff]
      %v192 = vld [vmem:[%s174 + $0x18] sm:$0xff]
      %v193 = vld [vmem:[%s174 + $0x20] sm:$0xff]
      %v194 = vld [vmem:[%s174 + $0x28] sm:$0xff]
      %v195 = vld [vmem:[%s174 + $0x30] sm:$0xff]
      %v196 = vld [vmem:[%s174 + $0x38] sm:$0xff]
      %205 = vst [vmem:[#allocation1] ss:$4 sm:$0xff] %v189
      %s206 = scalar_lea.vmem [#allocation1], 32
      %207 = vst [vmem:[%s206] ss:$4 sm:$0xff] %v190
      %v208 = vld.sshfl [vmem:[#allocation1] sm:$0xff pattern:$0x73625140]
      %v209 = vld.sshfl [vmem:[#allocation1 + $0x8] sm:$0xff pattern:$0x73625140]
      %v210 = vld.sshfl [vmem:[#allocation1 + $0x10] sm:$0xff pattern:$0x73625140]
      %v211 = vld.sshfl [vmem:[#allocation1 + $0x18] sm:$0xff pattern:$0x73625140]
      %v212 = vld.sshfl [vmem:[#allocation1 + $0x20] sm:$0xff pattern:$0x73625140]
      %v213 = vld.sshfl [vmem:[#allocation1 + $0x28] sm:$0xff pattern:$0x73625140]
      %v214 = vld.sshfl [vmem:[#allocation1 + $0x30] sm:$0xff pattern:$0x73625140]
      %v215 = vld.sshfl [vmem:[#allocation1 + $0x38] sm:$0xff pattern:$0x73625140]
      %216 = vst [vmem:[#allocation1] ss:$4 sm:$0xff] %v191
      %217 = vst [vmem:[%s206] ss:$4 sm:$0xff] %v192
      %v218 = vld.sshfl [vmem:[#allocation1] sm:$0xff pattern:$0x73625140]
      %v219 = vld.sshfl [vmem:[#allocation1 + $0x8] sm:$0xff pattern:$0x73625140]
      %v220 = vld.sshfl [vmem:[#allocation1 + $0x10] sm:$0xff pattern:$0x73625140]
      %v221 = vld.sshfl [vmem:[#allocation1 + $0x18] sm:$0xff pattern:$0x73625140]
      %v222 = vld.sshfl [vmem:[#allocation1 + $0x20] sm:$0xff pattern:$0x73625140]
      %v223 = vld.sshfl [vmem:[#allocation1 + $0x28] sm:$0xff pattern:$0x73625140]
      %v224 = vld.sshfl [vmem:[#allocation1 + $0x30] sm:$0xff pattern:$0x73625140]
      %v225 = vld.sshfl [vmem:[#allocation1 + $0x38] sm:$0xff pattern:$0x73625140]
      %226 = vst [vmem:[#allocation1] ss:$4 sm:$0xff] %v193
      %227 = vst [vmem:[%s206] ss:$4 sm:$0xff] %v194
      %v228 = vld.sshfl [vmem:[#allocation1] sm:$0xff pattern:$0x73625140]
      %v229 = vld.sshfl [vmem:[#allocation1 + $0x8] sm:$0xff pattern:$0x73625140]
      %v230 = vld.sshfl [vmem:[#allocation1 + $0x10] sm:$0xff pattern:$0x73625140]
      %v231 = vld.sshfl [vmem:[#allocation1 + $0x18] sm:$0xff pattern:$0x73625140]
      %v232 = vld.sshfl [vmem:[#allocation1 + $0x20] sm:$0xff pattern:$0x73625140]
      %v233 = vld.sshfl [vmem:[#allocation1 + $0x28] sm:$0xff pattern:$0x73625140]
      %v234 = vld.sshfl [vmem:[#allocation1 + $0x30] sm:$0xff pattern:$0x73625140]
      %v235 = vld.sshfl [vmem:[#allocation1 + $0x38] sm:$0xff pattern:$0x73625140]
      %236 = vst [vmem:[#allocation1] ss:$4 sm:$0xff] %v195
      %237 = vst [vmem:[%s206] ss:$4 sm:$0xff] %v196
      %v238 = vld.sshfl [vmem:[#allocation1] sm:$0xff pattern:$0x73625140]
      %v239 = vld.sshfl [vmem:[#allocation1 + $0x8] sm:$0xff pattern:$0x73625140]
      %v240 = vld.sshfl [vmem:[#allocation1 + $0x10] sm:$0xff pattern:$0x73625140]
      %v241 = vld.sshfl [vmem:[#allocation1 + $0x18] sm:$0xff pattern:$0x73625140]
      %v242 = vld.sshfl [vmem:[#allocation1 + $0x20] sm:$0xff pattern:$0x73625140]
      %v243 = vld.sshfl [vmem:[#allocation1 + $0x28] sm:$0xff pattern:$0x73625140]
      %v244 = vld.sshfl [vmem:[#allocation1 + $0x30] sm:$0xff pattern:$0x73625140]
      %v245 = vld.sshfl [vmem:[#allocation1 + $0x38] sm:$0xff pattern:$0x73625140]
      %v278 = vpack.c.bf16 %v208, %v208
      %v279 = vpack.c.bf16 %v209, %v209
      %v280 = vpack.c.bf16 %v210, %v210
      %v281 = vpack.c.bf16 %v211, %v211
      %v282 = vpack.c.bf16 %v212, %v212
      %v283 = vpack.c.bf16 %v213, %v213
      %v284 = vpack.c.bf16 %v214, %v214
      %v285 = vpack.c.bf16 %v215, %v215
      %v286 = vpack.c.bf16 %v218, %v218
      %v287 = vpack.c.bf16 %v219, %v219
      %v288 = vpack.c.bf16 %v220, %v220
      %v289 = vpack.c.bf16 %v221, %v221
      %v290 = vpack.c.bf16 %v222, %v222
      %v291 = vpack.c.bf16 %v223, %v223
      %v292 = vpack.c.bf16 %v224, %v224
      %v293 = vpack.c.bf16 %v225, %v225
      %v294 = vpack.c.bf16 %v228, %v228
      %v295 = vpack.c.bf16 %v229, %v229
      %v296 = vpack.c.bf16 %v230, %v230
      %v297 = vpack.c.bf16 %v231, %v231
      %v298 = vpack.c.bf16 %v232, %v232
      %v299 = vpack.c.bf16 %v233, %v233
      %v300 = vpack.c.bf16 %v234, %v234
      %v301 = vpack.c.bf16 %v235, %v235
      %v302 = vpack.c.bf16 %v238, %v238
      %v303 = vpack.c.bf16 %v239, %v239
      %v304 = vpack.c.bf16 %v240, %v240
      %v305 = vpack.c.bf16 %v241, %v241
      %v306 = vpack.c.bf16 %v242, %v242
      %v307 = vpack.c.bf16 %v243, %v243
      %v308 = vpack.c.bf16 %v244, %v244
      %v309 = vpack.c.bf16 %v245, %v245
      %v310 = vld [vmem:[%s181] sm:$0xff]
      %v311 = vld [vmem:[%s181 + $0x8] sm:$0xff]
      %v312 = vld [vmem:[%s181 + $0x10] sm:$0xff]
      %v313 = vld [vmem:[%s181 + $0x18] sm:$0xff]
      %v314 = vld [vmem:[%s181 + $0x20] sm:$0xff]
      %v315 = vld [vmem:[%s181 + $0x28] sm:$0xff]
      %v316 = vld [vmem:[%s181 + $0x30] sm:$0xff]
      %v317 = vld [vmem:[%s181 + $0x38] sm:$0xff]
      %v318 = vld [vmem:[%s181 + $0x40] sm:$0xff]
      %v319 = vld [vmem:[%s181 + $0x48] sm:$0xff]
      %v320 = vld [vmem:[%s181 + $0x50] sm:$0xff]
      %v321 = vld [vmem:[%s181 + $0x58] sm:$0xff]
      %v322 = vld [vmem:[%s181 + $0x60] sm:$0xff]
      %v323 = vld [vmem:[%s181 + $0x68] sm:$0xff]
      %v324 = vld [vmem:[%s181 + $0x70] sm:$0xff]
      %v325 = vld [vmem:[%s181 + $0x78] sm:$0xff]
      %v326 = vld [vmem:[%s181 + $0x80] sm:$0xff]
      %v327 = vld [vmem:[%s181 + $0x88] sm:$0xff]
      %v328 = vld [vmem:[%s181 + $0x90] sm:$0xff]
      %v329 = vld [vmem:[%s181 + $0x98] sm:$0xff]
      %v330 = vld [vmem:[%s181 + $0xa0] sm:$0xff]
      %v331 = vld [vmem:[%s181 + $0xa8] sm:$0xff]
      %v332 = vld [vmem:[%s181 + $0xb0] sm:$0xff]
      %v333 = vld [vmem:[%s181 + $0xb8] sm:$0xff]
      %v334 = vld [vmem:[%s181 + $0xc0] sm:$0xff]
      %v335 = vld [vmem:[%s181 + $0xc8] sm:$0xff]
      %v336 = vld [vmem:[%s181 + $0xd0] sm:$0xff]
      %v337 = vld [vmem:[%s181 + $0xd8] sm:$0xff]
      %v338 = vld [vmem:[%s181 + $0xe0] sm:$0xff]
      %v339 = vld [vmem:[%s181 + $0xe8] sm:$0xff]
      %v340 = vld [vmem:[%s181 + $0xf0] sm:$0xff]
      %v341 = vld [vmem:[%s181 + $0xf8] sm:$0xff]
      %v342 = vld [vmem:[%s181 + $0x100] sm:$0xff]
      %v343 = vld [vmem:[%s181 + $0x108] sm:$0xff]
      %v344 = vld [vmem:[%s181 + $0x110] sm:$0xff]
      %v345 = vld [vmem:[%s181 + $0x118] sm:$0xff]
      %v346 = vld [vmem:[%s181 + $0x120] sm:$0xff]
      %v347 = vld [vmem:[%s181 + $0x128] sm:$0xff]
      %v348 = vld [vmem:[%s181 + $0x130] sm:$0xff]
      %v349 = vld [vmem:[%s181 + $0x138] sm:$0xff]
      %v350 = vld [vmem:[%s181 + $0x140] sm:$0xff]
      %v351 = vld [vmem:[%s181 + $0x148] sm:$0xff]
      %v352 = vld [vmem:[%s181 + $0x150] sm:$0xff]
      %v353 = vld [vmem:[%s181 + $0x158] sm:$0xff]
      %v354 = vld [vmem:[%s181 + $0x160] sm:$0xff]
      %v355 = vld [vmem:[%s181 + $0x168] sm:$0xff]
      %v356 = vld [vmem:[%s181 + $0x170] sm:$0xff]
      %v357 = vld [vmem:[%s181 + $0x178] sm:$0xff]
      %v358 = vld [vmem:[%s181 + $0x180] sm:$0xff]
      %v359 = vld [vmem:[%s181 + $0x188] sm:$0xff]
      %v360 = vld [vmem:[%s181 + $0x190] sm:$0xff]
      %v361 = vld [vmem:[%s181 + $0x198] sm:$0xff]
      %v362 = vld [vmem:[%s181 + $0x1a0] sm:$0xff]
      %v363 = vld [vmem:[%s181 + $0x1a8] sm:$0xff]
      %v364 = vld [vmem:[%s181 + $0x1b0] sm:$0xff]
      %v365 = vld [vmem:[%s181 + $0x1b8] sm:$0xff]
      %v366 = vld [vmem:[%s181 + $0x1c0] sm:$0xff]
      %v367 = vld [vmem:[%s181 + $0x1c8] sm:$0xff]
      %v368 = vld [vmem:[%s181 + $0x1d0] sm:$0xff]
      %v369 = vld [vmem:[%s181 + $0x1d8] sm:$0xff]
      %v370 = vld [vmem:[%s181 + $0x1e0] sm:$0xff]
      %v371 = vld [vmem:[%s181 + $0x1e8] sm:$0xff]
      %v372 = vld [vmem:[%s181 + $0x1f0] sm:$0xff]
      %v373 = vld [vmem:[%s181 + $0x1f8] sm:$0xff]
      %v374 = vld [vmem:[%s181 + $0x200] sm:$0xff]
      %v375 = vld [vmem:[%s181 + $0x208] sm:$0xff]
      %v376 = vld [vmem:[%s181 + $0x210] sm:$0xff]
      %v377 = vld [vmem:[%s181 + $0x218] sm:$0xff]
      %v378 = vld [vmem:[%s181 + $0x220] sm:$0xff]
      %v379 = vld [vmem:[%s181 + $0x228] sm:$0xff]
      %v380 = vld [vmem:[%s181 + $0x230] sm:$0xff]
      %v381 = vld [vmem:[%s181 + $0x238] sm:$0xff]
      %v382 = vld [vmem:[%s181 + $0x240] sm:$0xff]
      %v383 = vld [vmem:[%s181 + $0x248] sm:$0xff]
      %v384 = vld [vmem:[%s181 + $0x250] sm:$0xff]
      %v385 = vld [vmem:[%s181 + $0x258] sm:$0xff]
      %v386 = vld [vmem:[%s181 + $0x260] sm:$0xff]
      %v387 = vld [vmem:[%s181 + $0x268] sm:$0xff]
      %v388 = vld [vmem:[%s181 + $0x270] sm:$0xff]
      %v389 = vld [vmem:[%s181 + $0x278] sm:$0xff]
      %v390 = vld [vmem:[%s181 + $0x280] sm:$0xff]
      %v391 = vld [vmem:[%s181 + $0x288] sm:$0xff]
      %v392 = vld [vmem:[%s181 + $0x290] sm:$0xff]
      %v393 = vld [vmem:[%s181 + $0x298] sm:$0xff]
      %v394 = vld [vmem:[%s181 + $0x2a0] sm:$0xff]
      %v395 = vld [vmem:[%s181 + $0x2a8] sm:$0xff]
      %v396 = vld [vmem:[%s181 + $0x2b0] sm:$0xff]
      %v397 = vld [vmem:[%s181 + $0x2b8] sm:$0xff]
      %v398 = vld [vmem:[%s181 + $0x2c0] sm:$0xff]
      %v399 = vld [vmem:[%s181 + $0x2c8] sm:$0xff]
      %v400 = vld [vmem:[%s181 + $0x2d0] sm:$0xff]
      %v401 = vld [vmem:[%s181 + $0x2d8] sm:$0xff]
      %v402 = vld [vmem:[%s181 + $0x2e0] sm:$0xff]
      %v403 = vld [vmem:[%s181 + $0x2e8] sm:$0xff]
      %v404 = vld [vmem:[%s181 + $0x2f0] sm:$0xff]
      %v405 = vld [vmem:[%s181 + $0x2f8] sm:$0xff]
      %v406 = vld [vmem:[%s181 + $0x300] sm:$0xff]
      %v407 = vld [vmem:[%s181 + $0x308] sm:$0xff]
      %v408 = vld [vmem:[%s181 + $0x310] sm:$0xff]
      %v409 = vld [vmem:[%s181 + $0x318] sm:$0xff]
      %v410 = vld [vmem:[%s181 + $0x320] sm:$0xff]
      %v411 = vld [vmem:[%s181 + $0x328] sm:$0xff]
      %v412 = vld [vmem:[%s181 + $0x330] sm:$0xff]
      %v413 = vld [vmem:[%s181 + $0x338] sm:$0xff]
      %v414 = vld [vmem:[%s181 + $0x340] sm:$0xff]
      %v415 = vld [vmem:[%s181 + $0x348] sm:$0xff]
      %v416 = vld [vmem:[%s181 + $0x350] sm:$0xff]
      %v417 = vld [vmem:[%s181 + $0x358] sm:$0xff]
      %v418 = vld [vmem:[%s181 + $0x360] sm:$0xff]
      %v419 = vld [vmem:[%s181 + $0x368] sm:$0xff]
      %v420 = vld [vmem:[%s181 + $0x370] sm:$0xff]
      %v421 = vld [vmem:[%s181 + $0x378] sm:$0xff]
      %v422 = vld [vmem:[%s181 + $0x380] sm:$0xff]
      %v423 = vld [vmem:[%s181 + $0x388] sm:$0xff]
      %v424 = vld [vmem:[%s181 + $0x390] sm:$0xff]
      %v425 = vld [vmem:[%s181 + $0x398] sm:$0xff]
      %v426 = vld [vmem:[%s181 + $0x3a0] sm:$0xff]
      %v427 = vld [vmem:[%s181 + $0x3a8] sm:$0xff]
      %v428 = vld [vmem:[%s181 + $0x3b0] sm:$0xff]
      %v429 = vld [vmem:[%s181 + $0x3b8] sm:$0xff]
      %v430 = vld [vmem:[%s181 + $0x3c0] sm:$0xff]
      %v431 = vld [vmem:[%s181 + $0x3c8] sm:$0xff]
      %v432 = vld [vmem:[%s181 + $0x3d0] sm:$0xff]
      %v433 = vld [vmem:[%s181 + $0x3d8] sm:$0xff]
      %v434 = vld [vmem:[%s181 + $0x3e0] sm:$0xff]
      %v435 = vld [vmem:[%s181 + $0x3e8] sm:$0xff]
      %v436 = vld [vmem:[%s181 + $0x3f0] sm:$0xff]
      %v437 = vld [vmem:[%s181 + $0x3f8] sm:$0xff]
      %v438 = vld [vmem:[%s181 + $0x400] sm:$0xff]
      %v439 = vld [vmem:[%s181 + $0x408] sm:$0xff]
      %v440 = vld [vmem:[%s181 + $0x410] sm:$0xff]
      %v441 = vld [vmem:[%s181 + $0x418] sm:$0xff]
      %v442 = vld [vmem:[%s181 + $0x420] sm:$0xff]
      %v443 = vld [vmem:[%s181 + $0x428] sm:$0xff]
      %v444 = vld [vmem:[%s181 + $0x430] sm:$0xff]
      %v445 = vld [vmem:[%s181 + $0x438] sm:$0xff]
      %v446 = vld [vmem:[%s181 + $0x440] sm:$0xff]
      %v447 = vld [vmem:[%s181 + $0x448] sm:$0xff]
      %v448 = vld [vmem:[%s181 + $0x450] sm:$0xff]
      %v449 = vld [vmem:[%s181 + $0x458] sm:$0xff]
      %v450 = vld [vmem:[%s181 + $0x460] sm:$0xff]
      %v451 = vld [vmem:[%s181 + $0x468] sm:$0xff]
      %v452 = vld [vmem:[%s181 + $0x470] sm:$0xff]
      %v453 = vld [vmem:[%s181 + $0x478] sm:$0xff]
      %v454 = vld [vmem:[%s181 + $0x480] sm:$0xff]
      %v455 = vld [vmem:[%s181 + $0x488] sm:$0xff]
      %v456 = vld [vmem:[%s181 + $0x490] sm:$0xff]
      %v457 = vld [vmem:[%s181 + $0x498] sm:$0xff]
      %v458 = vld [vmem:[%s181 + $0x4a0] sm:$0xff]
      %v459 = vld [vmem:[%s181 + $0x4a8] sm:$0xff]
      %v460 = vld [vmem:[%s181 + $0x4b0] sm:$0xff]
      %v461 = vld [vmem:[%s181 + $0x4b8] sm:$0xff]
      %v462 = vld [vmem:[%s181 + $0x4c0] sm:$0xff]
      %v463 = vld [vmem:[%s181 + $0x4c8] sm:$0xff]
      %v464 = vld [vmem:[%s181 + $0x4d0] sm:$0xff]
      %v465 = vld [vmem:[%s181 + $0x4d8] sm:$0xff]
      %v466 = vld [vmem:[%s181 + $0x4e0] sm:$0xff]
      %v467 = vld [vmem:[%s181 + $0x4e8] sm:$0xff]
      %v468 = vld [vmem:[%s181 + $0x4f0] sm:$0xff]
      %v469 = vld [vmem:[%s181 + $0x4f8] sm:$0xff]
      %v470 = vld [vmem:[%s181 + $0x500] sm:$0xff]
      %v471 = vld [vmem:[%s181 + $0x508] sm:$0xff]
      %v472 = vld [vmem:[%s181 + $0x510] sm:$0xff]
      %v473 = vld [vmem:[%s181 + $0x518] sm:$0xff]
      %v474 = vld [vmem:[%s181 + $0x520] sm:$0xff]
      %v475 = vld [vmem:[%s181 + $0x528] sm:$0xff]
      %v476 = vld [vmem:[%s181 + $0x530] sm:$0xff]
      %v477 = vld [vmem:[%s181 + $0x538] sm:$0xff]
      %v478 = vld [vmem:[%s181 + $0x540] sm:$0xff]
      %v479 = vld [vmem:[%s181 + $0x548] sm:$0xff]
      %v480 = vld [vmem:[%s181 + $0x550] sm:$0xff]
      %v481 = vld [vmem:[%s181 + $0x558] sm:$0xff]
      %v482 = vld [vmem:[%s181 + $0x560] sm:$0xff]
      %v483 = vld [vmem:[%s181 + $0x568] sm:$0xff]
      %v484 = vld [vmem:[%s181 + $0x570] sm:$0xff]
      %v485 = vld [vmem:[%s181 + $0x578] sm:$0xff]
      %v486 = vld [vmem:[%s181 + $0x580] sm:$0xff]
      %v487 = vld [vmem:[%s181 + $0x588] sm:$0xff]
      %v488 = vld [vmem:[%s181 + $0x590] sm:$0xff]
      %v489 = vld [vmem:[%s181 + $0x598] sm:$0xff]
      %v490 = vld [vmem:[%s181 + $0x5a0] sm:$0xff]
      %v491 = vld [vmem:[%s181 + $0x5a8] sm:$0xff]
      %v492 = vld [vmem:[%s181 + $0x5b0] sm:$0xff]
      %v493 = vld [vmem:[%s181 + $0x5b8] sm:$0xff]
      %v494 = vld [vmem:[%s181 + $0x5c0] sm:$0xff]
      %v495 = vld [vmem:[%s181 + $0x5c8] sm:$0xff]
      %v496 = vld [vmem:[%s181 + $0x5d0] sm:$0xff]
      %v497 = vld [vmem:[%s181 + $0x5d8] sm:$0xff]
      %v498 = vld [vmem:[%s181 + $0x5e0] sm:$0xff]
      %v499 = vld [vmem:[%s181 + $0x5e8] sm:$0xff]
      %v500 = vld [vmem:[%s181 + $0x5f0] sm:$0xff]
      %v501 = vld [vmem:[%s181 + $0x5f8] sm:$0xff]
      %v502 = vld [vmem:[%s181 + $0x600] sm:$0xff]
      %v503 = vld [vmem:[%s181 + $0x608] sm:$0xff]
      %v504 = vld [vmem:[%s181 + $0x610] sm:$0xff]
      %v505 = vld [vmem:[%s181 + $0x618] sm:$0xff]
      %v506 = vld [vmem:[%s181 + $0x620] sm:$0xff]
      %v507 = vld [vmem:[%s181 + $0x628] sm:$0xff]
      %v508 = vld [vmem:[%s181 + $0x630] sm:$0xff]
      %v509 = vld [vmem:[%s181 + $0x638] sm:$0xff]
      %v510 = vld [vmem:[%s181 + $0x640] sm:$0xff]
      %v511 = vld [vmem:[%s181 + $0x648] sm:$0xff]
      %v512 = vld [vmem:[%s181 + $0x650] sm:$0xff]
      %v513 = vld [vmem:[%s181 + $0x658] sm:$0xff]
      %v514 = vld [vmem:[%s181 + $0x660] sm:$0xff]
      %v515 = vld [vmem:[%s181 + $0x668] sm:$0xff]
      %v516 = vld [vmem:[%s181 + $0x670] sm:$0xff]
      %v517 = vld [vmem:[%s181 + $0x678] sm:$0xff]
      %v518 = vld [vmem:[%s181 + $0x680] sm:$0xff]
      %v519 = vld [vmem:[%s181 + $0x688] sm:$0xff]
      %v520 = vld [vmem:[%s181 + $0x690] sm:$0xff]
      %v521 = vld [vmem:[%s181 + $0x698] sm:$0xff]
      %v522 = vld [vmem:[%s181 + $0x6a0] sm:$0xff]
      %v523 = vld [vmem:[%s181 + $0x6a8] sm:$0xff]
      %v524 = vld [vmem:[%s181 + $0x6b0] sm:$0xff]
      %v525 = vld [vmem:[%s181 + $0x6b8] sm:$0xff]
      %v526 = vld [vmem:[%s181 + $0x6c0] sm:$0xff]
      %v527 = vld [vmem:[%s181 + $0x6c8] sm:$0xff]
      %v528 = vld [vmem:[%s181 + $0x6d0] sm:$0xff]
      %v529 = vld [vmem:[%s181 + $0x6d8] sm:$0xff]
      %v530 = vld [vmem:[%s181 + $0x6e0] sm:$0xff]
      %v531 = vld [vmem:[%s181 + $0x6e8] sm:$0xff]
      %v532 = vld [vmem:[%s181 + $0x6f0] sm:$0xff]
      %v533 = vld [vmem:[%s181 + $0x6f8] sm:$0xff]
      %v534 = vld [vmem:[%s181 + $0x700] sm:$0xff]
      %v535 = vld [vmem:[%s181 + $0x708] sm:$0xff]
      %v536 = vld [vmem:[%s181 + $0x710] sm:$0xff]
      %v537 = vld [vmem:[%s181 + $0x718] sm:$0xff]
      %v538 = vld [vmem:[%s181 + $0x720] sm:$0xff]
      %v539 = vld [vmem:[%s181 + $0x728] sm:$0xff]
      %v540 = vld [vmem:[%s181 + $0x730] sm:$0xff]
      %v541 = vld [vmem:[%s181 + $0x738] sm:$0xff]
      %v542 = vld [vmem:[%s181 + $0x740] sm:$0xff]
      %v543 = vld [vmem:[%s181 + $0x748] sm:$0xff]
      %v544 = vld [vmem:[%s181 + $0x750] sm:$0xff]
      %v545 = vld [vmem:[%s181 + $0x758] sm:$0xff]
      %v546 = vld [vmem:[%s181 + $0x760] sm:$0xff]
      %v547 = vld [vmem:[%s181 + $0x768] sm:$0xff]
      %v548 = vld [vmem:[%s181 + $0x770] sm:$0xff]
      %v549 = vld [vmem:[%s181 + $0x778] sm:$0xff]
      %v550 = vld [vmem:[%s181 + $0x780] sm:$0xff]
      %v551 = vld [vmem:[%s181 + $0x788] sm:$0xff]
      %v552 = vld [vmem:[%s181 + $0x790] sm:$0xff]
      %v553 = vld [vmem:[%s181 + $0x798] sm:$0xff]
      %v554 = vld [vmem:[%s181 + $0x7a0] sm:$0xff]
      %v555 = vld [vmem:[%s181 + $0x7a8] sm:$0xff]
      %v556 = vld [vmem:[%s181 + $0x7b0] sm:$0xff]
      %v557 = vld [vmem:[%s181 + $0x7b8] sm:$0xff]
      %v558 = vld [vmem:[%s181 + $0x7c0] sm:$0xff]
      %v559 = vld [vmem:[%s181 + $0x7c8] sm:$0xff]
      %v560 = vld [vmem:[%s181 + $0x7d0] sm:$0xff]
      %v561 = vld [vmem:[%s181 + $0x7d8] sm:$0xff]
      %v562 = vld [vmem:[%s181 + $0x7e0] sm:$0xff]
      %v563 = vld [vmem:[%s181 + $0x7e8] sm:$0xff]
      %v564 = vld [vmem:[%s181 + $0x7f0] sm:$0xff]
      %v565 = vld [vmem:[%s181 + $0x7f8] sm:$0xff]
      %v566 = vld [vmem:[%s181 + $0x800] sm:$0xff]
      %v567 = vld [vmem:[%s181 + $0x808] sm:$0xff]
      %v568 = vld [vmem:[%s181 + $0x810] sm:$0xff]
      %v569 = vld [vmem:[%s181 + $0x818] sm:$0xff]
      %v570 = vld [vmem:[%s181 + $0x820] sm:$0xff]
      %v571 = vld [vmem:[%s181 + $0x828] sm:$0xff]
      %v572 = vld [vmem:[%s181 + $0x830] sm:$0xff]
      %v573 = vld [vmem:[%s181 + $0x838] sm:$0xff]
      %v574 = vld [vmem:[%s181 + $0x840] sm:$0xff]
      %v575 = vld [vmem:[%s181 + $0x848] sm:$0xff]
      %v576 = vld [vmem:[%s181 + $0x850] sm:$0xff]
      %v577 = vld [vmem:[%s181 + $0x858] sm:$0xff]
      %v578 = vld [vmem:[%s181 + $0x860] sm:$0xff]
      %v579 = vld [vmem:[%s181 + $0x868] sm:$0xff]
      %v580 = vld [vmem:[%s181 + $0x870] sm:$0xff]
      %v581 = vld [vmem:[%s181 + $0x878] sm:$0xff]
      %v582 = vld [vmem:[%s181 + $0x880] sm:$0xff]
      %v583 = vld [vmem:[%s181 + $0x888] sm:$0xff]
      %v584 = vld [vmem:[%s181 + $0x890] sm:$0xff]
      %v585 = vld [vmem:[%s181 + $0x898] sm:$0xff]
      %v586 = vld [vmem:[%s181 + $0x8a0] sm:$0xff]
      %v587 = vld [vmem:[%s181 + $0x8a8] sm:$0xff]
      %v588 = vld [vmem:[%s181 + $0x8b0] sm:$0xff]
      %v589 = vld [vmem:[%s181 + $0x8b8] sm:$0xff]
      %v590 = vld [vmem:[%s181 + $0x8c0] sm:$0xff]
      %v591 = vld [vmem:[%s181 + $0x8c8] sm:$0xff]
      %v592 = vld [vmem:[%s181 + $0x8d0] sm:$0xff]
      %v593 = vld [vmem:[%s181 + $0x8d8] sm:$0xff]
      %v594 = vld [vmem:[%s181 + $0x8e0] sm:$0xff]
      %v595 = vld [vmem:[%s181 + $0x8e8] sm:$0xff]
      %v596 = vld [vmem:[%s181 + $0x8f0] sm:$0xff]
      %v597 = vld [vmem:[%s181 + $0x8f8] sm:$0xff]
      %v598 = vld [vmem:[%s181 + $0x900] sm:$0xff]
      %v599 = vld [vmem:[%s181 + $0x908] sm:$0xff]
      %v600 = vld [vmem:[%s181 + $0x910] sm:$0xff]
      %v601 = vld [vmem:[%s181 + $0x918] sm:$0xff]
      %v602 = vld [vmem:[%s181 + $0x920] sm:$0xff]
      %v603 = vld [vmem:[%s181 + $0x928] sm:$0xff]
      %v604 = vld [vmem:[%s181 + $0x930] sm:$0xff]
      %v605 = vld [vmem:[%s181 + $0x938] sm:$0xff]
      %v606 = vld [vmem:[%s181 + $0x940] sm:$0xff]
      %v607 = vld [vmem:[%s181 + $0x948] sm:$0xff]
      %v608 = vld [vmem:[%s181 + $0x950] sm:$0xff]
      %v609 = vld [vmem:[%s181 + $0x958] sm:$0xff]
      %v610 = vld [vmem:[%s181 + $0x960] sm:$0xff]
      %v611 = vld [vmem:[%s181 + $0x968] sm:$0xff]
      %v612 = vld [vmem:[%s181 + $0x970] sm:$0xff]
      %v613 = vld [vmem:[%s181 + $0x978] sm:$0xff]
      %v614 = vld [vmem:[%s181 + $0x980] sm:$0xff]
      %v615 = vld [vmem:[%s181 + $0x988] sm:$0xff]
      %v616 = vld [vmem:[%s181 + $0x990] sm:$0xff]
      %v617 = vld [vmem:[%s181 + $0x998] sm:$0xff]
      %v618 = vld [vmem:[%s181 + $0x9a0] sm:$0xff]
      %v619 = vld [vmem:[%s181 + $0x9a8] sm:$0xff]
      %v620 = vld [vmem:[%s181 + $0x9b0] sm:$0xff]
      %v621 = vld [vmem:[%s181 + $0x9b8] sm:$0xff]
      %v622 = vld [vmem:[%s181 + $0x9c0] sm:$0xff]
      %v623 = vld [vmem:[%s181 + $0x9c8] sm:$0xff]
      %v624 = vld [vmem:[%s181 + $0x9d0] sm:$0xff]
      %v625 = vld [vmem:[%s181 + $0x9d8] sm:$0xff]
      %v626 = vld [vmem:[%s181 + $0x9e0] sm:$0xff]
      %v627 = vld [vmem:[%s181 + $0x9e8] sm:$0xff]
      %v628 = vld [vmem:[%s181 + $0x9f0] sm:$0xff]
      %v629 = vld [vmem:[%s181 + $0x9f8] sm:$0xff]
      %v630 = vld [vmem:[%s181 + $0xa00] sm:$0xff]
      %v631 = vld [vmem:[%s181 + $0xa08] sm:$0xff]
      %v632 = vld [vmem:[%s181 + $0xa10] sm:$0xff]
      %v633 = vld [vmem:[%s181 + $0xa18] sm:$0xff]
      %v634 = vld [vmem:[%s181 + $0xa20] sm:$0xff]
      %v635 = vld [vmem:[%s181 + $0xa28] sm:$0xff]
      %v636 = vld [vmem:[%s181 + $0xa30] sm:$0xff]
      %v637 = vld [vmem:[%s181 + $0xa38] sm:$0xff]
      %v638 = vld [vmem:[%s181 + $0xa40] sm:$0xff]
      %v639 = vld [vmem:[%s181 + $0xa48] sm:$0xff]
      %v640 = vld [vmem:[%s181 + $0xa50] sm:$0xff]
      %v641 = vld [vmem:[%s181 + $0xa58] sm:$0xff]
      %v642 = vld [vmem:[%s181 + $0xa60] sm:$0xff]
      %v643 = vld [vmem:[%s181 + $0xa68] sm:$0xff]
      %v644 = vld [vmem:[%s181 + $0xa70] sm:$0xff]
      %v645 = vld [vmem:[%s181 + $0xa78] sm:$0xff]
      %v646 = vld [vmem:[%s181 + $0xa80] sm:$0xff]
      %v647 = vld [vmem:[%s181 + $0xa88] sm:$0xff]
      %v648 = vld [vmem:[%s181 + $0xa90] sm:$0xff]
      %v649 = vld [vmem:[%s181 + $0xa98] sm:$0xff]
      %v650 = vld [vmem:[%s181 + $0xaa0] sm:$0xff]
      %v651 = vld [vmem:[%s181 + $0xaa8] sm:$0xff]
      %v652 = vld [vmem:[%s181 + $0xab0] sm:$0xff]
      %v653 = vld [vmem:[%s181 + $0xab8] sm:$0xff]
      %v654 = vld [vmem:[%s181 + $0xac0] sm:$0xff]
      %v655 = vld [vmem:[%s181 + $0xac8] sm:$0xff]
      %v656 = vld [vmem:[%s181 + $0xad0] sm:$0xff]
      %v657 = vld [vmem:[%s181 + $0xad8] sm:$0xff]
      %v658 = vld [vmem:[%s181 + $0xae0] sm:$0xff]
      %v659 = vld [vmem:[%s181 + $0xae8] sm:$0xff]
      %v660 = vld [vmem:[%s181 + $0xaf0] sm:$0xff]
      %v661 = vld [vmem:[%s181 + $0xaf8] sm:$0xff]
      %v662 = vld [vmem:[%s181 + $0xb00] sm:$0xff]
      %v663 = vld [vmem:[%s181 + $0xb08] sm:$0xff]
      %v664 = vld [vmem:[%s181 + $0xb10] sm:$0xff]
      %v665 = vld [vmem:[%s181 + $0xb18] sm:$0xff]
      %v666 = vld [vmem:[%s181 + $0xb20] sm:$0xff]
      %v667 = vld [vmem:[%s181 + $0xb28] sm:$0xff]
      %v668 = vld [vmem:[%s181 + $0xb30] sm:$0xff]
      %v669 = vld [vmem:[%s181 + $0xb38] sm:$0xff]
      %v670 = vld [vmem:[%s181 + $0xb40] sm:$0xff]
      %v671 = vld [vmem:[%s181 + $0xb48] sm:$0xff]
      %v672 = vld [vmem:[%s181 + $0xb50] sm:$0xff]
      %v673 = vld [vmem:[%s181 + $0xb58] sm:$0xff]
      %v674 = vld [vmem:[%s181 + $0xb60] sm:$0xff]
      %v675 = vld [vmem:[%s181 + $0xb68] sm:$0xff]
      %v676 = vld [vmem:[%s181 + $0xb70] sm:$0xff]
      %v677 = vld [vmem:[%s181 + $0xb78] sm:$0xff]
      %v678 = vld [vmem:[%s181 + $0xb80] sm:$0xff]
      %v679 = vld [vmem:[%s181 + $0xb88] sm:$0xff]
      %v680 = vld [vmem:[%s181 + $0xb90] sm:$0xff]
      %v681 = vld [vmem:[%s181 + $0xb98] sm:$0xff]
      %v682 = vld [vmem:[%s181 + $0xba0] sm:$0xff]
      %v683 = vld [vmem:[%s181 + $0xba8] sm:$0xff]
      %v684 = vld [vmem:[%s181 + $0xbb0] sm:$0xff]
      %v685 = vld [vmem:[%s181 + $0xbb8] sm:$0xff]
      %v686 = vld [vmem:[%s181 + $0xbc0] sm:$0xff]
      %v687 = vld [vmem:[%s181 + $0xbc8] sm:$0xff]
      %v688 = vld [vmem:[%s181 + $0xbd0] sm:$0xff]
      %v689 = vld [vmem:[%s181 + $0xbd8] sm:$0xff]
      %v690 = vld [vmem:[%s181 + $0xbe0] sm:$0xff]
      %v691 = vld [vmem:[%s181 + $0xbe8] sm:$0xff]
      %v692 = vld [vmem:[%s181 + $0xbf0] sm:$0xff]
      %v693 = vld [vmem:[%s181 + $0xbf8] sm:$0xff]
      %v694 = vld [vmem:[%s181 + $0xc00] sm:$0xff]
      %v695 = vld [vmem:[%s181 + $0xc08] sm:$0xff]
      %v696 = vld [vmem:[%s181 + $0xc10] sm:$0xff]
      %v697 = vld [vmem:[%s181 + $0xc18] sm:$0xff]
      %v698 = vld [vmem:[%s181 + $0xc20] sm:$0xff]
      %v699 = vld [vmem:[%s181 + $0xc28] sm:$0xff]
      %v700 = vld [vmem:[%s181 + $0xc30] sm:$0xff]
      %v701 = vld [vmem:[%s181 + $0xc38] sm:$0xff]
      %v702 = vld [vmem:[%s181 + $0xc40] sm:$0xff]
      %v703 = vld [vmem:[%s181 + $0xc48] sm:$0xff]
      %v704 = vld [vmem:[%s181 + $0xc50] sm:$0xff]
      %v705 = vld [vmem:[%s181 + $0xc58] sm:$0xff]
      %v706 = vld [vmem:[%s181 + $0xc60] sm:$0xff]
      %v707 = vld [vmem:[%s181 + $0xc68] sm:$0xff]
      %v708 = vld [vmem:[%s181 + $0xc70] sm:$0xff]
      %v709 = vld [vmem:[%s181 + $0xc78] sm:$0xff]
      %v710 = vld [vmem:[%s181 + $0xc80] sm:$0xff]
      %v711 = vld [vmem:[%s181 + $0xc88] sm:$0xff]
      %v712 = vld [vmem:[%s181 + $0xc90] sm:$0xff]
      %v713 = vld [vmem:[%s181 + $0xc98] sm:$0xff]
      %v714 = vld [vmem:[%s181 + $0xca0] sm:$0xff]
      %v715 = vld [vmem:[%s181 + $0xca8] sm:$0xff]
      %v716 = vld [vmem:[%s181 + $0xcb0] sm:$0xff]
      %v717 = vld [vmem:[%s181 + $0xcb8] sm:$0xff]
      %v718 = vld [vmem:[%s181 + $0xcc0] sm:$0xff]
      %v719 = vld [vmem:[%s181 + $0xcc8] sm:$0xff]
      %v720 = vld [vmem:[%s181 + $0xcd0] sm:$0xff]
      %v721 = vld [vmem:[%s181 + $0xcd8] sm:$0xff]
      %v722 = vld [vmem:[%s181 + $0xce0] sm:$0xff]
      %v723 = vld [vmem:[%s181 + $0xce8] sm:$0xff]
      %v724 = vld [vmem:[%s181 + $0xcf0] sm:$0xff]
      %v725 = vld [vmem:[%s181 + $0xcf8] sm:$0xff]
      %v726 = vld [vmem:[%s181 + $0xd00] sm:$0xff]
      %v727 = vld [vmem:[%s181 + $0xd08] sm:$0xff]
      %v728 = vld [vmem:[%s181 + $0xd10] sm:$0xff]
      %v729 = vld [vmem:[%s181 + $0xd18] sm:$0xff]
      %v730 = vld [vmem:[%s181 + $0xd20] sm:$0xff]
      %v731 = vld [vmem:[%s181 + $0xd28] sm:$0xff]
      %v732 = vld [vmem:[%s181 + $0xd30] sm:$0xff]
      %v733 = vld [vmem:[%s181 + $0xd38] sm:$0xff]
      %v734 = vld [vmem:[%s181 + $0xd40] sm:$0xff]
      %v735 = vld [vmem:[%s181 + $0xd48] sm:$0xff]
      %v736 = vld [vmem:[%s181 + $0xd50] sm:$0xff]
      %v737 = vld [vmem:[%s181 + $0xd58] sm:$0xff]
      %v738 = vld [vmem:[%s181 + $0xd60] sm:$0xff]
      %v739 = vld [vmem:[%s181 + $0xd68] sm:$0xff]
      %v740 = vld [vmem:[%s181 + $0xd70] sm:$0xff]
      %v741 = vld [vmem:[%s181 + $0xd78] sm:$0xff]
      %v742 = vld [vmem:[%s181 + $0xd80] sm:$0xff]
      %v743 = vld [vmem:[%s181 + $0xd88] sm:$0xff]
      %v744 = vld [vmem:[%s181 + $0xd90] sm:$0xff]
      %v745 = vld [vmem:[%s181 + $0xd98] sm:$0xff]
      %v746 = vld [vmem:[%s181 + $0xda0] sm:$0xff]
      %v747 = vld [vmem:[%s181 + $0xda8] sm:$0xff]
      %v748 = vld [vmem:[%s181 + $0xdb0] sm:$0xff]
      %v749 = vld [vmem:[%s181 + $0xdb8] sm:$0xff]
      %v750 = vld [vmem:[%s181 + $0xdc0] sm:$0xff]
      %v751 = vld [vmem:[%s181 + $0xdc8] sm:$0xff]
      %v752 = vld [vmem:[%s181 + $0xdd0] sm:$0xff]
      %v753 = vld [vmem:[%s181 + $0xdd8] sm:$0xff]
      %v754 = vld [vmem:[%s181 + $0xde0] sm:$0xff]
      %v755 = vld [vmem:[%s181 + $0xde8] sm:$0xff]
      %v756 = vld [vmem:[%s181 + $0xdf0] sm:$0xff]
      %v757 = vld [vmem:[%s181 + $0xdf8] sm:$0xff]
      %v758 = vld [vmem:[%s181 + $0xe00] sm:$0xff]
      %v759 = vld [vmem:[%s181 + $0xe08] sm:$0xff]
      %v760 = vld [vmem:[%s181 + $0xe10] sm:$0xff]
      %v761 = vld [vmem:[%s181 + $0xe18] sm:$0xff]
      %v762 = vld [vmem:[%s181 + $0xe20] sm:$0xff]
      %v763 = vld [vmem:[%s181 + $0xe28] sm:$0xff]
      %v764 = vld [vmem:[%s181 + $0xe30] sm:$0xff]
      %v765 = vld [vmem:[%s181 + $0xe38] sm:$0xff]
      %v766 = vld [vmem:[%s181 + $0xe40] sm:$0xff]
      %v767 = vld [vmem:[%s181 + $0xe48] sm:$0xff]
      %v768 = vld [vmem:[%s181 + $0xe50] sm:$0xff]
      %v769 = vld [vmem:[%s181 + $0xe58] sm:$0xff]
      %v770 = vld [vmem:[%s181 + $0xe60] sm:$0xff]
      %v771 = vld [vmem:[%s181 + $0xe68] sm:$0xff]
      %v772 = vld [vmem:[%s181 + $0xe70] sm:$0xff]
      %v773 = vld [vmem:[%s181 + $0xe78] sm:$0xff]
      %v774 = vld [vmem:[%s181 + $0xe80] sm:$0xff]
      %v775 = vld [vmem:[%s181 + $0xe88] sm:$0xff]
      %v776 = vld [vmem:[%s181 + $0xe90] sm:$0xff]
      %v777 = vld [vmem:[%s181 + $0xe98] sm:$0xff]
      %v778 = vld [vmem:[%s181 + $0xea0] sm:$0xff]
      %v779 = vld [vmem:[%s181 + $0xea8] sm:$0xff]
      %v780 = vld [vmem:[%s181 + $0xeb0] sm:$0xff]
      %v781 = vld [vmem:[%s181 + $0xeb8] sm:$0xff]
      %v782 = vld [vmem:[%s181 + $0xec0] sm:$0xff]
      %v783 = vld [vmem:[%s181 + $0xec8] sm:$0xff]
      %v784 = vld [vmem:[%s181 + $0xed0] sm:$0xff]
      %v785 = vld [vmem:[%s181 + $0xed8] sm:$0xff]
      %v786 = vld [vmem:[%s181 + $0xee0] sm:$0xff]
      %v787 = vld [vmem:[%s181 + $0xee8] sm:$0xff]
      %v788 = vld [vmem:[%s181 + $0xef0] sm:$0xff]
      %v789 = vld [vmem:[%s181 + $0xef8] sm:$0xff]
      %v790 = vld [vmem:[%s181 + $0xf00] sm:$0xff]
      %v791 = vld [vmem:[%s181 + $0xf08] sm:$0xff]
      %v792 = vld [vmem:[%s181 + $0xf10] sm:$0xff]
      %v793 = vld [vmem:[%s181 + $0xf18] sm:$0xff]
      %v794 = vld [vmem:[%s181 + $0xf20] sm:$0xff]
      %v795 = vld [vmem:[%s181 + $0xf28] sm:$0xff]
      %v796 = vld [vmem:[%s181 + $0xf30] sm:$0xff]
      %v797 = vld [vmem:[%s181 + $0xf38] sm:$0xff]
      %v798 = vld [vmem:[%s181 + $0xf40] sm:$0xff]
      %v799 = vld [vmem:[%s181 + $0xf48] sm:$0xff]
      %v800 = vld [vmem:[%s181 + $0xf50] sm:$0xff]
      %v801 = vld [vmem:[%s181 + $0xf58] sm:$0xff]
      %v802 = vld [vmem:[%s181 + $0xf60] sm:$0xff]
      %v803 = vld [vmem:[%s181 + $0xf68] sm:$0xff]
      %v804 = vld [vmem:[%s181 + $0xf70] sm:$0xff]
      %v805 = vld [vmem:[%s181 + $0xf78] sm:$0xff]
      %v806 = vld [vmem:[%s181 + $0xf80] sm:$0xff]
      %v807 = vld [vmem:[%s181 + $0xf88] sm:$0xff]
      %v808 = vld [vmem:[%s181 + $0xf90] sm:$0xff]
      %v809 = vld [vmem:[%s181 + $0xf98] sm:$0xff]
      %v810 = vld [vmem:[%s181 + $0xfa0] sm:$0xff]
      %v811 = vld [vmem:[%s181 + $0xfa8] sm:$0xff]
      %v812 = vld [vmem:[%s181 + $0xfb0] sm:$0xff]
      %v813 = vld [vmem:[%s181 + $0xfb8] sm:$0xff]
      %v814 = vld [vmem:[%s181 + $0xfc0] sm:$0xff]
      %v815 = vld [vmem:[%s181 + $0xfc8] sm:$0xff]
      %v816 = vld [vmem:[%s181 + $0xfd0] sm:$0xff]
      %v817 = vld [vmem:[%s181 + $0xfd8] sm:$0xff]
      %v818 = vld [vmem:[%s181 + $0xfe0] sm:$0xff]
      %v819 = vld [vmem:[%s181 + $0xfe8] sm:$0xff]
      %v820 = vld [vmem:[%s181 + $0xff0] sm:$0xff]
      %v821 = vld [vmem:[%s181 + $0xff8] sm:$0xff]
      %v1334 = vunpack.c.l.b16 %v310
      %v1335 = vunpack.c.h.b16 %v310
      %v1336 = vunpack.c.l.b16 %v311
      %v1337 = vunpack.c.h.b16 %v311
      %v1338 = vunpack.c.l.b16 %v312
      %v1339 = vunpack.c.h.b16 %v312
      %v1340 = vunpack.c.l.b16 %v313
      %v1341 = vunpack.c.h.b16 %v313
      %v1342 = vunpack.c.l.b16 %v314
      %v1343 = vunpack.c.h.b16 %v314
      %v1344 = vunpack.c.l.b16 %v315
      %v1345 = vunpack.c.h.b16 %v315
      %v1346 = vunpack.c.l.b16 %v316
      %v1347 = vunpack.c.h.b16 %v316
      %v1348 = vunpack.c.l.b16 %v317
      %v1349 = vunpack.c.h.b16 %v317
      %v1350 = vunpack.c.l.b16 %v318
      %v1351 = vunpack.c.h.b16 %v318
      %v1352 = vunpack.c.l.b16 %v319
      %v1353 = vunpack.c.h.b16 %v319
      %v1354 = vunpack.c.l.b16 %v320
      %v1355 = vunpack.c.h.b16 %v320
      %v1356 = vunpack.c.l.b16 %v321
      %v1357 = vunpack.c.h.b16 %v321
      %v1358 = vunpack.c.l.b16 %v322
      %v1359 = vunpack.c.h.b16 %v322
      %v1360 = vunpack.c.l.b16 %v323
      %v1361 = vunpack.c.h.b16 %v323
      %v1362 = vunpack.c.l.b16 %v324
      %v1363 = vunpack.c.h.b16 %v324
      %v1364 = vunpack.c.l.b16 %v325
      %v1365 = vunpack.c.h.b16 %v325
      %v1366 = vunpack.c.l.b16 %v326
      %v1367 = vunpack.c.h.b16 %v326
      %v1368 = vunpack.c.l.b16 %v327
      %v1369 = vunpack.c.h.b16 %v327
      %v1370 = vunpack.c.l.b16 %v328
      %v1371 = vunpack.c.h.b16 %v328
      %v1372 = vunpack.c.l.b16 %v329
      %v1373 = vunpack.c.h.b16 %v329
      %v1374 = vunpack.c.l.b16 %v330
      %v1375 = vunpack.c.h.b16 %v330
      %v1376 = vunpack.c.l.b16 %v331
      %v1377 = vunpack.c.h.b16 %v331
      %v1378 = vunpack.c.l.b16 %v332
      %v1379 = vunpack.c.h.b16 %v332
      %v1380 = vunpack.c.l.b16 %v333
      %v1381 = vunpack.c.h.b16 %v333
      %v1382 = vunpack.c.l.b16 %v334
      %v1383 = vunpack.c.h.b16 %v334
      %v1384 = vunpack.c.l.b16 %v335
      %v1385 = vunpack.c.h.b16 %v335
      %v1386 = vunpack.c.l.b16 %v336
      %v1387 = vunpack.c.h.b16 %v336
      %v1388 = vunpack.c.l.b16 %v337
      %v1389 = vunpack.c.h.b16 %v337
      %v1390 = vunpack.c.l.b16 %v338
      %v1391 = vunpack.c.h.b16 %v338
      %v1392 = vunpack.c.l.b16 %v339
      %v1393 = vunpack.c.h.b16 %v339
      %v1394 = vunpack.c.l.b16 %v340
      %v1395 = vunpack.c.h.b16 %v340
      %v1396 = vunpack.c.l.b16 %v341
      %v1397 = vunpack.c.h.b16 %v341
      %v1398 = vunpack.c.l.b16 %v342
      %v1399 = vunpack.c.h.b16 %v342
      %v1400 = vunpack.c.l.b16 %v343
      %v1401 = vunpack.c.h.b16 %v343
      %v1402 = vunpack.c.l.b16 %v344
      %v1403 = vunpack.c.h.b16 %v344
      %v1404 = vunpack.c.l.b16 %v345
      %v1405 = vunpack.c.h.b16 %v345
      %v1406 = vunpack.c.l.b16 %v346
      %v1407 = vunpack.c.h.b16 %v346
      %v1408 = vunpack.c.l.b16 %v347
      %v1409 = vunpack.c.h.b16 %v347
      %v1410 = vunpack.c.l.b16 %v348
      %v1411 = vunpack.c.h.b16 %v348
      %v1412 = vunpack.c.l.b16 %v349
      %v1413 = vunpack.c.h.b16 %v349
      %v1414 = vunpack.c.l.b16 %v350
      %v1415 = vunpack.c.h.b16 %v350
      %v1416 = vunpack.c.l.b16 %v351
      %v1417 = vunpack.c.h.b16 %v351
      %v1418 = vunpack.c.l.b16 %v352
      %v1419 = vunpack.c.h.b16 %v352
      %v1420 = vunpack.c.l.b16 %v353
      %v1421 = vunpack.c.h.b16 %v353
      %v1422 = vunpack.c.l.b16 %v354
      %v1423 = vunpack.c.h.b16 %v354
      %v1424 = vunpack.c.l.b16 %v355
      %v1425 = vunpack.c.h.b16 %v355
      %v1426 = vunpack.c.l.b16 %v356
      %v1427 = vunpack.c.h.b16 %v356
      %v1428 = vunpack.c.l.b16 %v357
      %v1429 = vunpack.c.h.b16 %v357
      %v1430 = vunpack.c.l.b16 %v358
      %v1431 = vunpack.c.h.b16 %v358
      %v1432 = vunpack.c.l.b16 %v359
      %v1433 = vunpack.c.h.b16 %v359
      %v1434 = vunpack.c.l.b16 %v360
      %v1435 = vunpack.c.h.b16 %v360
      %v1436 = vunpack.c.l.b16 %v361
      %v1437 = vunpack.c.h.b16 %v361
      %v1438 = vunpack.c.l.b16 %v362
      %v1439 = vunpack.c.h.b16 %v362
      %v1440 = vunpack.c.l.b16 %v363
      %v1441 = vunpack.c.h.b16 %v363
      %v1442 = vunpack.c.l.b16 %v364
      %v1443 = vunpack.c.h.b16 %v364
      %v1444 = vunpack.c.l.b16 %v365
      %v1445 = vunpack.c.h.b16 %v365
      %v1446 = vunpack.c.l.b16 %v366
      %v1447 = vunpack.c.h.b16 %v366
      %v1448 = vunpack.c.l.b16 %v367
      %v1449 = vunpack.c.h.b16 %v367
      %v1450 = vunpack.c.l.b16 %v368
      %v1451 = vunpack.c.h.b16 %v368
      %v1452 = vunpack.c.l.b16 %v369
      %v1453 = vunpack.c.h.b16 %v369
      %v1454 = vunpack.c.l.b16 %v370
      %v1455 = vunpack.c.h.b16 %v370
      %v1456 = vunpack.c.l.b16 %v371
      %v1457 = vunpack.c.h.b16 %v371
      %v1458 = vunpack.c.l.b16 %v372
      %v1459 = vunpack.c.h.b16 %v372
      %v1460 = vunpack.c.l.b16 %v373
      %v1461 = vunpack.c.h.b16 %v373
      %v1462 = vunpack.c.l.b16 %v374
      %v1463 = vunpack.c.h.b16 %v374
      %v1464 = vunpack.c.l.b16 %v375
      %v1465 = vunpack.c.h.b16 %v375
      %v1466 = vunpack.c.l.b16 %v376
      %v1467 = vunpack.c.h.b16 %v376
      %v1468 = vunpack.c.l.b16 %v377
      %v1469 = vunpack.c.h.b16 %v377
      %v1470 = vunpack.c.l.b16 %v378
      %v1471 = vunpack.c.h.b16 %v378
      %v1472 = vunpack.c.l.b16 %v379
      %v1473 = vunpack.c.h.b16 %v379
      %v1474 = vunpack.c.l.b16 %v380
      %v1475 = vunpack.c.h.b16 %v380
      %v1476 = vunpack.c.l.b16 %v381
      %v1477 = vunpack.c.h.b16 %v381
      %v1478 = vunpack.c.l.b16 %v382
      %v1479 = vunpack.c.h.b16 %v382
      %v1480 = vunpack.c.l.b16 %v383
      %v1481 = vunpack.c.h.b16 %v383
      %v1482 = vunpack.c.l.b16 %v384
      %v1483 = vunpack.c.h.b16 %v384
      %v1484 = vunpack.c.l.b16 %v385
      %v1485 = vunpack.c.h.b16 %v385
      %v1486 = vunpack.c.l.b16 %v386
      %v1487 = vunpack.c.h.b16 %v386
      %v1488 = vunpack.c.l.b16 %v387
      %v1489 = vunpack.c.h.b16 %v387
      %v1490 = vunpack.c.l.b16 %v388
      %v1491 = vunpack.c.h.b16 %v388
      %v1492 = vunpack.c.l.b16 %v389
      %v1493 = vunpack.c.h.b16 %v389
      %v1494 = vunpack.c.l.b16 %v390
      %v1495 = vunpack.c.h.b16 %v390
      %v1496 = vunpack.c.l.b16 %v391
      %v1497 = vunpack.c.h.b16 %v391
      %v1498 = vunpack.c.l.b16 %v392
      %v1499 = vunpack.c.h.b16 %v392
      %v1500 = vunpack.c.l.b16 %v393
      %v1501 = vunpack.c.h.b16 %v393
      %v1502 = vunpack.c.l.b16 %v394
      %v1503 = vunpack.c.h.b16 %v394
      %v1504 = vunpack.c.l.b16 %v395
      %v1505 = vunpack.c.h.b16 %v395
      %v1506 = vunpack.c.l.b16 %v396
      %v1507 = vunpack.c.h.b16 %v396
      %v1508 = vunpack.c.l.b16 %v397
      %v1509 = vunpack.c.h.b16 %v397
      %v1510 = vunpack.c.l.b16 %v398
      %v1511 = vunpack.c.h.b16 %v398
      %v1512 = vunpack.c.l.b16 %v399
      %v1513 = vunpack.c.h.b16 %v399
      %v1514 = vunpack.c.l.b16 %v400
      %v1515 = vunpack.c.h.b16 %v400
      %v1516 = vunpack.c.l.b16 %v401
      %v1517 = vunpack.c.h.b16 %v401
      %v1518 = vunpack.c.l.b16 %v402
      %v1519 = vunpack.c.h.b16 %v402
      %v1520 = vunpack.c.l.b16 %v403
      %v1521 = vunpack.c.h.b16 %v403
      %v1522 = vunpack.c.l.b16 %v404
      %v1523 = vunpack.c.h.b16 %v404
      %v1524 = vunpack.c.l.b16 %v405
      %v1525 = vunpack.c.h.b16 %v405
      %v1526 = vunpack.c.l.b16 %v406
      %v1527 = vunpack.c.h.b16 %v406
      %v1528 = vunpack.c.l.b16 %v407
      %v1529 = vunpack.c.h.b16 %v407
      %v1530 = vunpack.c.l.b16 %v408
      %v1531 = vunpack.c.h.b16 %v408
      %v1532 = vunpack.c.l.b16 %v409
      %v1533 = vunpack.c.h.b16 %v409
      %v1534 = vunpack.c.l.b16 %v410
      %v1535 = vunpack.c.h.b16 %v410
      %v1536 = vunpack.c.l.b16 %v411
      %v1537 = vunpack.c.h.b16 %v411
      %v1538 = vunpack.c.l.b16 %v412
      %v1539 = vunpack.c.h.b16 %v412
      %v1540 = vunpack.c.l.b16 %v413
      %v1541 = vunpack.c.h.b16 %v413
      %v1542 = vunpack.c.l.b16 %v414
      %v1543 = vunpack.c.h.b16 %v414
      %v1544 = vunpack.c.l.b16 %v415
      %v1545 = vunpack.c.h.b16 %v415
      %v1546 = vunpack.c.l.b16 %v416
      %v1547 = vunpack.c.h.b16 %v416
      %v1548 = vunpack.c.l.b16 %v417
      %v1549 = vunpack.c.h.b16 %v417
      %v1550 = vunpack.c.l.b16 %v418
      %v1551 = vunpack.c.h.b16 %v418
      %v1552 = vunpack.c.l.b16 %v419
      %v1553 = vunpack.c.h.b16 %v419
      %v1554 = vunpack.c.l.b16 %v420
      %v1555 = vunpack.c.h.b16 %v420
      %v1556 = vunpack.c.l.b16 %v421
      %v1557 = vunpack.c.h.b16 %v421
      %v1558 = vunpack.c.l.b16 %v422
      %v1559 = vunpack.c.h.b16 %v422
      %v1560 = vunpack.c.l.b16 %v423
      %v1561 = vunpack.c.h.b16 %v423
      %v1562 = vunpack.c.l.b16 %v424
      %v1563 = vunpack.c.h.b16 %v424
      %v1564 = vunpack.c.l.b16 %v425
      %v1565 = vunpack.c.h.b16 %v425
      %v1566 = vunpack.c.l.b16 %v426
      %v1567 = vunpack.c.h.b16 %v426
      %v1568 = vunpack.c.l.b16 %v427
      %v1569 = vunpack.c.h.b16 %v427
      %v1570 = vunpack.c.l.b16 %v428
      %v1571 = vunpack.c.h.b16 %v428
      %v1572 = vunpack.c.l.b16 %v429
      %v1573 = vunpack.c.h.b16 %v429
      %v1574 = vunpack.c.l.b16 %v430
      %v1575 = vunpack.c.h.b16 %v430
      %v1576 = vunpack.c.l.b16 %v431
      %v1577 = vunpack.c.h.b16 %v431
      %v1578 = vunpack.c.l.b16 %v432
      %v1579 = vunpack.c.h.b16 %v432
      %v1580 = vunpack.c.l.b16 %v433
      %v1581 = vunpack.c.h.b16 %v433
      %v1582 = vunpack.c.l.b16 %v434
      %v1583 = vunpack.c.h.b16 %v434
      %v1584 = vunpack.c.l.b16 %v435
      %v1585 = vunpack.c.h.b16 %v435
      %v1586 = vunpack.c.l.b16 %v436
      %v1587 = vunpack.c.h.b16 %v436
      %v1588 = vunpack.c.l.b16 %v437
      %v1589 = vunpack.c.h.b16 %v437
      %v1590 = vunpack.c.l.b16 %v438
      %v1591 = vunpack.c.h.b16 %v438
      %v1592 = vunpack.c.l.b16 %v439
      %v1593 = vunpack.c.h.b16 %v439
      %v1594 = vunpack.c.l.b16 %v440
      %v1595 = vunpack.c.h.b16 %v440
      %v1596 = vunpack.c.l.b16 %v441
      %v1597 = vunpack.c.h.b16 %v441
      %v1598 = vunpack.c.l.b16 %v442
      %v1599 = vunpack.c.h.b16 %v442
      %v1600 = vunpack.c.l.b16 %v443
      %v1601 = vunpack.c.h.b16 %v443
      %v1602 = vunpack.c.l.b16 %v444
      %v1603 = vunpack.c.h.b16 %v444
      %v1604 = vunpack.c.l.b16 %v445
      %v1605 = vunpack.c.h.b16 %v445
      %v1606 = vunpack.c.l.b16 %v446
      %v1607 = vunpack.c.h.b16 %v446
      %v1608 = vunpack.c.l.b16 %v447
      %v1609 = vunpack.c.h.b16 %v447
      %v1610 = vunpack.c.l.b16 %v448
      %v1611 = vunpack.c.h.b16 %v448
      %v1612 = vunpack.c.l.b16 %v449
      %v1613 = vunpack.c.h.b16 %v449
      %v1614 = vunpack.c.l.b16 %v450
      %v1615 = vunpack.c.h.b16 %v450
      %v1616 = vunpack.c.l.b16 %v451
      %v1617 = vunpack.c.h.b16 %v451
      %v1618 = vunpack.c.l.b16 %v452
      %v1619 = vunpack.c.h.b16 %v452
      %v1620 = vunpack.c.l.b16 %v453
      %v1621 = vunpack.c.h.b16 %v453
      %v1622 = vunpack.c.l.b16 %v454
      %v1623 = vunpack.c.h.b16 %v454
      %v1624 = vunpack.c.l.b16 %v455
      %v1625 = vunpack.c.h.b16 %v455
      %v1626 = vunpack.c.l.b16 %v456
      %v1627 = vunpack.c.h.b16 %v456
      %v1628 = vunpack.c.l.b16 %v457
      %v1629 = vunpack.c.h.b16 %v457
      %v1630 = vunpack.c.l.b16 %v458
      %v1631 = vunpack.c.h.b16 %v458
      %v1632 = vunpack.c.l.b16 %v459
      %v1633 = vunpack.c.h.b16 %v459
      %v1634 = vunpack.c.l.b16 %v460
      %v1635 = vunpack.c.h.b16 %v460
      %v1636 = vunpack.c.l.b16 %v461
      %v1637 = vunpack.c.h.b16 %v461
      %v1638 = vunpack.c.l.b16 %v462
      %v1639 = vunpack.c.h.b16 %v462
      %v1640 = vunpack.c.l.b16 %v463
      %v1641 = vunpack.c.h.b16 %v463
      %v1642 = vunpack.c.l.b16 %v464
      %v1643 = vunpack.c.h.b16 %v464
      %v1644 = vunpack.c.l.b16 %v465
      %v1645 = vunpack.c.h.b16 %v465
      %v1646 = vunpack.c.l.b16 %v466
      %v1647 = vunpack.c.h.b16 %v466
      %v1648 = vunpack.c.l.b16 %v467
      %v1649 = vunpack.c.h.b16 %v467
      %v1650 = vunpack.c.l.b16 %v468
      %v1651 = vunpack.c.h.b16 %v468
      %v1652 = vunpack.c.l.b16 %v469
      %v1653 = vunpack.c.h.b16 %v469
      %v1654 = vunpack.c.l.b16 %v470
      %v1655 = vunpack.c.h.b16 %v470
      %v1656 = vunpack.c.l.b16 %v471
      %v1657 = vunpack.c.h.b16 %v471
      %v1658 = vunpack.c.l.b16 %v472
      %v1659 = vunpack.c.h.b16 %v472
      %v1660 = vunpack.c.l.b16 %v473
      %v1661 = vunpack.c.h.b16 %v473
      %v1662 = vunpack.c.l.b16 %v474
      %v1663 = vunpack.c.h.b16 %v474
      %v1664 = vunpack.c.l.b16 %v475
      %v1665 = vunpack.c.h.b16 %v475
      %v1666 = vunpack.c.l.b16 %v476
      %v1667 = vunpack.c.h.b16 %v476
      %v1668 = vunpack.c.l.b16 %v477
      %v1669 = vunpack.c.h.b16 %v477
      %v1670 = vunpack.c.l.b16 %v478
      %v1671 = vunpack.c.h.b16 %v478
      %v1672 = vunpack.c.l.b16 %v479
      %v1673 = vunpack.c.h.b16 %v479
      %v1674 = vunpack.c.l.b16 %v480
      %v1675 = vunpack.c.h.b16 %v480
      %v1676 = vunpack.c.l.b16 %v481
      %v1677 = vunpack.c.h.b16 %v481
      %v1678 = vunpack.c.l.b16 %v482
      %v1679 = vunpack.c.h.b16 %v482
      %v1680 = vunpack.c.l.b16 %v483
      %v1681 = vunpack.c.h.b16 %v483
      %v1682 = vunpack.c.l.b16 %v484
      %v1683 = vunpack.c.h.b16 %v484
      %v1684 = vunpack.c.l.b16 %v485
      %v1685 = vunpack.c.h.b16 %v485
      %v1686 = vunpack.c.l.b16 %v486
      %v1687 = vunpack.c.h.b16 %v486
      %v1688 = vunpack.c.l.b16 %v487
      %v1689 = vunpack.c.h.b16 %v487
      %v1690 = vunpack.c.l.b16 %v488
      %v1691 = vunpack.c.h.b16 %v488
      %v1692 = vunpack.c.l.b16 %v489
      %v1693 = vunpack.c.h.b16 %v489
      %v1694 = vunpack.c.l.b16 %v490
      %v1695 = vunpack.c.h.b16 %v490
      %v1696 = vunpack.c.l.b16 %v491
      %v1697 = vunpack.c.h.b16 %v491
      %v1698 = vunpack.c.l.b16 %v492
      %v1699 = vunpack.c.h.b16 %v492
      %v1700 = vunpack.c.l.b16 %v493
      %v1701 = vunpack.c.h.b16 %v493
      %v1702 = vunpack.c.l.b16 %v494
      %v1703 = vunpack.c.h.b16 %v494
      %v1704 = vunpack.c.l.b16 %v495
      %v1705 = vunpack.c.h.b16 %v495
      %v1706 = vunpack.c.l.b16 %v496
      %v1707 = vunpack.c.h.b16 %v496
      %v1708 = vunpack.c.l.b16 %v497
      %v1709 = vunpack.c.h.b16 %v497
      %v1710 = vunpack.c.l.b16 %v498
      %v1711 = vunpack.c.h.b16 %v498
      %v1712 = vunpack.c.l.b16 %v499
      %v1713 = vunpack.c.h.b16 %v499
      %v1714 = vunpack.c.l.b16 %v500
      %v1715 = vunpack.c.h.b16 %v500
      %v1716 = vunpack.c.l.b16 %v501
      %v1717 = vunpack.c.h.b16 %v501
      %v1718 = vunpack.c.l.b16 %v502
      %v1719 = vunpack.c.h.b16 %v502
      %v1720 = vunpack.c.l.b16 %v503
      %v1721 = vunpack.c.h.b16 %v503
      %v1722 = vunpack.c.l.b16 %v504
      %v1723 = vunpack.c.h.b16 %v504
      %v1724 = vunpack.c.l.b16 %v505
      %v1725 = vunpack.c.h.b16 %v505
      %v1726 = vunpack.c.l.b16 %v506
      %v1727 = vunpack.c.h.b16 %v506
      %v1728 = vunpack.c.l.b16 %v507
      %v1729 = vunpack.c.h.b16 %v507
      %v1730 = vunpack.c.l.b16 %v508
      %v1731 = vunpack.c.h.b16 %v508
      %v1732 = vunpack.c.l.b16 %v509
      %v1733 = vunpack.c.h.b16 %v509
      %v1734 = vunpack.c.l.b16 %v510
      %v1735 = vunpack.c.h.b16 %v510
      %v1736 = vunpack.c.l.b16 %v511
      %v1737 = vunpack.c.h.b16 %v511
      %v1738 = vunpack.c.l.b16 %v512
      %v1739 = vunpack.c.h.b16 %v512
      %v1740 = vunpack.c.l.b16 %v513
      %v1741 = vunpack.c.h.b16 %v513
      %v1742 = vunpack.c.l.b16 %v514
      %v1743 = vunpack.c.h.b16 %v514
      %v1744 = vunpack.c.l.b16 %v515
      %v1745 = vunpack.c.h.b16 %v515
      %v1746 = vunpack.c.l.b16 %v516
      %v1747 = vunpack.c.h.b16 %v516
      %v1748 = vunpack.c.l.b16 %v517
      %v1749 = vunpack.c.h.b16 %v517
      %v1750 = vunpack.c.l.b16 %v518
      %v1751 = vunpack.c.h.b16 %v518
      %v1752 = vunpack.c.l.b16 %v519
      %v1753 = vunpack.c.h.b16 %v519
      %v1754 = vunpack.c.l.b16 %v520
      %v1755 = vunpack.c.h.b16 %v520
      %v1756 = vunpack.c.l.b16 %v521
      %v1757 = vunpack.c.h.b16 %v521
      %v1758 = vunpack.c.l.b16 %v522
      %v1759 = vunpack.c.h.b16 %v522
      %v1760 = vunpack.c.l.b16 %v523
      %v1761 = vunpack.c.h.b16 %v523
      %v1762 = vunpack.c.l.b16 %v524
      %v1763 = vunpack.c.h.b16 %v524
      %v1764 = vunpack.c.l.b16 %v525
      %v1765 = vunpack.c.h.b16 %v525
      %v1766 = vunpack.c.l.b16 %v526
      %v1767 = vunpack.c.h.b16 %v526
      %v1768 = vunpack.c.l.b16 %v527
      %v1769 = vunpack.c.h.b16 %v527
      %v1770 = vunpack.c.l.b16 %v528
      %v1771 = vunpack.c.h.b16 %v528
      %v1772 = vunpack.c.l.b16 %v529
      %v1773 = vunpack.c.h.b16 %v529
      %v1774 = vunpack.c.l.b16 %v530
      %v1775 = vunpack.c.h.b16 %v530
      %v1776 = vunpack.c.l.b16 %v531
      %v1777 = vunpack.c.h.b16 %v531
      %v1778 = vunpack.c.l.b16 %v532
      %v1779 = vunpack.c.h.b16 %v532
      %v1780 = vunpack.c.l.b16 %v533
      %v1781 = vunpack.c.h.b16 %v533
      %v1782 = vunpack.c.l.b16 %v534
      %v1783 = vunpack.c.h.b16 %v534
      %v1784 = vunpack.c.l.b16 %v535
      %v1785 = vunpack.c.h.b16 %v535
      %v1786 = vunpack.c.l.b16 %v536
      %v1787 = vunpack.c.h.b16 %v536
      %v1788 = vunpack.c.l.b16 %v537
      %v1789 = vunpack.c.h.b16 %v537
      %v1790 = vunpack.c.l.b16 %v538
      %v1791 = vunpack.c.h.b16 %v538
      %v1792 = vunpack.c.l.b16 %v539
      %v1793 = vunpack.c.h.b16 %v539
      %v1794 = vunpack.c.l.b16 %v540
      %v1795 = vunpack.c.h.b16 %v540
      %v1796 = vunpack.c.l.b16 %v541
      %v1797 = vunpack.c.h.b16 %v541
      %v1798 = vunpack.c.l.b16 %v542
      %v1799 = vunpack.c.h.b16 %v542
      %v1800 = vunpack.c.l.b16 %v543
      %v1801 = vunpack.c.h.b16 %v543
      %v1802 = vunpack.c.l.b16 %v544
      %v1803 = vunpack.c.h.b16 %v544
      %v1804 = vunpack.c.l.b16 %v545
      %v1805 = vunpack.c.h.b16 %v545
      %v1806 = vunpack.c.l.b16 %v546
      %v1807 = vunpack.c.h.b16 %v546
      %v1808 = vunpack.c.l.b16 %v547
      %v1809 = vunpack.c.h.b16 %v547
      %v1810 = vunpack.c.l.b16 %v548
      %v1811 = vunpack.c.h.b16 %v548
      %v1812 = vunpack.c.l.b16 %v549
      %v1813 = vunpack.c.h.b16 %v549
      %v1814 = vunpack.c.l.b16 %v550
      %v1815 = vunpack.c.h.b16 %v550
      %v1816 = vunpack.c.l.b16 %v551
      %v1817 = vunpack.c.h.b16 %v551
      %v1818 = vunpack.c.l.b16 %v552
      %v1819 = vunpack.c.h.b16 %v552
      %v1820 = vunpack.c.l.b16 %v553
      %v1821 = vunpack.c.h.b16 %v553
      %v1822 = vunpack.c.l.b16 %v554
      %v1823 = vunpack.c.h.b16 %v554
      %v1824 = vunpack.c.l.b16 %v555
      %v1825 = vunpack.c.h.b16 %v555
      %v1826 = vunpack.c.l.b16 %v556
      %v1827 = vunpack.c.h.b16 %v556
      %v1828 = vunpack.c.l.b16 %v557
      %v1829 = vunpack.c.h.b16 %v557
      %v1830 = vunpack.c.l.b16 %v558
      %v1831 = vunpack.c.h.b16 %v558
      %v1832 = vunpack.c.l.b16 %v559
      %v1833 = vunpack.c.h.b16 %v559
      %v1834 = vunpack.c.l.b16 %v560
      %v1835 = vunpack.c.h.b16 %v560
      %v1836 = vunpack.c.l.b16 %v561
      %v1837 = vunpack.c.h.b16 %v561
      %v1838 = vunpack.c.l.b16 %v562
      %v1839 = vunpack.c.h.b16 %v562
      %v1840 = vunpack.c.l.b16 %v563
      %v1841 = vunpack.c.h.b16 %v563
      %v1842 = vunpack.c.l.b16 %v564
      %v1843 = vunpack.c.h.b16 %v564
      %v1844 = vunpack.c.l.b16 %v565
      %v1845 = vunpack.c.h.b16 %v565
      %v1846 = vunpack.c.l.b16 %v566
      %v1847 = vunpack.c.h.b16 %v566
      %v1848 = vunpack.c.l.b16 %v567
      %v1849 = vunpack.c.h.b16 %v567
      %v1850 = vunpack.c.l.b16 %v568
      %v1851 = vunpack.c.h.b16 %v568
      %v1852 = vunpack.c.l.b16 %v569
      %v1853 = vunpack.c.h.b16 %v569
      %v1854 = vunpack.c.l.b16 %v570
      %v1855 = vunpack.c.h.b16 %v570
      %v1856 = vunpack.c.l.b16 %v571
      %v1857 = vunpack.c.h.b16 %v571
      %v1858 = vunpack.c.l.b16 %v572
      %v1859 = vunpack.c.h.b16 %v572
      %v1860 = vunpack.c.l.b16 %v573
      %v1861 = vunpack.c.h.b16 %v573
      %v1862 = vunpack.c.l.b16 %v574
      %v1863 = vunpack.c.h.b16 %v574
      %v1864 = vunpack.c.l.b16 %v575
      %v1865 = vunpack.c.h.b16 %v575
      %v1866 = vunpack.c.l.b16 %v576
      %v1867 = vunpack.c.h.b16 %v576
      %v1868 = vunpack.c.l.b16 %v577
      %v1869 = vunpack.c.h.b16 %v577
      %v1870 = vunpack.c.l.b16 %v578
      %v1871 = vunpack.c.h.b16 %v578
      %v1872 = vunpack.c.l.b16 %v579
      %v1873 = vunpack.c.h.b16 %v579
      %v1874 = vunpack.c.l.b16 %v580
      %v1875 = vunpack.c.h.b16 %v580
      %v1876 = vunpack.c.l.b16 %v581
      %v1877 = vunpack.c.h.b16 %v581
      %v1878 = vunpack.c.l.b16 %v582
      %v1879 = vunpack.c.h.b16 %v582
      %v1880 = vunpack.c.l.b16 %v583
      %v1881 = vunpack.c.h.b16 %v583
      %v1882 = vunpack.c.l.b16 %v584
      %v1883 = vunpack.c.h.b16 %v584
      %v1884 = vunpack.c.l.b16 %v585
      %v1885 = vunpack.c.h.b16 %v585
      %v1886 = vunpack.c.l.b16 %v586
      %v1887 = vunpack.c.h.b16 %v586
      %v1888 = vunpack.c.l.b16 %v587
      %v1889 = vunpack.c.h.b16 %v587
      %v1890 = vunpack.c.l.b16 %v588
      %v1891 = vunpack.c.h.b16 %v588
      %v1892 = vunpack.c.l.b16 %v589
      %v1893 = vunpack.c.h.b16 %v589
      %v1894 = vunpack.c.l.b16 %v590
      %v1895 = vunpack.c.h.b16 %v590
      %v1896 = vunpack.c.l.b16 %v591
      %v1897 = vunpack.c.h.b16 %v591
      %v1898 = vunpack.c.l.b16 %v592
      %v1899 = vunpack.c.h.b16 %v592
      %v1900 = vunpack.c.l.b16 %v593
      %v1901 = vunpack.c.h.b16 %v593
      %v1902 = vunpack.c.l.b16 %v594
      %v1903 = vunpack.c.h.b16 %v594
      %v1904 = vunpack.c.l.b16 %v595
      %v1905 = vunpack.c.h.b16 %v595
      %v1906 = vunpack.c.l.b16 %v596
      %v1907 = vunpack.c.h.b16 %v596
      %v1908 = vunpack.c.l.b16 %v597
      %v1909 = vunpack.c.h.b16 %v597
      %v1910 = vunpack.c.l.b16 %v598
      %v1911 = vunpack.c.h.b16 %v598
      %v1912 = vunpack.c.l.b16 %v599
      %v1913 = vunpack.c.h.b16 %v599
      %v1914 = vunpack.c.l.b16 %v600
      %v1915 = vunpack.c.h.b16 %v600
      %v1916 = vunpack.c.l.b16 %v601
      %v1917 = vunpack.c.h.b16 %v601
      %v1918 = vunpack.c.l.b16 %v602
      %v1919 = vunpack.c.h.b16 %v602
      %v1920 = vunpack.c.l.b16 %v603
      %v1921 = vunpack.c.h.b16 %v603
      %v1922 = vunpack.c.l.b16 %v604
      %v1923 = vunpack.c.h.b16 %v604
      %v1924 = vunpack.c.l.b16 %v605
      %v1925 = vunpack.c.h.b16 %v605
      %v1926 = vunpack.c.l.b16 %v606
      %v1927 = vunpack.c.h.b16 %v606
      %v1928 = vunpack.c.l.b16 %v607
      %v1929 = vunpack.c.h.b16 %v607
      %v1930 = vunpack.c.l.b16 %v608
      %v1931 = vunpack.c.h.b16 %v608
      %v1932 = vunpack.c.l.b16 %v609
      %v1933 = vunpack.c.h.b16 %v609
      %v1934 = vunpack.c.l.b16 %v610
      %v1935 = vunpack.c.h.b16 %v610
      %v1936 = vunpack.c.l.b16 %v611
      %v1937 = vunpack.c.h.b16 %v611
      %v1938 = vunpack.c.l.b16 %v612
      %v1939 = vunpack.c.h.b16 %v612
      %v1940 = vunpack.c.l.b16 %v613
      %v1941 = vunpack.c.h.b16 %v613
      %v1942 = vunpack.c.l.b16 %v614
      %v1943 = vunpack.c.h.b16 %v614
      %v1944 = vunpack.c.l.b16 %v615
      %v1945 = vunpack.c.h.b16 %v615
      %v1946 = vunpack.c.l.b16 %v616
      %v1947 = vunpack.c.h.b16 %v616
      %v1948 = vunpack.c.l.b16 %v617
      %v1949 = vunpack.c.h.b16 %v617
      %v1950 = vunpack.c.l.b16 %v618
      %v1951 = vunpack.c.h.b16 %v618
      %v1952 = vunpack.c.l.b16 %v619
      %v1953 = vunpack.c.h.b16 %v619
      %v1954 = vunpack.c.l.b16 %v620
      %v1955 = vunpack.c.h.b16 %v620
      %v1956 = vunpack.c.l.b16 %v621
      %v1957 = vunpack.c.h.b16 %v621
      %v1958 = vunpack.c.l.b16 %v622
      %v1959 = vunpack.c.h.b16 %v622
      %v1960 = vunpack.c.l.b16 %v623
      %v1961 = vunpack.c.h.b16 %v623
      %v1962 = vunpack.c.l.b16 %v624
      %v1963 = vunpack.c.h.b16 %v624
      %v1964 = vunpack.c.l.b16 %v625
      %v1965 = vunpack.c.h.b16 %v625
      %v1966 = vunpack.c.l.b16 %v626
      %v1967 = vunpack.c.h.b16 %v626
      %v1968 = vunpack.c.l.b16 %v627
      %v1969 = vunpack.c.h.b16 %v627
      %v1970 = vunpack.c.l.b16 %v628
      %v1971 = vunpack.c.h.b16 %v628
      %v1972 = vunpack.c.l.b16 %v629
      %v1973 = vunpack.c.h.b16 %v629
      %v1974 = vunpack.c.l.b16 %v630
      %v1975 = vunpack.c.h.b16 %v630
      %v1976 = vunpack.c.l.b16 %v631
      %v1977 = vunpack.c.h.b16 %v631
      %v1978 = vunpack.c.l.b16 %v632
      %v1979 = vunpack.c.h.b16 %v632
      %v1980 = vunpack.c.l.b16 %v633
      %v1981 = vunpack.c.h.b16 %v633
      %v1982 = vunpack.c.l.b16 %v634
      %v1983 = vunpack.c.h.b16 %v634
      %v1984 = vunpack.c.l.b16 %v635
      %v1985 = vunpack.c.h.b16 %v635
      %v1986 = vunpack.c.l.b16 %v636
      %v1987 = vunpack.c.h.b16 %v636
      %v1988 = vunpack.c.l.b16 %v637
      %v1989 = vunpack.c.h.b16 %v637
      %v1990 = vunpack.c.l.b16 %v638
      %v1991 = vunpack.c.h.b16 %v638
      %v1992 = vunpack.c.l.b16 %v639
      %v1993 = vunpack.c.h.b16 %v639
      %v1994 = vunpack.c.l.b16 %v640
      %v1995 = vunpack.c.h.b16 %v640
      %v1996 = vunpack.c.l.b16 %v641
      %v1997 = vunpack.c.h.b16 %v641
      %v1998 = vunpack.c.l.b16 %v642
      %v1999 = vunpack.c.h.b16 %v642
      %v2000 = vunpack.c.l.b16 %v643
      %v2001 = vunpack.c.h.b16 %v643
      %v2002 = vunpack.c.l.b16 %v644
      %v2003 = vunpack.c.h.b16 %v644
      %v2004 = vunpack.c.l.b16 %v645
      %v2005 = vunpack.c.h.b16 %v645
      %v2006 = vunpack.c.l.b16 %v646
      %v2007 = vunpack.c.h.b16 %v646
      %v2008 = vunpack.c.l.b16 %v647
      %v2009 = vunpack.c.h.b16 %v647
      %v2010 = vunpack.c.l.b16 %v648
      %v2011 = vunpack.c.h.b16 %v648
      %v2012 = vunpack.c.l.b16 %v649
      %v2013 = vunpack.c.h.b16 %v649
      %v2014 = vunpack.c.l.b16 %v650
      %v2015 = vunpack.c.h.b16 %v650
      %v2016 = vunpack.c.l.b16 %v651
      %v2017 = vunpack.c.h.b16 %v651
      %v2018 = vunpack.c.l.b16 %v652
      %v2019 = vunpack.c.h.b16 %v652
      %v2020 = vunpack.c.l.b16 %v653
      %v2021 = vunpack.c.h.b16 %v653
      %v2022 = vunpack.c.l.b16 %v654
      %v2023 = vunpack.c.h.b16 %v654
      %v2024 = vunpack.c.l.b16 %v655
      %v2025 = vunpack.c.h.b16 %v655
      %v2026 = vunpack.c.l.b16 %v656
      %v2027 = vunpack.c.h.b16 %v656
      %v2028 = vunpack.c.l.b16 %v657
      %v2029 = vunpack.c.h.b16 %v657
      %v2030 = vunpack.c.l.b16 %v658
      %v2031 = vunpack.c.h.b16 %v658
      %v2032 = vunpack.c.l.b16 %v659
      %v2033 = vunpack.c.h.b16 %v659
      %v2034 = vunpack.c.l.b16 %v660
      %v2035 = vunpack.c.h.b16 %v660
      %v2036 = vunpack.c.l.b16 %v661
      %v2037 = vunpack.c.h.b16 %v661
      %v2038 = vunpack.c.l.b16 %v662
      %v2039 = vunpack.c.h.b16 %v662
      %v2040 = vunpack.c.l.b16 %v663
      %v2041 = vunpack.c.h.b16 %v663
      %v2042 = vunpack.c.l.b16 %v664
      %v2043 = vunpack.c.h.b16 %v664
      %v2044 = vunpack.c.l.b16 %v665
      %v2045 = vunpack.c.h.b16 %v665
      %v2046 = vunpack.c.l.b16 %v666
      %v2047 = vunpack.c.h.b16 %v666
      %v2048 = vunpack.c.l.b16 %v667
      %v2049 = vunpack.c.h.b16 %v667
      %v2050 = vunpack.c.l.b16 %v668
      %v2051 = vunpack.c.h.b16 %v668
      %v2052 = vunpack.c.l.b16 %v669
      %v2053 = vunpack.c.h.b16 %v669
      %v2054 = vunpack.c.l.b16 %v670
      %v2055 = vunpack.c.h.b16 %v670
      %v2056 = vunpack.c.l.b16 %v671
      %v2057 = vunpack.c.h.b16 %v671
      %v2058 = vunpack.c.l.b16 %v672
      %v2059 = vunpack.c.h.b16 %v672
      %v2060 = vunpack.c.l.b16 %v673
      %v2061 = vunpack.c.h.b16 %v673
      %v2062 = vunpack.c.l.b16 %v674
      %v2063 = vunpack.c.h.b16 %v674
      %v2064 = vunpack.c.l.b16 %v675
      %v2065 = vunpack.c.h.b16 %v675
      %v2066 = vunpack.c.l.b16 %v676
      %v2067 = vunpack.c.h.b16 %v676
      %v2068 = vunpack.c.l.b16 %v677
      %v2069 = vunpack.c.h.b16 %v677
      %v2070 = vunpack.c.l.b16 %v678
      %v2071 = vunpack.c.h.b16 %v678
      %v2072 = vunpack.c.l.b16 %v679
      %v2073 = vunpack.c.h.b16 %v679
      %v2074 = vunpack.c.l.b16 %v680
      %v2075 = vunpack.c.h.b16 %v680
      %v2076 = vunpack.c.l.b16 %v681
      %v2077 = vunpack.c.h.b16 %v681
      %v2078 = vunpack.c.l.b16 %v682
      %v2079 = vunpack.c.h.b16 %v682
      %v2080 = vunpack.c.l.b16 %v683
      %v2081 = vunpack.c.h.b16 %v683
      %v2082 = vunpack.c.l.b16 %v684
      %v2083 = vunpack.c.h.b16 %v684
      %v2084 = vunpack.c.l.b16 %v685
      %v2085 = vunpack.c.h.b16 %v685
      %v2086 = vunpack.c.l.b16 %v686
      %v2087 = vunpack.c.h.b16 %v686
      %v2088 = vunpack.c.l.b16 %v687
      %v2089 = vunpack.c.h.b16 %v687
      %v2090 = vunpack.c.l.b16 %v688
      %v2091 = vunpack.c.h.b16 %v688
      %v2092 = vunpack.c.l.b16 %v689
      %v2093 = vunpack.c.h.b16 %v689
      %v2094 = vunpack.c.l.b16 %v690
      %v2095 = vunpack.c.h.b16 %v690
      %v2096 = vunpack.c.l.b16 %v691
      %v2097 = vunpack.c.h.b16 %v691
      %v2098 = vunpack.c.l.b16 %v692
      %v2099 = vunpack.c.h.b16 %v692
      %v2100 = vunpack.c.l.b16 %v693
      %v2101 = vunpack.c.h.b16 %v693
      %v2102 = vunpack.c.l.b16 %v694
      %v2103 = vunpack.c.h.b16 %v694
      %v2104 = vunpack.c.l.b16 %v695
      %v2105 = vunpack.c.h.b16 %v695
      %v2106 = vunpack.c.l.b16 %v696
      %v2107 = vunpack.c.h.b16 %v696
      %v2108 = vunpack.c.l.b16 %v697
      %v2109 = vunpack.c.h.b16 %v697
      %v2110 = vunpack.c.l.b16 %v698
      %v2111 = vunpack.c.h.b16 %v698
      %v2112 = vunpack.c.l.b16 %v699
      %v2113 = vunpack.c.h.b16 %v699
      %v2114 = vunpack.c.l.b16 %v700
      %v2115 = vunpack.c.h.b16 %v700
      %v2116 = vunpack.c.l.b16 %v701
      %v2117 = vunpack.c.h.b16 %v701
      %v2118 = vunpack.c.l.b16 %v702
      %v2119 = vunpack.c.h.b16 %v702
      %v2120 = vunpack.c.l.b16 %v703
      %v2121 = vunpack.c.h.b16 %v703
      %v2122 = vunpack.c.l.b16 %v704
      %v2123 = vunpack.c.h.b16 %v704
      %v2124 = vunpack.c.l.b16 %v705
      %v2125 = vunpack.c.h.b16 %v705
      %v2126 = vunpack.c.l.b16 %v706
      %v2127 = vunpack.c.h.b16 %v706
      %v2128 = vunpack.c.l.b16 %v707
      %v2129 = vunpack.c.h.b16 %v707
      %v2130 = vunpack.c.l.b16 %v708
      %v2131 = vunpack.c.h.b16 %v708
      %v2132 = vunpack.c.l.b16 %v709
      %v2133 = vunpack.c.h.b16 %v709
      %v2134 = vunpack.c.l.b16 %v710
      %v2135 = vunpack.c.h.b16 %v710
      %v2136 = vunpack.c.l.b16 %v711
      %v2137 = vunpack.c.h.b16 %v711
      %v2138 = vunpack.c.l.b16 %v712
      %v2139 = vunpack.c.h.b16 %v712
      %v2140 = vunpack.c.l.b16 %v713
      %v2141 = vunpack.c.h.b16 %v713
      %v2142 = vunpack.c.l.b16 %v714
      %v2143 = vunpack.c.h.b16 %v714
      %v2144 = vunpack.c.l.b16 %v715
      %v2145 = vunpack.c.h.b16 %v715
      %v2146 = vunpack.c.l.b16 %v716
      %v2147 = vunpack.c.h.b16 %v716
      %v2148 = vunpack.c.l.b16 %v717
      %v2149 = vunpack.c.h.b16 %v717
      %v2150 = vunpack.c.l.b16 %v718
      %v2151 = vunpack.c.h.b16 %v718
      %v2152 = vunpack.c.l.b16 %v719
      %v2153 = vunpack.c.h.b16 %v719
      %v2154 = vunpack.c.l.b16 %v720
      %v2155 = vunpack.c.h.b16 %v720
      %v2156 = vunpack.c.l.b16 %v721
      %v2157 = vunpack.c.h.b16 %v721
      %v2158 = vunpack.c.l.b16 %v722
      %v2159 = vunpack.c.h.b16 %v722
      %v2160 = vunpack.c.l.b16 %v723
      %v2161 = vunpack.c.h.b16 %v723
      %v2162 = vunpack.c.l.b16 %v724
      %v2163 = vunpack.c.h.b16 %v724
      %v2164 = vunpack.c.l.b16 %v725
      %v2165 = vunpack.c.h.b16 %v725
      %v2166 = vunpack.c.l.b16 %v726
      %v2167 = vunpack.c.h.b16 %v726
      %v2168 = vunpack.c.l.b16 %v727
      %v2169 = vunpack.c.h.b16 %v727
      %v2170 = vunpack.c.l.b16 %v728
      %v2171 = vunpack.c.h.b16 %v728
      %v2172 = vunpack.c.l.b16 %v729
      %v2173 = vunpack.c.h.b16 %v729
      %v2174 = vunpack.c.l.b16 %v730
      %v2175 = vunpack.c.h.b16 %v730
      %v2176 = vunpack.c.l.b16 %v731
      %v2177 = vunpack.c.h.b16 %v731
      %v2178 = vunpack.c.l.b16 %v732
      %v2179 = vunpack.c.h.b16 %v732
      %v2180 = vunpack.c.l.b16 %v733
      %v2181 = vunpack.c.h.b16 %v733
      %v2182 = vunpack.c.l.b16 %v734
      %v2183 = vunpack.c.h.b16 %v734
      %v2184 = vunpack.c.l.b16 %v735
      %v2185 = vunpack.c.h.b16 %v735
      %v2186 = vunpack.c.l.b16 %v736
      %v2187 = vunpack.c.h.b16 %v736
      %v2188 = vunpack.c.l.b16 %v737
      %v2189 = vunpack.c.h.b16 %v737
      %v2190 = vunpack.c.l.b16 %v738
      %v2191 = vunpack.c.h.b16 %v738
      %v2192 = vunpack.c.l.b16 %v739
      %v2193 = vunpack.c.h.b16 %v739
      %v2194 = vunpack.c.l.b16 %v740
      %v2195 = vunpack.c.h.b16 %v740
      %v2196 = vunpack.c.l.b16 %v741
      %v2197 = vunpack.c.h.b16 %v741
      %v2198 = vunpack.c.l.b16 %v742
      %v2199 = vunpack.c.h.b16 %v742
      %v2200 = vunpack.c.l.b16 %v743
      %v2201 = vunpack.c.h.b16 %v743
      %v2202 = vunpack.c.l.b16 %v744
      %v2203 = vunpack.c.h.b16 %v744
      %v2204 = vunpack.c.l.b16 %v745
      %v2205 = vunpack.c.h.b16 %v745
      %v2206 = vunpack.c.l.b16 %v746
      %v2207 = vunpack.c.h.b16 %v746
      %v2208 = vunpack.c.l.b16 %v747
      %v2209 = vunpack.c.h.b16 %v747
      %v2210 = vunpack.c.l.b16 %v748
      %v2211 = vunpack.c.h.b16 %v748
      %v2212 = vunpack.c.l.b16 %v749
      %v2213 = vunpack.c.h.b16 %v749
      %v2214 = vunpack.c.l.b16 %v750
      %v2215 = vunpack.c.h.b16 %v750
      %v2216 = vunpack.c.l.b16 %v751
      %v2217 = vunpack.c.h.b16 %v751
      %v2218 = vunpack.c.l.b16 %v752
      %v2219 = vunpack.c.h.b16 %v752
      %v2220 = vunpack.c.l.b16 %v753
      %v2221 = vunpack.c.h.b16 %v753
      %v2222 = vunpack.c.l.b16 %v754
      %v2223 = vunpack.c.h.b16 %v754
      %v2224 = vunpack.c.l.b16 %v755
      %v2225 = vunpack.c.h.b16 %v755
      %v2226 = vunpack.c.l.b16 %v756
      %v2227 = vunpack.c.h.b16 %v756
      %v2228 = vunpack.c.l.b16 %v757
      %v2229 = vunpack.c.h.b16 %v757
      %v2230 = vunpack.c.l.b16 %v758
      %v2231 = vunpack.c.h.b16 %v758
      %v2232 = vunpack.c.l.b16 %v759
      %v2233 = vunpack.c.h.b16 %v759
      %v2234 = vunpack.c.l.b16 %v760
      %v2235 = vunpack.c.h.b16 %v760
      %v2236 = vunpack.c.l.b16 %v761
      %v2237 = vunpack.c.h.b16 %v761
      %v2238 = vunpack.c.l.b16 %v762
      %v2239 = vunpack.c.h.b16 %v762
      %v2240 = vunpack.c.l.b16 %v763
      %v2241 = vunpack.c.h.b16 %v763
      %v2242 = vunpack.c.l.b16 %v764
      %v2243 = vunpack.c.h.b16 %v764
      %v2244 = vunpack.c.l.b16 %v765
      %v2245 = vunpack.c.h.b16 %v765
      %v2246 = vunpack.c.l.b16 %v766
      %v2247 = vunpack.c.h.b16 %v766
      %v2248 = vunpack.c.l.b16 %v767
      %v2249 = vunpack.c.h.b16 %v767
      %v2250 = vunpack.c.l.b16 %v768
      %v2251 = vunpack.c.h.b16 %v768
      %v2252 = vunpack.c.l.b16 %v769
      %v2253 = vunpack.c.h.b16 %v769
      %v2254 = vunpack.c.l.b16 %v770
      %v2255 = vunpack.c.h.b16 %v770
      %v2256 = vunpack.c.l.b16 %v771
      %v2257 = vunpack.c.h.b16 %v771
      %v2258 = vunpack.c.l.b16 %v772
      %v2259 = vunpack.c.h.b16 %v772
      %v2260 = vunpack.c.l.b16 %v773
      %v2261 = vunpack.c.h.b16 %v773
      %v2262 = vunpack.c.l.b16 %v774
      %v2263 = vunpack.c.h.b16 %v774
      %v2264 = vunpack.c.l.b16 %v775
      %v2265 = vunpack.c.h.b16 %v775
      %v2266 = vunpack.c.l.b16 %v776
      %v2267 = vunpack.c.h.b16 %v776
      %v2268 = vunpack.c.l.b16 %v777
      %v2269 = vunpack.c.h.b16 %v777
      %v2270 = vunpack.c.l.b16 %v778
      %v2271 = vunpack.c.h.b16 %v778
      %v2272 = vunpack.c.l.b16 %v779
      %v2273 = vunpack.c.h.b16 %v779
      %v2274 = vunpack.c.l.b16 %v780
      %v2275 = vunpack.c.h.b16 %v780
      %v2276 = vunpack.c.l.b16 %v781
      %v2277 = vunpack.c.h.b16 %v781
      %v2278 = vunpack.c.l.b16 %v782
      %v2279 = vunpack.c.h.b16 %v782
      %v2280 = vunpack.c.l.b16 %v783
      %v2281 = vunpack.c.h.b16 %v783
      %v2282 = vunpack.c.l.b16 %v784
      %v2283 = vunpack.c.h.b16 %v784
      %v2284 = vunpack.c.l.b16 %v785
      %v2285 = vunpack.c.h.b16 %v785
      %v2286 = vunpack.c.l.b16 %v786
      %v2287 = vunpack.c.h.b16 %v786
      %v2288 = vunpack.c.l.b16 %v787
      %v2289 = vunpack.c.h.b16 %v787
      %v2290 = vunpack.c.l.b16 %v788
      %v2291 = vunpack.c.h.b16 %v788
      %v2292 = vunpack.c.l.b16 %v789
      %v2293 = vunpack.c.h.b16 %v789
      %v2294 = vunpack.c.l.b16 %v790
      %v2295 = vunpack.c.h.b16 %v790
      %v2296 = vunpack.c.l.b16 %v791
      %v2297 = vunpack.c.h.b16 %v791
      %v2298 = vunpack.c.l.b16 %v792
      %v2299 = vunpack.c.h.b16 %v792
      %v2300 = vunpack.c.l.b16 %v793
      %v2301 = vunpack.c.h.b16 %v793
      %v2302 = vunpack.c.l.b16 %v794
      %v2303 = vunpack.c.h.b16 %v794
      %v2304 = vunpack.c.l.b16 %v795
      %v2305 = vunpack.c.h.b16 %v795
      %v2306 = vunpack.c.l.b16 %v796
      %v2307 = vunpack.c.h.b16 %v796
      %v2308 = vunpack.c.l.b16 %v797
      %v2309 = vunpack.c.h.b16 %v797
      %v2310 = vunpack.c.l.b16 %v798
      %v2311 = vunpack.c.h.b16 %v798
      %v2312 = vunpack.c.l.b16 %v799
      %v2313 = vunpack.c.h.b16 %v799
      %v2314 = vunpack.c.l.b16 %v800
      %v2315 = vunpack.c.h.b16 %v800
      %v2316 = vunpack.c.l.b16 %v801
      %v2317 = vunpack.c.h.b16 %v801
      %v2318 = vunpack.c.l.b16 %v802
      %v2319 = vunpack.c.h.b16 %v802
      %v2320 = vunpack.c.l.b16 %v803
      %v2321 = vunpack.c.h.b16 %v803
      %v2322 = vunpack.c.l.b16 %v804
      %v2323 = vunpack.c.h.b16 %v804
      %v2324 = vunpack.c.l.b16 %v805
      %v2325 = vunpack.c.h.b16 %v805
      %v2326 = vunpack.c.l.b16 %v806
      %v2327 = vunpack.c.h.b16 %v806
      %v2328 = vunpack.c.l.b16 %v807
      %v2329 = vunpack.c.h.b16 %v807
      %v2330 = vunpack.c.l.b16 %v808
      %v2331 = vunpack.c.h.b16 %v808
      %v2332 = vunpack.c.l.b16 %v809
      %v2333 = vunpack.c.h.b16 %v809
      %v2334 = vunpack.c.l.b16 %v810
      %v2335 = vunpack.c.h.b16 %v810
      %v2336 = vunpack.c.l.b16 %v811
      %v2337 = vunpack.c.h.b16 %v811
      %v2338 = vunpack.c.l.b16 %v812
      %v2339 = vunpack.c.h.b16 %v812
      %v2340 = vunpack.c.l.b16 %v813
      %v2341 = vunpack.c.h.b16 %v813
      %v2342 = vunpack.c.l.b16 %v814
      %v2343 = vunpack.c.h.b16 %v814
      %v2344 = vunpack.c.l.b16 %v815
      %v2345 = vunpack.c.h.b16 %v815
      %v2346 = vunpack.c.l.b16 %v816
      %v2347 = vunpack.c.h.b16 %v816
      %v2348 = vunpack.c.l.b16 %v817
      %v2349 = vunpack.c.h.b16 %v817
      %v2350 = vunpack.c.l.b16 %v818
      %v2351 = vunpack.c.h.b16 %v818
      %v2352 = vunpack.c.l.b16 %v819
      %v2353 = vunpack.c.h.b16 %v819
      %v2354 = vunpack.c.l.b16 %v820
      %v2355 = vunpack.c.h.b16 %v820
      %v2356 = vunpack.c.l.b16 %v821
      %v2357 = vunpack.c.h.b16 %v821
      %v2358 = vpack.c.b16 %v1336, %v1334
      %v2359 = vpack.c.b16 %v1337, %v1335
      %v2360 = vpack.c.b16 %v1340, %v1338
      %v2361 = vpack.c.b16 %v1341, %v1339
      %v2362 = vpack.c.b16 %v1344, %v1342
      %v2363 = vpack.c.b16 %v1345, %v1343
      %v2364 = vpack.c.b16 %v1348, %v1346
      %v2365 = vpack.c.b16 %v1349, %v1347
      %v2366 = vpack.c.b16 %v1352, %v1350
      %v2367 = vpack.c.b16 %v1353, %v1351
      %v2368 = vpack.c.b16 %v1356, %v1354
      %v2369 = vpack.c.b16 %v1357, %v1355
      %v2370 = vpack.c.b16 %v1360, %v1358
      %v2371 = vpack.c.b16 %v1361, %v1359
      %v2372 = vpack.c.b16 %v1364, %v1362
      %v2373 = vpack.c.b16 %v1365, %v1363
      %v2374 = vpack.c.b16 %v1368, %v1366
      %v2375 = vpack.c.b16 %v1369, %v1367
      %v2376 = vpack.c.b16 %v1372, %v1370
      %v2377 = vpack.c.b16 %v1373, %v1371
      %v2378 = vpack.c.b16 %v1376, %v1374
      %v2379 = vpack.c.b16 %v1377, %v1375
      %v2380 = vpack.c.b16 %v1380, %v1378
      %v2381 = vpack.c.b16 %v1381, %v1379
      %v2382 = vpack.c.b16 %v1384, %v1382
      %v2383 = vpack.c.b16 %v1385, %v1383
      %v2384 = vpack.c.b16 %v1388, %v1386
      %v2385 = vpack.c.b16 %v1389, %v1387
      %v2386 = vpack.c.b16 %v1392, %v1390
      %v2387 = vpack.c.b16 %v1393, %v1391
      %v2388 = vpack.c.b16 %v1396, %v1394
      %v2389 = vpack.c.b16 %v1397, %v1395
      %v2390 = vpack.c.b16 %v1400, %v1398
      %v2391 = vpack.c.b16 %v1401, %v1399
      %v2392 = vpack.c.b16 %v1404, %v1402
      %v2393 = vpack.c.b16 %v1405, %v1403
      %v2394 = vpack.c.b16 %v1408, %v1406
      %v2395 = vpack.c.b16 %v1409, %v1407
      %v2396 = vpack.c.b16 %v1412, %v1410
      %v2397 = vpack.c.b16 %v1413, %v1411
      %v2398 = vpack.c.b16 %v1416, %v1414
      %v2399 = vpack.c.b16 %v1417, %v1415
      %v2400 = vpack.c.b16 %v1420, %v1418
      %v2401 = vpack.c.b16 %v1421, %v1419
      %v2402 = vpack.c.b16 %v1424, %v1422
      %v2403 = vpack.c.b16 %v1425, %v1423
      %v2404 = vpack.c.b16 %v1428, %v1426
      %v2405 = vpack.c.b16 %v1429, %v1427
      %v2406 = vpack.c.b16 %v1432, %v1430
      %v2407 = vpack.c.b16 %v1433, %v1431
      %v2408 = vpack.c.b16 %v1436, %v1434
      %v2409 = vpack.c.b16 %v1437, %v1435
      %v2410 = vpack.c.b16 %v1440, %v1438
      %v2411 = vpack.c.b16 %v1441, %v1439
      %v2412 = vpack.c.b16 %v1444, %v1442
      %v2413 = vpack.c.b16 %v1445, %v1443
      %v2414 = vpack.c.b16 %v1448, %v1446
      %v2415 = vpack.c.b16 %v1449, %v1447
      %v2416 = vpack.c.b16 %v1452, %v1450
      %v2417 = vpack.c.b16 %v1453, %v1451
      %v2418 = vpack.c.b16 %v1456, %v1454
      %v2419 = vpack.c.b16 %v1457, %v1455
      %v2420 = vpack.c.b16 %v1460, %v1458
      %v2421 = vpack.c.b16 %v1461, %v1459
      %v2422 = vpack.c.b16 %v1464, %v1462
      %v2423 = vpack.c.b16 %v1465, %v1463
      %v2424 = vpack.c.b16 %v1468, %v1466
      %v2425 = vpack.c.b16 %v1469, %v1467
      %v2426 = vpack.c.b16 %v1472, %v1470
      %v2427 = vpack.c.b16 %v1473, %v1471
      %v2428 = vpack.c.b16 %v1476, %v1474
      %v2429 = vpack.c.b16 %v1477, %v1475
      %v2430 = vpack.c.b16 %v1480, %v1478
      %v2431 = vpack.c.b16 %v1481, %v1479
      %v2432 = vpack.c.b16 %v1484, %v1482
      %v2433 = vpack.c.b16 %v1485, %v1483
      %v2434 = vpack.c.b16 %v1488, %v1486
      %v2435 = vpack.c.b16 %v1489, %v1487
      %v2436 = vpack.c.b16 %v1492, %v1490
      %v2437 = vpack.c.b16 %v1493, %v1491
      %v2438 = vpack.c.b16 %v1496, %v1494
      %v2439 = vpack.c.b16 %v1497, %v1495
      %v2440 = vpack.c.b16 %v1500, %v1498
      %v2441 = vpack.c.b16 %v1501, %v1499
      %v2442 = vpack.c.b16 %v1504, %v1502
      %v2443 = vpack.c.b16 %v1505, %v1503
      %v2444 = vpack.c.b16 %v1508, %v1506
      %v2445 = vpack.c.b16 %v1509, %v1507
      %v2446 = vpack.c.b16 %v1512, %v1510
      %v2447 = vpack.c.b16 %v1513, %v1511
      %v2448 = vpack.c.b16 %v1516, %v1514
      %v2449 = vpack.c.b16 %v1517, %v1515
      %v2450 = vpack.c.b16 %v1520, %v1518
      %v2451 = vpack.c.b16 %v1521, %v1519
      %v2452 = vpack.c.b16 %v1524, %v1522
      %v2453 = vpack.c.b16 %v1525, %v1523
      %v2454 = vpack.c.b16 %v1528, %v1526
      %v2455 = vpack.c.b16 %v1529, %v1527
      %v2456 = vpack.c.b16 %v1532, %v1530
      %v2457 = vpack.c.b16 %v1533, %v1531
      %v2458 = vpack.c.b16 %v1536, %v1534
      %v2459 = vpack.c.b16 %v1537, %v1535
      %v2460 = vpack.c.b16 %v1540, %v1538
      %v2461 = vpack.c.b16 %v1541, %v1539
      %v2462 = vpack.c.b16 %v1544, %v1542
      %v2463 = vpack.c.b16 %v1545, %v1543
      %v2464 = vpack.c.b16 %v1548, %v1546
      %v2465 = vpack.c.b16 %v1549, %v1547
      %v2466 = vpack.c.b16 %v1552, %v1550
      %v2467 = vpack.c.b16 %v1553, %v1551
      %v2468 = vpack.c.b16 %v1556, %v1554
      %v2469 = vpack.c.b16 %v1557, %v1555
      %v2470 = vpack.c.b16 %v1560, %v1558
      %v2471 = vpack.c.b16 %v1561, %v1559
      %v2472 = vpack.c.b16 %v1564, %v1562
      %v2473 = vpack.c.b16 %v1565, %v1563
      %v2474 = vpack.c.b16 %v1568, %v1566
      %v2475 = vpack.c.b16 %v1569, %v1567
      %v2476 = vpack.c.b16 %v1572, %v1570
      %v2477 = vpack.c.b16 %v1573, %v1571
      %v2478 = vpack.c.b16 %v1576, %v1574
      %v2479 = vpack.c.b16 %v1577, %v1575
      %v2480 = vpack.c.b16 %v1580, %v1578
      %v2481 = vpack.c.b16 %v1581, %v1579
      %v2482 = vpack.c.b16 %v1584, %v1582
      %v2483 = vpack.c.b16 %v1585, %v1583
      %v2484 = vpack.c.b16 %v1588, %v1586
      %v2485 = vpack.c.b16 %v1589, %v1587
      %v2486 = vpack.c.b16 %v1592, %v1590
      %v2487 = vpack.c.b16 %v1593, %v1591
      %v2488 = vpack.c.b16 %v1596, %v1594
      %v2489 = vpack.c.b16 %v1597, %v1595
      %v2490 = vpack.c.b16 %v1600, %v1598
      %v2491 = vpack.c.b16 %v1601, %v1599
      %v2492 = vpack.c.b16 %v1604, %v1602
      %v2493 = vpack.c.b16 %v1605, %v1603
      %v2494 = vpack.c.b16 %v1608, %v1606
      %v2495 = vpack.c.b16 %v1609, %v1607
      %v2496 = vpack.c.b16 %v1612, %v1610
      %v2497 = vpack.c.b16 %v1613, %v1611
      %v2498 = vpack.c.b16 %v1616, %v1614
      %v2499 = vpack.c.b16 %v1617, %v1615
      %v2500 = vpack.c.b16 %v1620, %v1618
      %v2501 = vpack.c.b16 %v1621, %v1619
      %v2502 = vpack.c.b16 %v1624, %v1622
      %v2503 = vpack.c.b16 %v1625, %v1623
      %v2504 = vpack.c.b16 %v1628, %v1626
      %v2505 = vpack.c.b16 %v1629, %v1627
      %v2506 = vpack.c.b16 %v1632, %v1630
      %v2507 = vpack.c.b16 %v1633, %v1631
      %v2508 = vpack.c.b16 %v1636, %v1634
      %v2509 = vpack.c.b16 %v1637, %v1635
      %v2510 = vpack.c.b16 %v1640, %v1638
      %v2511 = vpack.c.b16 %v1641, %v1639
      %v2512 = vpack.c.b16 %v1644, %v1642
      %v2513 = vpack.c.b16 %v1645, %v1643
      %v2514 = vpack.c.b16 %v1648, %v1646
      %v2515 = vpack.c.b16 %v1649, %v1647
      %v2516 = vpack.c.b16 %v1652, %v1650
      %v2517 = vpack.c.b16 %v1653, %v1651
      %v2518 = vpack.c.b16 %v1656, %v1654
      %v2519 = vpack.c.b16 %v1657, %v1655
      %v2520 = vpack.c.b16 %v1660, %v1658
      %v2521 = vpack.c.b16 %v1661, %v1659
      %v2522 = vpack.c.b16 %v1664, %v1662
      %v2523 = vpack.c.b16 %v1665, %v1663
      %v2524 = vpack.c.b16 %v1668, %v1666
      %v2525 = vpack.c.b16 %v1669, %v1667
      %v2526 = vpack.c.b16 %v1672, %v1670
      %v2527 = vpack.c.b16 %v1673, %v1671
      %v2528 = vpack.c.b16 %v1676, %v1674
      %v2529 = vpack.c.b16 %v1677, %v1675
      %v2530 = vpack.c.b16 %v1680, %v1678
      %v2531 = vpack.c.b16 %v1681, %v1679
      %v2532 = vpack.c.b16 %v1684, %v1682
      %v2533 = vpack.c.b16 %v1685, %v1683
      %v2534 = vpack.c.b16 %v1688, %v1686
      %v2535 = vpack.c.b16 %v1689, %v1687
      %v2536 = vpack.c.b16 %v1692, %v1690
      %v2537 = vpack.c.b16 %v1693, %v1691
      %v2538 = vpack.c.b16 %v1696, %v1694
      %v2539 = vpack.c.b16 %v1697, %v1695
      %v2540 = vpack.c.b16 %v1700, %v1698
      %v2541 = vpack.c.b16 %v1701, %v1699
      %v2542 = vpack.c.b16 %v1704, %v1702
      %v2543 = vpack.c.b16 %v1705, %v1703
      %v2544 = vpack.c.b16 %v1708, %v1706
      %v2545 = vpack.c.b16 %v1709, %v1707
      %v2546 = vpack.c.b16 %v1712, %v1710
      %v2547 = vpack.c.b16 %v1713, %v1711
      %v2548 = vpack.c.b16 %v1716, %v1714
      %v2549 = vpack.c.b16 %v1717, %v1715
      %v2550 = vpack.c.b16 %v1720, %v1718
      %v2551 = vpack.c.b16 %v1721, %v1719
      %v2552 = vpack.c.b16 %v1724, %v1722
      %v2553 = vpack.c.b16 %v1725, %v1723
      %v2554 = vpack.c.b16 %v1728, %v1726
      %v2555 = vpack.c.b16 %v1729, %v1727
      %v2556 = vpack.c.b16 %v1732, %v1730
      %v2557 = vpack.c.b16 %v1733, %v1731
      %v2558 = vpack.c.b16 %v1736, %v1734
      %v2559 = vpack.c.b16 %v1737, %v1735
      %v2560 = vpack.c.b16 %v1740, %v1738
      %v2561 = vpack.c.b16 %v1741, %v1739
      %v2562 = vpack.c.b16 %v1744, %v1742
      %v2563 = vpack.c.b16 %v1745, %v1743
      %v2564 = vpack.c.b16 %v1748, %v1746
      %v2565 = vpack.c.b16 %v1749, %v1747
      %v2566 = vpack.c.b16 %v1752, %v1750
      %v2567 = vpack.c.b16 %v1753, %v1751
      %v2568 = vpack.c.b16 %v1756, %v1754
      %v2569 = vpack.c.b16 %v1757, %v1755
      %v2570 = vpack.c.b16 %v1760, %v1758
      %v2571 = vpack.c.b16 %v1761, %v1759
      %v2572 = vpack.c.b16 %v1764, %v1762
      %v2573 = vpack.c.b16 %v1765, %v1763
      %v2574 = vpack.c.b16 %v1768, %v1766
      %v2575 = vpack.c.b16 %v1769, %v1767
      %v2576 = vpack.c.b16 %v1772, %v1770
      %v2577 = vpack.c.b16 %v1773, %v1771
      %v2578 = vpack.c.b16 %v1776, %v1774
      %v2579 = vpack.c.b16 %v1777, %v1775
      %v2580 = vpack.c.b16 %v1780, %v1778
      %v2581 = vpack.c.b16 %v1781, %v1779
      %v2582 = vpack.c.b16 %v1784, %v1782
      %v2583 = vpack.c.b16 %v1785, %v1783
      %v2584 = vpack.c.b16 %v1788, %v1786
      %v2585 = vpack.c.b16 %v1789, %v1787
      %v2586 = vpack.c.b16 %v1792, %v1790
      %v2587 = vpack.c.b16 %v1793, %v1791
      %v2588 = vpack.c.b16 %v1796, %v1794
      %v2589 = vpack.c.b16 %v1797, %v1795
      %v2590 = vpack.c.b16 %v1800, %v1798
      %v2591 = vpack.c.b16 %v1801, %v1799
      %v2592 = vpack.c.b16 %v1804, %v1802
      %v2593 = vpack.c.b16 %v1805, %v1803
      %v2594 = vpack.c.b16 %v1808, %v1806
      %v2595 = vpack.c.b16 %v1809, %v1807
      %v2596 = vpack.c.b16 %v1812, %v1810
      %v2597 = vpack.c.b16 %v1813, %v1811
      %v2598 = vpack.c.b16 %v1816, %v1814
      %v2599 = vpack.c.b16 %v1817, %v1815
      %v2600 = vpack.c.b16 %v1820, %v1818
      %v2601 = vpack.c.b16 %v1821, %v1819
      %v2602 = vpack.c.b16 %v1824, %v1822
      %v2603 = vpack.c.b16 %v1825, %v1823
      %v2604 = vpack.c.b16 %v1828, %v1826
      %v2605 = vpack.c.b16 %v1829, %v1827
      %v2606 = vpack.c.b16 %v1832, %v1830
      %v2607 = vpack.c.b16 %v1833, %v1831
      %v2608 = vpack.c.b16 %v1836, %v1834
      %v2609 = vpack.c.b16 %v1837, %v1835
      %v2610 = vpack.c.b16 %v1840, %v1838
      %v2611 = vpack.c.b16 %v1841, %v1839
      %v2612 = vpack.c.b16 %v1844, %v1842
      %v2613 = vpack.c.b16 %v1845, %v1843
      %v2614 = vpack.c.b16 %v1848, %v1846
      %v2615 = vpack.c.b16 %v1849, %v1847
      %v2616 = vpack.c.b16 %v1852, %v1850
      %v2617 = vpack.c.b16 %v1853, %v1851
      %v2618 = vpack.c.b16 %v1856, %v1854
      %v2619 = vpack.c.b16 %v1857, %v1855
      %v2620 = vpack.c.b16 %v1860, %v1858
      %v2621 = vpack.c.b16 %v1861, %v1859
      %v2622 = vpack.c.b16 %v1864, %v1862
      %v2623 = vpack.c.b16 %v1865, %v1863
      %v2624 = vpack.c.b16 %v1868, %v1866
      %v2625 = vpack.c.b16 %v1869, %v1867
      %v2626 = vpack.c.b16 %v1872, %v1870
      %v2627 = vpack.c.b16 %v1873, %v1871
      %v2628 = vpack.c.b16 %v1876, %v1874
      %v2629 = vpack.c.b16 %v1877, %v1875
      %v2630 = vpack.c.b16 %v1880, %v1878
      %v2631 = vpack.c.b16 %v1881, %v1879
      %v2632 = vpack.c.b16 %v1884, %v1882
      %v2633 = vpack.c.b16 %v1885, %v1883
      %v2634 = vpack.c.b16 %v1888, %v1886
      %v2635 = vpack.c.b16 %v1889, %v1887
      %v2636 = vpack.c.b16 %v1892, %v1890
      %v2637 = vpack.c.b16 %v1893, %v1891
      %v2638 = vpack.c.b16 %v1896, %v1894
      %v2639 = vpack.c.b16 %v1897, %v1895
      %v2640 = vpack.c.b16 %v1900, %v1898
      %v2641 = vpack.c.b16 %v1901, %v1899
      %v2642 = vpack.c.b16 %v1904, %v1902
      %v2643 = vpack.c.b16 %v1905, %v1903
      %v2644 = vpack.c.b16 %v1908, %v1906
      %v2645 = vpack.c.b16 %v1909, %v1907
      %v2646 = vpack.c.b16 %v1912, %v1910
      %v2647 = vpack.c.b16 %v1913, %v1911
      %v2648 = vpack.c.b16 %v1916, %v1914
      %v2649 = vpack.c.b16 %v1917, %v1915
      %v2650 = vpack.c.b16 %v1920, %v1918
      %v2651 = vpack.c.b16 %v1921, %v1919
      %v2652 = vpack.c.b16 %v1924, %v1922
      %v2653 = vpack.c.b16 %v1925, %v1923
      %v2654 = vpack.c.b16 %v1928, %v1926
      %v2655 = vpack.c.b16 %v1929, %v1927
      %v2656 = vpack.c.b16 %v1932, %v1930
      %v2657 = vpack.c.b16 %v1933, %v1931
      %v2658 = vpack.c.b16 %v1936, %v1934
      %v2659 = vpack.c.b16 %v1937, %v1935
      %v2660 = vpack.c.b16 %v1940, %v1938
      %v2661 = vpack.c.b16 %v1941, %v1939
      %v2662 = vpack.c.b16 %v1944, %v1942
      %v2663 = vpack.c.b16 %v1945, %v1943
      %v2664 = vpack.c.b16 %v1948, %v1946
      %v2665 = vpack.c.b16 %v1949, %v1947
      %v2666 = vpack.c.b16 %v1952, %v1950
      %v2667 = vpack.c.b16 %v1953, %v1951
      %v2668 = vpack.c.b16 %v1956, %v1954
      %v2669 = vpack.c.b16 %v1957, %v1955
      %v2670 = vpack.c.b16 %v1960, %v1958
      %v2671 = vpack.c.b16 %v1961, %v1959
      %v2672 = vpack.c.b16 %v1964, %v1962
      %v2673 = vpack.c.b16 %v1965, %v1963
      %v2674 = vpack.c.b16 %v1968, %v1966
      %v2675 = vpack.c.b16 %v1969, %v1967
      %v2676 = vpack.c.b16 %v1972, %v1970
      %v2677 = vpack.c.b16 %v1973, %v1971
      %v2678 = vpack.c.b16 %v1976, %v1974
      %v2679 = vpack.c.b16 %v1977, %v1975
      %v2680 = vpack.c.b16 %v1980, %v1978
      %v2681 = vpack.c.b16 %v1981, %v1979
      %v2682 = vpack.c.b16 %v1984, %v1982
      %v2683 = vpack.c.b16 %v1985, %v1983
      %v2684 = vpack.c.b16 %v1988, %v1986
      %v2685 = vpack.c.b16 %v1989, %v1987
      %v2686 = vpack.c.b16 %v1992, %v1990
      %v2687 = vpack.c.b16 %v1993, %v1991
      %v2688 = vpack.c.b16 %v1996, %v1994
      %v2689 = vpack.c.b16 %v1997, %v1995
      %v2690 = vpack.c.b16 %v2000, %v1998
      %v2691 = vpack.c.b16 %v2001, %v1999
      %v2692 = vpack.c.b16 %v2004, %v2002
      %v2693 = vpack.c.b16 %v2005, %v2003
      %v2694 = vpack.c.b16 %v2008, %v2006
      %v2695 = vpack.c.b16 %v2009, %v2007
      %v2696 = vpack.c.b16 %v2012, %v2010
      %v2697 = vpack.c.b16 %v2013, %v2011
      %v2698 = vpack.c.b16 %v2016, %v2014
      %v2699 = vpack.c.b16 %v2017, %v2015
      %v2700 = vpack.c.b16 %v2020, %v2018
      %v2701 = vpack.c.b16 %v2021, %v2019
      %v2702 = vpack.c.b16 %v2024, %v2022
      %v2703 = vpack.c.b16 %v2025, %v2023
      %v2704 = vpack.c.b16 %v2028, %v2026
      %v2705 = vpack.c.b16 %v2029, %v2027
      %v2706 = vpack.c.b16 %v2032, %v2030
      %v2707 = vpack.c.b16 %v2033, %v2031
      %v2708 = vpack.c.b16 %v2036, %v2034
      %v2709 = vpack.c.b16 %v2037, %v2035
      %v2710 = vpack.c.b16 %v2040, %v2038
      %v2711 = vpack.c.b16 %v2041, %v2039
      %v2712 = vpack.c.b16 %v2044, %v2042
      %v2713 = vpack.c.b16 %v2045, %v2043
      %v2714 = vpack.c.b16 %v2048, %v2046
      %v2715 = vpack.c.b16 %v2049, %v2047
      %v2716 = vpack.c.b16 %v2052, %v2050
      %v2717 = vpack.c.b16 %v2053, %v2051
      %v2718 = vpack.c.b16 %v2056, %v2054
      %v2719 = vpack.c.b16 %v2057, %v2055
      %v2720 = vpack.c.b16 %v2060, %v2058
      %v2721 = vpack.c.b16 %v2061, %v2059
      %v2722 = vpack.c.b16 %v2064, %v2062
      %v2723 = vpack.c.b16 %v2065, %v2063
      %v2724 = vpack.c.b16 %v2068, %v2066
      %v2725 = vpack.c.b16 %v2069, %v2067
      %v2726 = vpack.c.b16 %v2072, %v2070
      %v2727 = vpack.c.b16 %v2073, %v2071
      %v2728 = vpack.c.b16 %v2076, %v2074
      %v2729 = vpack.c.b16 %v2077, %v2075
      %v2730 = vpack.c.b16 %v2080, %v2078
      %v2731 = vpack.c.b16 %v2081, %v2079
      %v2732 = vpack.c.b16 %v2084, %v2082
      %v2733 = vpack.c.b16 %v2085, %v2083
      %v2734 = vpack.c.b16 %v2088, %v2086
      %v2735 = vpack.c.b16 %v2089, %v2087
      %v2736 = vpack.c.b16 %v2092, %v2090
      %v2737 = vpack.c.b16 %v2093, %v2091
      %v2738 = vpack.c.b16 %v2096, %v2094
      %v2739 = vpack.c.b16 %v2097, %v2095
      %v2740 = vpack.c.b16 %v2100, %v2098
      %v2741 = vpack.c.b16 %v2101, %v2099
      %v2742 = vpack.c.b16 %v2104, %v2102
      %v2743 = vpack.c.b16 %v2105, %v2103
      %v2744 = vpack.c.b16 %v2108, %v2106
      %v2745 = vpack.c.b16 %v2109, %v2107
      %v2746 = vpack.c.b16 %v2112, %v2110
      %v2747 = vpack.c.b16 %v2113, %v2111
      %v2748 = vpack.c.b16 %v2116, %v2114
      %v2749 = vpack.c.b16 %v2117, %v2115
      %v2750 = vpack.c.b16 %v2120, %v2118
      %v2751 = vpack.c.b16 %v2121, %v2119
      %v2752 = vpack.c.b16 %v2124, %v2122
      %v2753 = vpack.c.b16 %v2125, %v2123
      %v2754 = vpack.c.b16 %v2128, %v2126
      %v2755 = vpack.c.b16 %v2129, %v2127
      %v2756 = vpack.c.b16 %v2132, %v2130
      %v2757 = vpack.c.b16 %v2133, %v2131
      %v2758 = vpack.c.b16 %v2136, %v2134
      %v2759 = vpack.c.b16 %v2137, %v2135
      %v2760 = vpack.c.b16 %v2140, %v2138
      %v2761 = vpack.c.b16 %v2141, %v2139
      %v2762 = vpack.c.b16 %v2144, %v2142
      %v2763 = vpack.c.b16 %v2145, %v2143
      %v2764 = vpack.c.b16 %v2148, %v2146
      %v2765 = vpack.c.b16 %v2149, %v2147
      %v2766 = vpack.c.b16 %v2152, %v2150
      %v2767 = vpack.c.b16 %v2153, %v2151
      %v2768 = vpack.c.b16 %v2156, %v2154
      %v2769 = vpack.c.b16 %v2157, %v2155
      %v2770 = vpack.c.b16 %v2160, %v2158
      %v2771 = vpack.c.b16 %v2161, %v2159
      %v2772 = vpack.c.b16 %v2164, %v2162
      %v2773 = vpack.c.b16 %v2165, %v2163
      %v2774 = vpack.c.b16 %v2168, %v2166
      %v2775 = vpack.c.b16 %v2169, %v2167
      %v2776 = vpack.c.b16 %v2172, %v2170
      %v2777 = vpack.c.b16 %v2173, %v2171
      %v2778 = vpack.c.b16 %v2176, %v2174
      %v2779 = vpack.c.b16 %v2177, %v2175
      %v2780 = vpack.c.b16 %v2180, %v2178
      %v2781 = vpack.c.b16 %v2181, %v2179
      %v2782 = vpack.c.b16 %v2184, %v2182
      %v2783 = vpack.c.b16 %v2185, %v2183
      %v2784 = vpack.c.b16 %v2188, %v2186
      %v2785 = vpack.c.b16 %v2189, %v2187
      %v2786 = vpack.c.b16 %v2192, %v2190
      %v2787 = vpack.c.b16 %v2193, %v2191
      %v2788 = vpack.c.b16 %v2196, %v2194
      %v2789 = vpack.c.b16 %v2197, %v2195
      %v2790 = vpack.c.b16 %v2200, %v2198
      %v2791 = vpack.c.b16 %v2201, %v2199
      %v2792 = vpack.c.b16 %v2204, %v2202
      %v2793 = vpack.c.b16 %v2205, %v2203
      %v2794 = vpack.c.b16 %v2208, %v2206
      %v2795 = vpack.c.b16 %v2209, %v2207
      %v2796 = vpack.c.b16 %v2212, %v2210
      %v2797 = vpack.c.b16 %v2213, %v2211
      %v2798 = vpack.c.b16 %v2216, %v2214
      %v2799 = vpack.c.b16 %v2217, %v2215
      %v2800 = vpack.c.b16 %v2220, %v2218
      %v2801 = vpack.c.b16 %v2221, %v2219
      %v2802 = vpack.c.b16 %v2224, %v2222
      %v2803 = vpack.c.b16 %v2225, %v2223
      %v2804 = vpack.c.b16 %v2228, %v2226
      %v2805 = vpack.c.b16 %v2229, %v2227
      %v2806 = vpack.c.b16 %v2232, %v2230
      %v2807 = vpack.c.b16 %v2233, %v2231
      %v2808 = vpack.c.b16 %v2236, %v2234
      %v2809 = vpack.c.b16 %v2237, %v2235
      %v2810 = vpack.c.b16 %v2240, %v2238
      %v2811 = vpack.c.b16 %v2241, %v2239
      %v2812 = vpack.c.b16 %v2244, %v2242
      %v2813 = vpack.c.b16 %v2245, %v2243
      %v2814 = vpack.c.b16 %v2248, %v2246
      %v2815 = vpack.c.b16 %v2249, %v2247
      %v2816 = vpack.c.b16 %v2252, %v2250
      %v2817 = vpack.c.b16 %v2253, %v2251
      %v2818 = vpack.c.b16 %v2256, %v2254
      %v2819 = vpack.c.b16 %v2257, %v2255
      %v2820 = vpack.c.b16 %v2260, %v2258
      %v2821 = vpack.c.b16 %v2261, %v2259
      %v2822 = vpack.c.b16 %v2264, %v2262
      %v2823 = vpack.c.b16 %v2265, %v2263
      %v2824 = vpack.c.b16 %v2268, %v2266
      %v2825 = vpack.c.b16 %v2269, %v2267
      %v2826 = vpack.c.b16 %v2272, %v2270
      %v2827 = vpack.c.b16 %v2273, %v2271
      %v2828 = vpack.c.b16 %v2276, %v2274
      %v2829 = vpack.c.b16 %v2277, %v2275
      %v2830 = vpack.c.b16 %v2280, %v2278
      %v2831 = vpack.c.b16 %v2281, %v2279
      %v2832 = vpack.c.b16 %v2284, %v2282
      %v2833 = vpack.c.b16 %v2285, %v2283
      %v2834 = vpack.c.b16 %v2288, %v2286
      %v2835 = vpack.c.b16 %v2289, %v2287
      %v2836 = vpack.c.b16 %v2292, %v2290
      %v2837 = vpack.c.b16 %v2293, %v2291
      %v2838 = vpack.c.b16 %v2296, %v2294
      %v2839 = vpack.c.b16 %v2297, %v2295
      %v2840 = vpack.c.b16 %v2300, %v2298
      %v2841 = vpack.c.b16 %v2301, %v2299
      %v2842 = vpack.c.b16 %v2304, %v2302
      %v2843 = vpack.c.b16 %v2305, %v2303
      %v2844 = vpack.c.b16 %v2308, %v2306
      %v2845 = vpack.c.b16 %v2309, %v2307
      %v2846 = vpack.c.b16 %v2312, %v2310
      %v2847 = vpack.c.b16 %v2313, %v2311
      %v2848 = vpack.c.b16 %v2316, %v2314
      %v2849 = vpack.c.b16 %v2317, %v2315
      %v2850 = vpack.c.b16 %v2320, %v2318
      %v2851 = vpack.c.b16 %v2321, %v2319
      %v2852 = vpack.c.b16 %v2324, %v2322
      %v2853 = vpack.c.b16 %v2325, %v2323
      %v2854 = vpack.c.b16 %v2328, %v2326
      %v2855 = vpack.c.b16 %v2329, %v2327
      %v2856 = vpack.c.b16 %v2332, %v2330
      %v2857 = vpack.c.b16 %v2333, %v2331
      %v2858 = vpack.c.b16 %v2336, %v2334
      %v2859 = vpack.c.b16 %v2337, %v2335
      %v2860 = vpack.c.b16 %v2340, %v2338
      %v2861 = vpack.c.b16 %v2341, %v2339
      %v2862 = vpack.c.b16 %v2344, %v2342
      %v2863 = vpack.c.b16 %v2345, %v2343
      %v2864 = vpack.c.b16 %v2348, %v2346
      %v2865 = vpack.c.b16 %v2349, %v2347
      %v2866 = vpack.c.b16 %v2352, %v2350
      %v2867 = vpack.c.b16 %v2353, %v2351
      %v2868 = vpack.c.b16 %v2356, %v2354
      %v2869 = vpack.c.b16 %v2357, %v2355
      %3382 = vmatpush.bf16.msra.mxu0 %v2372
      %3383 = vmatpush.bf16.msra.mxu0 %v2370
      %3384 = vmatpush.bf16.msra.mxu0 %v2368
      %3385 = vmatpush.bf16.msra.mxu0 %v2366
      %3386 = vmatpush.bf16.msra.mxu0 %v2364
      %3387 = vmatpush.bf16.msra.mxu0 %v2362
      %3388 = vmatpush.bf16.msra.mxu0 %v2360
      %3389 = vmatpush.bf16.msra.mxu0 %v2358
      %3390 = vmatmul.bf16.gmra.mxu0 %v278
      %v3391 = vpop.f32.mrf.mxu0
      %v3392 = vadd.f32 0.0, %v3391
      %v3393 = vpop.f32.mrf.mxu0
      %3394 = vdwg.mxu0
      %3395 = vmatpush.bf16.msra.mxu0 %v2388
      %3396 = vmatpush.bf16.msra.mxu0 %v2386
      %3397 = vmatpush.bf16.msra.mxu0 %v2384
      %3398 = vmatpush.bf16.msra.mxu0 %v2382
      %3399 = vmatpush.bf16.msra.mxu0 %v2380
      %3400 = vmatpush.bf16.msra.mxu0 %v2378
      %3401 = vmatpush.bf16.msra.mxu0 %v2376
      %3402 = vmatpush.bf16.msra.mxu0 %v2374
      %3403 = vmatmul.bf16.gmra.mxu0 %v279
      %v3404 = vpop.f32.mrf.mxu0
      %v3405 = vadd.f32 %v3392, %v3404
      %v3406 = vpop.f32.mrf.mxu0
      %3407 = vdwg.mxu0
      %3408 = vmatpush.bf16.msra.mxu0 %v2404
      %3409 = vmatpush.bf16.msra.mxu0 %v2402
      %3410 = vmatpush.bf16.msra.mxu0 %v2400
      %3411 = vmatpush.bf16.msra.mxu0 %v2398
      %3412 = vmatpush.bf16.msra.mxu0 %v2396
      %3413 = vmatpush.bf16.msra.mxu0 %v2394
      %3414 = vmatpush.bf16.msra.mxu0 %v2392
      %3415 = vmatpush.bf16.msra.mxu0 %v2390
      %3416 = vmatmul.bf16.gmra.mxu0 %v280
      %v3417 = vpop.f32.mrf.mxu0
      %v3418 = vadd.f32 %v3405, %v3417
      %v3419 = vpop.f32.mrf.mxu0
      %3420 = vdwg.mxu0
      %3421 = vmatpush.bf16.msra.mxu0 %v2420
      %3422 = vmatpush.bf16.msra.mxu0 %v2418
      %3423 = vmatpush.bf16.msra.mxu0 %v2416
      %3424 = vmatpush.bf16.msra.mxu0 %v2414
      %3425 = vmatpush.bf16.msra.mxu0 %v2412
      %3426 = vmatpush.bf16.msra.mxu0 %v2410
      %3427 = vmatpush.bf16.msra.mxu0 %v2408
      %3428 = vmatpush.bf16.msra.mxu0 %v2406
      %3429 = vmatmul.bf16.gmra.mxu0 %v281
      %v3430 = vpop.f32.mrf.mxu0
      %v3431 = vadd.f32 %v3418, %v3430
      %v3432 = vpop.f32.mrf.mxu0
      %3433 = vdwg.mxu0
      %3434 = vmatpush.bf16.msra.mxu0 %v2436
      %3435 = vmatpush.bf16.msra.mxu0 %v2434
      %3436 = vmatpush.bf16.msra.mxu0 %v2432
      %3437 = vmatpush.bf16.msra.mxu0 %v2430
      %3438 = vmatpush.bf16.msra.mxu0 %v2428
      %3439 = vmatpush.bf16.msra.mxu0 %v2426
      %3440 = vmatpush.bf16.msra.mxu0 %v2424
      %3441 = vmatpush.bf16.msra.mxu0 %v2422
      %3442 = vmatmul.bf16.gmra.mxu0 %v282
      %v3443 = vpop.f32.mrf.mxu0
      %v3444 = vadd.f32 %v3431, %v3443
      %v3445 = vpop.f32.mrf.mxu0
      %3446 = vdwg.mxu0
      %3447 = vmatpush.bf16.msra.mxu0 %v2452
      %3448 = vmatpush.bf16.msra.mxu0 %v2450
      %3449 = vmatpush.bf16.msra.mxu0 %v2448
      %3450 = vmatpush.bf16.msra.mxu0 %v2446
      %3451 = vmatpush.bf16.msra.mxu0 %v2444
      %3452 = vmatpush.bf16.msra.mxu0 %v2442
      %3453 = vmatpush.bf16.msra.mxu0 %v2440
      %3454 = vmatpush.bf16.msra.mxu0 %v2438
      %3455 = vmatmul.bf16.gmra.mxu0 %v283
      %v3456 = vpop.f32.mrf.mxu0
      %v3457 = vadd.f32 %v3444, %v3456
      %v3458 = vpop.f32.mrf.mxu0
      %3459 = vdwg.mxu0
      %3460 = vmatpush.bf16.msra.mxu0 %v2468
      %3461 = vmatpush.bf16.msra.mxu0 %v2466
      %3462 = vmatpush.bf16.msra.mxu0 %v2464
      %3463 = vmatpush.bf16.msra.mxu0 %v2462
      %3464 = vmatpush.bf16.msra.mxu0 %v2460
      %3465 = vmatpush.bf16.msra.mxu0 %v2458
      %3466 = vmatpush.bf16.msra.mxu0 %v2456
      %3467 = vmatpush.bf16.msra.mxu0 %v2454
      %3468 = vmatmul.bf16.gmra.mxu0 %v284
      %v3469 = vpop.f32.mrf.mxu0
      %v3470 = vadd.f32 %v3457, %v3469
      %v3471 = vpop.f32.mrf.mxu0
      %3472 = vdwg.mxu0
      %3473 = vmatpush.bf16.msra.mxu0 %v2484
      %3474 = vmatpush.bf16.msra.mxu0 %v2482
      %3475 = vmatpush.bf16.msra.mxu0 %v2480
      %3476 = vmatpush.bf16.msra.mxu0 %v2478
      %3477 = vmatpush.bf16.msra.mxu0 %v2476
      %3478 = vmatpush.bf16.msra.mxu0 %v2474
      %3479 = vmatpush.bf16.msra.mxu0 %v2472
      %3480 = vmatpush.bf16.msra.mxu0 %v2470
      %3481 = vmatmul.bf16.gmra.mxu0 %v285
      %v3482 = vpop.f32.mrf.mxu0
      %v3483 = vadd.f32 %v3470, %v3482
      %v3484 = vpop.f32.mrf.mxu0
      %3485 = vdwg.mxu0
      %3486 = vmatpush.bf16.msra.mxu0 %v2500
      %3487 = vmatpush.bf16.msra.mxu0 %v2498
      %3488 = vmatpush.bf16.msra.mxu0 %v2496
      %3489 = vmatpush.bf16.msra.mxu0 %v2494
      %3490 = vmatpush.bf16.msra.mxu0 %v2492
      %3491 = vmatpush.bf16.msra.mxu0 %v2490
      %3492 = vmatpush.bf16.msra.mxu0 %v2488
      %3493 = vmatpush.bf16.msra.mxu0 %v2486
      %3494 = vmatmul.bf16.gmra.mxu0 %v286
      %v3495 = vpop.f32.mrf.mxu0
      %v3496 = vadd.f32 %v3483, %v3495
      %v3497 = vpop.f32.mrf.mxu0
      %3498 = vdwg.mxu0
      %3499 = vmatpush.bf16.msra.mxu0 %v2516
      %3500 = vmatpush.bf16.msra.mxu0 %v2514
      %3501 = vmatpush.bf16.msra.mxu0 %v2512
      %3502 = vmatpush.bf16.msra.mxu0 %v2510
      %3503 = vmatpush.bf16.msra.mxu0 %v2508
      %3504 = vmatpush.bf16.msra.mxu0 %v2506
      %3505 = vmatpush.bf16.msra.mxu0 %v2504
      %3506 = vmatpush.bf16.msra.mxu0 %v2502
      %3507 = vmatmul.bf16.gmra.mxu0 %v287
      %v3508 = vpop.f32.mrf.mxu0
      %v3509 = vadd.f32 %v3496, %v3508
      %v3510 = vpop.f32.mrf.mxu0
      %3511 = vdwg.mxu0
      %3512 = vmatpush.bf16.msra.mxu0 %v2532
      %3513 = vmatpush.bf16.msra.mxu0 %v2530
      %3514 = vmatpush.bf16.msra.mxu0 %v2528
      %3515 = vmatpush.bf16.msra.mxu0 %v2526
      %3516 = vmatpush.bf16.msra.mxu0 %v2524
      %3517 = vmatpush.bf16.msra.mxu0 %v2522
      %3518 = vmatpush.bf16.msra.mxu0 %v2520
      %3519 = vmatpush.bf16.msra.mxu0 %v2518
      %3520 = vmatmul.bf16.gmra.mxu0 %v288
      %v3521 = vpop.f32.mrf.mxu0
      %v3522 = vadd.f32 %v3509, %v3521
      %v3523 = vpop.f32.mrf.mxu0
      %3524 = vdwg.mxu0
      %3525 = vmatpush.bf16.msra.mxu0 %v2548
      %3526 = vmatpush.bf16.msra.mxu0 %v2546
      %3527 = vmatpush.bf16.msra.mxu0 %v2544
      %3528 = vmatpush.bf16.msra.mxu0 %v2542
      %3529 = vmatpush.bf16.msra.mxu0 %v2540
      %3530 = vmatpush.bf16.msra.mxu0 %v2538
      %3531 = vmatpush.bf16.msra.mxu0 %v2536
      %3532 = vmatpush.bf16.msra.mxu0 %v2534
      %3533 = vmatmul.bf16.gmra.mxu0 %v289
      %v3534 = vpop.f32.mrf.mxu0
      %v3535 = vadd.f32 %v3522, %v3534
      %v3536 = vpop.f32.mrf.mxu0
      %3537 = vdwg.mxu0
      %3538 = vmatpush.bf16.msra.mxu0 %v2564
      %3539 = vmatpush.bf16.msra.mxu0 %v2562
      %3540 = vmatpush.bf16.msra.mxu0 %v2560
      %3541 = vmatpush.bf16.msra.mxu0 %v2558
      %3542 = vmatpush.bf16.msra.mxu0 %v2556
      %3543 = vmatpush.bf16.msra.mxu0 %v2554
      %3544 = vmatpush.bf16.msra.mxu0 %v2552
      %3545 = vmatpush.bf16.msra.mxu0 %v2550
      %3546 = vmatmul.bf16.gmra.mxu0 %v290
      %v3547 = vpop.f32.mrf.mxu0
      %v3548 = vadd.f32 %v3535, %v3547
      %v3549 = vpop.f32.mrf.mxu0
      %3550 = vdwg.mxu0
      %3551 = vmatpush.bf16.msra.mxu0 %v2580
      %3552 = vmatpush.bf16.msra.mxu0 %v2578
      %3553 = vmatpush.bf16.msra.mxu0 %v2576
      %3554 = vmatpush.bf16.msra.mxu0 %v2574
      %3555 = vmatpush.bf16.msra.mxu0 %v2572
      %3556 = vmatpush.bf16.msra.mxu0 %v2570
      %3557 = vmatpush.bf16.msra.mxu0 %v2568
      %3558 = vmatpush.bf16.msra.mxu0 %v2566
      %3559 = vmatmul.bf16.gmra.mxu0 %v291
      %v3560 = vpop.f32.mrf.mxu0
      %v3561 = vadd.f32 %v3548, %v3560
      %v3562 = vpop.f32.mrf.mxu0
      %3563 = vdwg.mxu0
      %3564 = vmatpush.bf16.msra.mxu0 %v2596
      %3565 = vmatpush.bf16.msra.mxu0 %v2594
      %3566 = vmatpush.bf16.msra.mxu0 %v2592
      %3567 = vmatpush.bf16.msra.mxu0 %v2590
      %3568 = vmatpush.bf16.msra.mxu0 %v2588
      %3569 = vmatpush.bf16.msra.mxu0 %v2586
      %3570 = vmatpush.bf16.msra.mxu0 %v2584
      %3571 = vmatpush.bf16.msra.mxu0 %v2582
      %3572 = vmatmul.bf16.gmra.mxu0 %v292
      %v3573 = vpop.f32.mrf.mxu0
      %v3574 = vadd.f32 %v3561, %v3573
      %v3575 = vpop.f32.mrf.mxu0
      %3576 = vdwg.mxu0
      %3577 = vmatpush.bf16.msra.mxu0 %v2612
      %3578 = vmatpush.bf16.msra.mxu0 %v2610
      %3579 = vmatpush.bf16.msra.mxu0 %v2608
      %3580 = vmatpush.bf16.msra.mxu0 %v2606
      %3581 = vmatpush.bf16.msra.mxu0 %v2604
      %3582 = vmatpush.bf16.msra.mxu0 %v2602
      %3583 = vmatpush.bf16.msra.mxu0 %v2600
      %3584 = vmatpush.bf16.msra.mxu0 %v2598
      %3585 = vmatmul.bf16.gmra.mxu0 %v293
      %v3586 = vpop.f32.mrf.mxu0
      %v3587 = vadd.f32 %v3574, %v3586
      %v3588 = vpop.f32.mrf.mxu0
      %3589 = vdwg.mxu0
      %3590 = vmatpush.bf16.msra.mxu0 %v2628
      %3591 = vmatpush.bf16.msra.mxu0 %v2626
      %3592 = vmatpush.bf16.msra.mxu0 %v2624
      %3593 = vmatpush.bf16.msra.mxu0 %v2622
      %3594 = vmatpush.bf16.msra.mxu0 %v2620
      %3595 = vmatpush.bf16.msra.mxu0 %v2618
      %3596 = vmatpush.bf16.msra.mxu0 %v2616
      %3597 = vmatpush.bf16.msra.mxu0 %v2614
      %3598 = vmatmul.bf16.gmra.mxu0 %v294
      %v3599 = vpop.f32.mrf.mxu0
      %v3600 = vadd.f32 %v3587, %v3599
      %v3601 = vpop.f32.mrf.mxu0
      %3602 = vdwg.mxu0
      %3603 = vmatpush.bf16.msra.mxu0 %v2644
      %3604 = vmatpush.bf16.msra.mxu0 %v2642
      %3605 = vmatpush.bf16.msra.mxu0 %v2640
      %3606 = vmatpush.bf16.msra.mxu0 %v2638
      %3607 = vmatpush.bf16.msra.mxu0 %v2636
      %3608 = vmatpush.bf16.msra.mxu0 %v2634
      %3609 = vmatpush.bf16.msra.mxu0 %v2632
      %3610 = vmatpush.bf16.msra.mxu0 %v2630
      %3611 = vmatmul.bf16.gmra.mxu0 %v295
      %v3612 = vpop.f32.mrf.mxu0
      %v3613 = vadd.f32 %v3600, %v3612
      %v3614 = vpop.f32.mrf.mxu0
      %3615 = vdwg.mxu0
      %3616 = vmatpush.bf16.msra.mxu0 %v2660
      %3617 = vmatpush.bf16.msra.mxu0 %v2658
      %3618 = vmatpush.bf16.msra.mxu0 %v2656
      %3619 = vmatpush.bf16.msra.mxu0 %v2654
      %3620 = vmatpush.bf16.msra.mxu0 %v2652
      %3621 = vmatpush.bf16.msra.mxu0 %v2650
      %3622 = vmatpush.bf16.msra.mxu0 %v2648
      %3623 = vmatpush.bf16.msra.mxu0 %v2646
      %3624 = vmatmul.bf16.gmra.mxu0 %v296
      %v3625 = vpop.f32.mrf.mxu0
      %v3626 = vadd.f32 %v3613, %v3625
      %v3627 = vpop.f32.mrf.mxu0
      %3628 = vdwg.mxu0
      %3629 = vmatpush.bf16.msra.mxu0 %v2676
      %3630 = vmatpush.bf16.msra.mxu0 %v2674
      %3631 = vmatpush.bf16.msra.mxu0 %v2672
      %3632 = vmatpush.bf16.msra.mxu0 %v2670
      %3633 = vmatpush.bf16.msra.mxu0 %v2668
      %3634 = vmatpush.bf16.msra.mxu0 %v2666
      %3635 = vmatpush.bf16.msra.mxu0 %v2664
      %3636 = vmatpush.bf16.msra.mxu0 %v2662
      %3637 = vmatmul.bf16.gmra.mxu0 %v297
      %v3638 = vpop.f32.mrf.mxu0
      %v3639 = vadd.f32 %v3626, %v3638
      %v3640 = vpop.f32.mrf.mxu0
      %3641 = vdwg.mxu0
      %3642 = vmatpush.bf16.msra.mxu0 %v2692
      %3643 = vmatpush.bf16.msra.mxu0 %v2690
      %3644 = vmatpush.bf16.msra.mxu0 %v2688
      %3645 = vmatpush.bf16.msra.mxu0 %v2686
      %3646 = vmatpush.bf16.msra.mxu0 %v2684
      %3647 = vmatpush.bf16.msra.mxu0 %v2682
      %3648 = vmatpush.bf16.msra.mxu0 %v2680
      %3649 = vmatpush.bf16.msra.mxu0 %v2678
      %3650 = vmatmul.bf16.gmra.mxu0 %v298
      %v3651 = vpop.f32.mrf.mxu0
      %v3652 = vadd.f32 %v3639, %v3651
      %v3653 = vpop.f32.mrf.mxu0
      %3654 = vdwg.mxu0
      %3655 = vmatpush.bf16.msra.mxu0 %v2708
      %3656 = vmatpush.bf16.msra.mxu0 %v2706
      %3657 = vmatpush.bf16.msra.mxu0 %v2704
      %3658 = vmatpush.bf16.msra.mxu0 %v2702
      %3659 = vmatpush.bf16.msra.mxu0 %v2700
      %3660 = vmatpush.bf16.msra.mxu0 %v2698
      %3661 = vmatpush.bf16.msra.mxu0 %v2696
      %3662 = vmatpush.bf16.msra.mxu0 %v2694
      %3663 = vmatmul.bf16.gmra.mxu0 %v299
      %v3664 = vpop.f32.mrf.mxu0
      %v3665 = vadd.f32 %v3652, %v3664
      %v3666 = vpop.f32.mrf.mxu0
      %3667 = vdwg.mxu0
      %3668 = vmatpush.bf16.msra.mxu0 %v2724
      %3669 = vmatpush.bf16.msra.mxu0 %v2722
      %3670 = vmatpush.bf16.msra.mxu0 %v2720
      %3671 = vmatpush.bf16.msra.mxu0 %v2718
      %3672 = vmatpush.bf16.msra.mxu0 %v2716
      %3673 = vmatpush.bf16.msra.mxu0 %v2714
      %3674 = vmatpush.bf16.msra.mxu0 %v2712
      %3675 = vmatpush.bf16.msra.mxu0 %v2710
      %3676 = vmatmul.bf16.gmra.mxu0 %v300
      %v3677 = vpop.f32.mrf.mxu0
      %v3678 = vadd.f32 %v3665, %v3677
      %v3679 = vpop.f32.mrf.mxu0
      %3680 = vdwg.mxu0
      %3681 = vmatpush.bf16.msra.mxu0 %v2740
      %3682 = vmatpush.bf16.msra.mxu0 %v2738
      %3683 = vmatpush.bf16.msra.mxu0 %v2736
      %3684 = vmatpush.bf16.msra.mxu0 %v2734
      %3685 = vmatpush.bf16.msra.mxu0 %v2732
      %3686 = vmatpush.bf16.msra.mxu0 %v2730
      %3687 = vmatpush.bf16.msra.mxu0 %v2728
      %3688 = vmatpush.bf16.msra.mxu0 %v2726
      %3689 = vmatmul.bf16.gmra.mxu0 %v301
      %v3690 = vpop.f32.mrf.mxu0
      %v3691 = vadd.f32 %v3678, %v3690
      %v3692 = vpop.f32.mrf.mxu0
      %3693 = vdwg.mxu0
      %3694 = vmatpush.bf16.msra.mxu0 %v2756
      %3695 = vmatpush.bf16.msra.mxu0 %v2754
      %3696 = vmatpush.bf16.msra.mxu0 %v2752
      %3697 = vmatpush.bf16.msra.mxu0 %v2750
      %3698 = vmatpush.bf16.msra.mxu0 %v2748
      %3699 = vmatpush.bf16.msra.mxu0 %v2746
      %3700 = vmatpush.bf16.msra.mxu0 %v2744
      %3701 = vmatpush.bf16.msra.mxu0 %v2742
      %3702 = vmatmul.bf16.gmra.mxu0 %v302
      %v3703 = vpop.f32.mrf.mxu0
      %v3704 = vadd.f32 %v3691, %v3703
      %v3705 = vpop.f32.mrf.mxu0
      %3706 = vdwg.mxu0
      %3707 = vmatpush.bf16.msra.mxu0 %v2772
      %3708 = vmatpush.bf16.msra.mxu0 %v2770
      %3709 = vmatpush.bf16.msra.mxu0 %v2768
      %3710 = vmatpush.bf16.msra.mxu0 %v2766
      %3711 = vmatpush.bf16.msra.mxu0 %v2764
      %3712 = vmatpush.bf16.msra.mxu0 %v2762
      %3713 = vmatpush.bf16.msra.mxu0 %v2760
      %3714 = vmatpush.bf16.msra.mxu0 %v2758
      %3715 = vmatmul.bf16.gmra.mxu0 %v303
      %v3716 = vpop.f32.mrf.mxu0
      %v3717 = vadd.f32 %v3704, %v3716
      %v3718 = vpop.f32.mrf.mxu0
      %3719 = vdwg.mxu0
      %3720 = vmatpush.bf16.msra.mxu0 %v2788
      %3721 = vmatpush.bf16.msra.mxu0 %v2786
      %3722 = vmatpush.bf16.msra.mxu0 %v2784
      %3723 = vmatpush.bf16.msra.mxu0 %v2782
      %3724 = vmatpush.bf16.msra.mxu0 %v2780
      %3725 = vmatpush.bf16.msra.mxu0 %v2778
      %3726 = vmatpush.bf16.msra.mxu0 %v2776
      %3727 = vmatpush.bf16.msra.mxu0 %v2774
      %3728 = vmatmul.bf16.gmra.mxu0 %v304
      %v3729 = vpop.f32.mrf.mxu0
      %v3730 = vadd.f32 %v3717, %v3729
      %v3731 = vpop.f32.mrf.mxu0
      %3732 = vdwg.mxu0
      %3733 = vmatpush.bf16.msra.mxu0 %v2804
      %3734 = vmatpush.bf16.msra.mxu0 %v2802
      %3735 = vmatpush.bf16.msra.mxu0 %v2800
      %3736 = vmatpush.bf16.msra.mxu0 %v2798
      %3737 = vmatpush.bf16.msra.mxu0 %v2796
      %3738 = vmatpush.bf16.msra.mxu0 %v2794
      %3739 = vmatpush.bf16.msra.mxu0 %v2792
      %3740 = vmatpush.bf16.msra.mxu0 %v2790
      %3741 = vmatmul.bf16.gmra.mxu0 %v305
      %v3742 = vpop.f32.mrf.mxu0
      %v3743 = vadd.f32 %v3730, %v3742
      %v3744 = vpop.f32.mrf.mxu0
      %3745 = vdwg.mxu0
      %3746 = vmatpush.bf16.msra.mxu0 %v2820
      %3747 = vmatpush.bf16.msra.mxu0 %v2818
      %3748 = vmatpush.bf16.msra.mxu0 %v2816
      %3749 = vmatpush.bf16.msra.mxu0 %v2814
      %3750 = vmatpush.bf16.msra.mxu0 %v2812
      %3751 = vmatpush.bf16.msra.mxu0 %v2810
      %3752 = vmatpush.bf16.msra.mxu0 %v2808
      %3753 = vmatpush.bf16.msra.mxu0 %v2806
      %3754 = vmatmul.bf16.gmra.mxu0 %v306
      %v3755 = vpop.f32.mrf.mxu0
      %v3756 = vadd.f32 %v3743, %v3755
      %v3757 = vpop.f32.mrf.mxu0
      %3758 = vdwg.mxu0
      %3759 = vmatpush.bf16.msra.mxu0 %v2836
      %3760 = vmatpush.bf16.msra.mxu0 %v2834
      %3761 = vmatpush.bf16.msra.mxu0 %v2832
      %3762 = vmatpush.bf16.msra.mxu0 %v2830
      %3763 = vmatpush.bf16.msra.mxu0 %v2828
      %3764 = vmatpush.bf16.msra.mxu0 %v2826
      %3765 = vmatpush.bf16.msra.mxu0 %v2824
      %3766 = vmatpush.bf16.msra.mxu0 %v2822
      %3767 = vmatmul.bf16.gmra.mxu0 %v307
      %v3768 = vpop.f32.mrf.mxu0
      %v3769 = vadd.f32 %v3756, %v3768
      %v3770 = vpop.f32.mrf.mxu0
      %3771 = vdwg.mxu0
      %3772 = vmatpush.bf16.msra.mxu0 %v2852
      %3773 = vmatpush.bf16.msra.mxu0 %v2850
      %3774 = vmatpush.bf16.msra.mxu0 %v2848
      %3775 = vmatpush.bf16.msra.mxu0 %v2846
      %3776 = vmatpush.bf16.msra.mxu0 %v2844
      %3777 = vmatpush.bf16.msra.mxu0 %v2842
      %3778 = vmatpush.bf16.msra.mxu0 %v2840
      %3779 = vmatpush.bf16.msra.mxu0 %v2838
      %3780 = vmatmul.bf16.gmra.mxu0 %v308
      %v3781 = vpop.f32.mrf.mxu0
      %v3782 = vadd.f32 %v3769, %v3781
      %v3783 = vpop.f32.mrf.mxu0
      %3784 = vdwg.mxu0
      %3785 = vmatpush.bf16.msra.mxu0 %v2868
      %3786 = vmatpush.bf16.msra.mxu0 %v2866
      %3787 = vmatpush.bf16.msra.mxu0 %v2864
      %3788 = vmatpush.bf16.msra.mxu0 %v2862
      %3789 = vmatpush.bf16.msra.mxu0 %v2860
      %3790 = vmatpush.bf16.msra.mxu0 %v2858
      %3791 = vmatpush.bf16.msra.mxu0 %v2856
      %3792 = vmatpush.bf16.msra.mxu0 %v2854
      %3793 = vmatmul.bf16.gmra.mxu0 %v309
      %v3794 = vpop.f32.mrf.mxu0
      %v3795 = vadd.f32 %v3782, %v3794
      %v3796 = vpop.f32.mrf.mxu0
      %3797 = vdwg.mxu0
      %3798 = vmatpush.bf16.msra.mxu0 %v2373
      %3799 = vmatpush.bf16.msra.mxu0 %v2371
      %3800 = vmatpush.bf16.msra.mxu0 %v2369
      %3801 = vmatpush.bf16.msra.mxu0 %v2367
      %3802 = vmatpush.bf16.msra.mxu0 %v2365
      %3803 = vmatpush.bf16.msra.mxu0 %v2363
      %3804 = vmatpush.bf16.msra.mxu0 %v2361
      %3805 = vmatpush.bf16.msra.mxu0 %v2359
      %3806 = vmatmul.bf16.gmra.mxu0 %v278
      %v3807 = vpop.f32.mrf.mxu0
      %v3808 = vadd.f32 0.0, %v3807
      %v3809 = vpop.f32.mrf.mxu0
      %3810 = vdwg.mxu0
      %3811 = vmatpush.bf16.msra.mxu0 %v2389
      %3812 = vmatpush.bf16.msra.mxu0 %v2387
      %3813 = vmatpush.bf16.msra.mxu0 %v2385
      %3814 = vmatpush.bf16.msra.mxu0 %v2383
      %3815 = vmatpush.bf16.msra.mxu0 %v2381
      %3816 = vmatpush.bf16.msra.mxu0 %v2379
      %3817 = vmatpush.bf16.msra.mxu0 %v2377
      %3818 = vmatpush.bf16.msra.mxu0 %v2375
      %3819 = vmatmul.bf16.gmra.mxu0 %v279
      %v3820 = vpop.f32.mrf.mxu0
      %v3821 = vadd.f32 %v3808, %v3820
      %v3822 = vpop.f32.mrf.mxu0
      %3823 = vdwg.mxu0
      %3824 = vmatpush.bf16.msra.mxu0 %v2405
      %3825 = vmatpush.bf16.msra.mxu0 %v2403
      %3826 = vmatpush.bf16.msra.mxu0 %v2401
      %3827 = vmatpush.bf16.msra.mxu0 %v2399
      %3828 = vmatpush.bf16.msra.mxu0 %v2397
      %3829 = vmatpush.bf16.msra.mxu0 %v2395
      %3830 = vmatpush.bf16.msra.mxu0 %v2393
      %3831 = vmatpush.bf16.msra.mxu0 %v2391
      %3832 = vmatmul.bf16.gmra.mxu0 %v280
      %v3833 = vpop.f32.mrf.mxu0
      %v3834 = vadd.f32 %v3821, %v3833
      %v3835 = vpop.f32.mrf.mxu0
      %3836 = vdwg.mxu0
      %3837 = vmatpush.bf16.msra.mxu0 %v2421
      %3838 = vmatpush.bf16.msra.mxu0 %v2419
      %3839 = vmatpush.bf16.msra.mxu0 %v2417
      %3840 = vmatpush.bf16.msra.mxu0 %v2415
      %3841 = vmatpush.bf16.msra.mxu0 %v2413
      %3842 = vmatpush.bf16.msra.mxu0 %v2411
      %3843 = vmatpush.bf16.msra.mxu0 %v2409
      %3844 = vmatpush.bf16.msra.mxu0 %v2407
      %3845 = vmatmul.bf16.gmra.mxu0 %v281
      %v3846 = vpop.f32.mrf.mxu0
      %v3847 = vadd.f32 %v3834, %v3846
      %v3848 = vpop.f32.mrf.mxu0
      %3849 = vdwg.mxu0
      %3850 = vmatpush.bf16.msra.mxu0 %v2437
      %3851 = vmatpush.bf16.msra.mxu0 %v2435
      %3852 = vmatpush.bf16.msra.mxu0 %v2433
      %3853 = vmatpush.bf16.msra.mxu0 %v2431
      %3854 = vmatpush.bf16.msra.mxu0 %v2429
      %3855 = vmatpush.bf16.msra.mxu0 %v2427
      %3856 = vmatpush.bf16.msra.mxu0 %v2425
      %3857 = vmatpush.bf16.msra.mxu0 %v2423
      %3858 = vmatmul.bf16.gmra.mxu0 %v282
      %v3859 = vpop.f32.mrf.mxu0
      %v3860 = vadd.f32 %v3847, %v3859
      %v3861 = vpop.f32.mrf.mxu0
      %3862 = vdwg.mxu0
      %3863 = vmatpush.bf16.msra.mxu0 %v2453
      %3864 = vmatpush.bf16.msra.mxu0 %v2451
      %3865 = vmatpush.bf16.msra.mxu0 %v2449
      %3866 = vmatpush.bf16.msra.mxu0 %v2447
      %3867 = vmatpush.bf16.msra.mxu0 %v2445
      %3868 = vmatpush.bf16.msra.mxu0 %v2443
      %3869 = vmatpush.bf16.msra.mxu0 %v2441
      %3870 = vmatpush.bf16.msra.mxu0 %v2439
      %3871 = vmatmul.bf16.gmra.mxu0 %v283
      %v3872 = vpop.f32.mrf.mxu0
      %v3873 = vadd.f32 %v3860, %v3872
      %v3874 = vpop.f32.mrf.mxu0
      %3875 = vdwg.mxu0
      %3876 = vmatpush.bf16.msra.mxu0 %v2469
      %3877 = vmatpush.bf16.msra.mxu0 %v2467
      %3878 = vmatpush.bf16.msra.mxu0 %v2465
      %3879 = vmatpush.bf16.msra.mxu0 %v2463
      %3880 = vmatpush.bf16.msra.mxu0 %v2461
      %3881 = vmatpush.bf16.msra.mxu0 %v2459
      %3882 = vmatpush.bf16.msra.mxu0 %v2457
      %3883 = vmatpush.bf16.msra.mxu0 %v2455
      %3884 = vmatmul.bf16.gmra.mxu0 %v284
      %v3885 = vpop.f32.mrf.mxu0
      %v3886 = vadd.f32 %v3873, %v3885
      %v3887 = vpop.f32.mrf.mxu0
      %3888 = vdwg.mxu0
      %3889 = vmatpush.bf16.msra.mxu0 %v2485
      %3890 = vmatpush.bf16.msra.mxu0 %v2483
      %3891 = vmatpush.bf16.msra.mxu0 %v2481
      %3892 = vmatpush.bf16.msra.mxu0 %v2479
      %3893 = vmatpush.bf16.msra.mxu0 %v2477
      %3894 = vmatpush.bf16.msra.mxu0 %v2475
      %3895 = vmatpush.bf16.msra.mxu0 %v2473
      %3896 = vmatpush.bf16.msra.mxu0 %v2471
      %3897 = vmatmul.bf16.gmra.mxu0 %v285
      %v3898 = vpop.f32.mrf.mxu0
      %v3899 = vadd.f32 %v3886, %v3898
      %v3900 = vpop.f32.mrf.mxu0
      %3901 = vdwg.mxu0
      %3902 = vmatpush.bf16.msra.mxu0 %v2501
      %3903 = vmatpush.bf16.msra.mxu0 %v2499
      %3904 = vmatpush.bf16.msra.mxu0 %v2497
      %3905 = vmatpush.bf16.msra.mxu0 %v2495
      %3906 = vmatpush.bf16.msra.mxu0 %v2493
      %3907 = vmatpush.bf16.msra.mxu0 %v2491
      %3908 = vmatpush.bf16.msra.mxu0 %v2489
      %3909 = vmatpush.bf16.msra.mxu0 %v2487
      %3910 = vmatmul.bf16.gmra.mxu0 %v286
      %v3911 = vpop.f32.mrf.mxu0
      %v3912 = vadd.f32 %v3899, %v3911
      %v3913 = vpop.f32.mrf.mxu0
      %3914 = vdwg.mxu0
      %3915 = vmatpush.bf16.msra.mxu0 %v2517
      %3916 = vmatpush.bf16.msra.mxu0 %v2515
      %3917 = vmatpush.bf16.msra.mxu0 %v2513
      %3918 = vmatpush.bf16.msra.mxu0 %v2511
      %3919 = vmatpush.bf16.msra.mxu0 %v2509
      %3920 = vmatpush.bf16.msra.mxu0 %v2507
      %3921 = vmatpush.bf16.msra.mxu0 %v2505
      %3922 = vmatpush.bf16.msra.mxu0 %v2503
      %3923 = vmatmul.bf16.gmra.mxu0 %v287
      %v3924 = vpop.f32.mrf.mxu0
      %v3925 = vadd.f32 %v3912, %v3924
      %v3926 = vpop.f32.mrf.mxu0
      %3927 = vdwg.mxu0
      %3928 = vmatpush.bf16.msra.mxu0 %v2533
      %3929 = vmatpush.bf16.msra.mxu0 %v2531
      %3930 = vmatpush.bf16.msra.mxu0 %v2529
      %3931 = vmatpush.bf16.msra.mxu0 %v2527
      %3932 = vmatpush.bf16.msra.mxu0 %v2525
      %3933 = vmatpush.bf16.msra.mxu0 %v2523
      %3934 = vmatpush.bf16.msra.mxu0 %v2521
      %3935 = vmatpush.bf16.msra.mxu0 %v2519
      %3936 = vmatmul.bf16.gmra.mxu0 %v288
      %v3937 = vpop.f32.mrf.mxu0
      %v3938 = vadd.f32 %v3925, %v3937
      %v3939 = vpop.f32.mrf.mxu0
      %3940 = vdwg.mxu0
      %3941 = vmatpush.bf16.msra.mxu0 %v2549
      %3942 = vmatpush.bf16.msra.mxu0 %v2547
      %3943 = vmatpush.bf16.msra.mxu0 %v2545
      %3944 = vmatpush.bf16.msra.mxu0 %v2543
      %3945 = vmatpush.bf16.msra.mxu0 %v2541
      %3946 = vmatpush.bf16.msra.mxu0 %v2539
      %3947 = vmatpush.bf16.msra.mxu0 %v2537
      %3948 = vmatpush.bf16.msra.mxu0 %v2535
      %3949 = vmatmul.bf16.gmra.mxu0 %v289
      %v3950 = vpop.f32.mrf.mxu0
      %v3951 = vadd.f32 %v3938, %v3950
      %v3952 = vpop.f32.mrf.mxu0
      %3953 = vdwg.mxu0
      %3954 = vmatpush.bf16.msra.mxu0 %v2565
      %3955 = vmatpush.bf16.msra.mxu0 %v2563
      %3956 = vmatpush.bf16.msra.mxu0 %v2561
      %3957 = vmatpush.bf16.msra.mxu0 %v2559
      %3958 = vmatpush.bf16.msra.mxu0 %v2557
      %3959 = vmatpush.bf16.msra.mxu0 %v2555
      %3960 = vmatpush.bf16.msra.mxu0 %v2553
      %3961 = vmatpush.bf16.msra.mxu0 %v2551
      %3962 = vmatmul.bf16.gmra.mxu0 %v290
      %v3963 = vpop.f32.mrf.mxu0
      %v3964 = vadd.f32 %v3951, %v3963
      %v3965 = vpop.f32.mrf.mxu0
      %3966 = vdwg.mxu0
      %3967 = vmatpush.bf16.msra.mxu0 %v2581
      %3968 = vmatpush.bf16.msra.mxu0 %v2579
      %3969 = vmatpush.bf16.msra.mxu0 %v2577
      %3970 = vmatpush.bf16.msra.mxu0 %v2575
      %3971 = vmatpush.bf16.msra.mxu0 %v2573
      %3972 = vmatpush.bf16.msra.mxu0 %v2571
      %3973 = vmatpush.bf16.msra.mxu0 %v2569
      %3974 = vmatpush.bf16.msra.mxu0 %v2567
      %3975 = vmatmul.bf16.gmra.mxu0 %v291
      %v3976 = vpop.f32.mrf.mxu0
      %v3977 = vadd.f32 %v3964, %v3976
      %v3978 = vpop.f32.mrf.mxu0
      %3979 = vdwg.mxu0
      %3980 = vmatpush.bf16.msra.mxu0 %v2597
      %3981 = vmatpush.bf16.msra.mxu0 %v2595
      %3982 = vmatpush.bf16.msra.mxu0 %v2593
      %3983 = vmatpush.bf16.msra.mxu0 %v2591
      %3984 = vmatpush.bf16.msra.mxu0 %v2589
      %3985 = vmatpush.bf16.msra.mxu0 %v2587
      %3986 = vmatpush.bf16.msra.mxu0 %v2585
      %3987 = vmatpush.bf16.msra.mxu0 %v2583
      %3988 = vmatmul.bf16.gmra.mxu0 %v292
      %v3989 = vpop.f32.mrf.mxu0
      %v3990 = vadd.f32 %v3977, %v3989
      %v3991 = vpop.f32.mrf.mxu0
      %3992 = vdwg.mxu0
      %3993 = vmatpush.bf16.msra.mxu0 %v2613
      %3994 = vmatpush.bf16.msra.mxu0 %v2611
      %3995 = vmatpush.bf16.msra.mxu0 %v2609
      %3996 = vmatpush.bf16.msra.mxu0 %v2607
      %3997 = vmatpush.bf16.msra.mxu0 %v2605
      %3998 = vmatpush.bf16.msra.mxu0 %v2603
      %3999 = vmatpush.bf16.msra.mxu0 %v2601
      %4000 = vmatpush.bf16.msra.mxu0 %v2599
      %4001 = vmatmul.bf16.gmra.mxu0 %v293
      %v4002 = vpop.f32.mrf.mxu0
      %v4003 = vadd.f32 %v3990, %v4002
      %v4004 = vpop.f32.mrf.mxu0
      %4005 = vdwg.mxu0
      %4006 = vmatpush.bf16.msra.mxu0 %v2629
      %4007 = vmatpush.bf16.msra.mxu0 %v2627
      %4008 = vmatpush.bf16.msra.mxu0 %v2625
      %4009 = vmatpush.bf16.msra.mxu0 %v2623
      %4010 = vmatpush.bf16.msra.mxu0 %v2621
      %4011 = vmatpush.bf16.msra.mxu0 %v2619
      %4012 = vmatpush.bf16.msra.mxu0 %v2617
      %4013 = vmatpush.bf16.msra.mxu0 %v2615
      %4014 = vmatmul.bf16.gmra.mxu0 %v294
      %v4015 = vpop.f32.mrf.mxu0
      %v4016 = vadd.f32 %v4003, %v4015
      %v4017 = vpop.f32.mrf.mxu0
      %4018 = vdwg.mxu0
      %4019 = vmatpush.bf16.msra.mxu0 %v2645
      %4020 = vmatpush.bf16.msra.mxu0 %v2643
      %4021 = vmatpush.bf16.msra.mxu0 %v2641
      %4022 = vmatpush.bf16.msra.mxu0 %v2639
      %4023 = vmatpush.bf16.msra.mxu0 %v2637
      %4024 = vmatpush.bf16.msra.mxu0 %v2635
      %4025 = vmatpush.bf16.msra.mxu0 %v2633
      %4026 = vmatpush.bf16.msra.mxu0 %v2631
      %4027 = vmatmul.bf16.gmra.mxu0 %v295
      %v4028 = vpop.f32.mrf.mxu0
      %v4029 = vadd.f32 %v4016, %v4028
      %v4030 = vpop.f32.mrf.mxu0
      %4031 = vdwg.mxu0
      %4032 = vmatpush.bf16.msra.mxu0 %v2661
      %4033 = vmatpush.bf16.msra.mxu0 %v2659
      %4034 = vmatpush.bf16.msra.mxu0 %v2657
      %4035 = vmatpush.bf16.msra.mxu0 %v2655
      %4036 = vmatpush.bf16.msra.mxu0 %v2653
      %4037 = vmatpush.bf16.msra.mxu0 %v2651
      %4038 = vmatpush.bf16.msra.mxu0 %v2649
      %4039 = vmatpush.bf16.msra.mxu0 %v2647
      %4040 = vmatmul.bf16.gmra.mxu0 %v296
      %v4041 = vpop.f32.mrf.mxu0
      %v4042 = vadd.f32 %v4029, %v4041
      %v4043 = vpop.f32.mrf.mxu0
      %4044 = vdwg.mxu0
      %4045 = vmatpush.bf16.msra.mxu0 %v2677
      %4046 = vmatpush.bf16.msra.mxu0 %v2675
      %4047 = vmatpush.bf16.msra.mxu0 %v2673
      %4048 = vmatpush.bf16.msra.mxu0 %v2671
      %4049 = vmatpush.bf16.msra.mxu0 %v2669
      %4050 = vmatpush.bf16.msra.mxu0 %v2667
      %4051 = vmatpush.bf16.msra.mxu0 %v2665
      %4052 = vmatpush.bf16.msra.mxu0 %v2663
      %4053 = vmatmul.bf16.gmra.mxu0 %v297
      %v4054 = vpop.f32.mrf.mxu0
      %v4055 = vadd.f32 %v4042, %v4054
      %v4056 = vpop.f32.mrf.mxu0
      %4057 = vdwg.mxu0
      %4058 = vmatpush.bf16.msra.mxu0 %v2693
      %4059 = vmatpush.bf16.msra.mxu0 %v2691
      %4060 = vmatpush.bf16.msra.mxu0 %v2689
      %4061 = vmatpush.bf16.msra.mxu0 %v2687
      %4062 = vmatpush.bf16.msra.mxu0 %v2685
      %4063 = vmatpush.bf16.msra.mxu0 %v2683
      %4064 = vmatpush.bf16.msra.mxu0 %v2681
      %4065 = vmatpush.bf16.msra.mxu0 %v2679
      %4066 = vmatmul.bf16.gmra.mxu0 %v298
      %v4067 = vpop.f32.mrf.mxu0
      %v4068 = vadd.f32 %v4055, %v4067
      %v4069 = vpop.f32.mrf.mxu0
      %4070 = vdwg.mxu0
      %4071 = vmatpush.bf16.msra.mxu0 %v2709
      %4072 = vmatpush.bf16.msra.mxu0 %v2707
      %4073 = vmatpush.bf16.msra.mxu0 %v2705
      %4074 = vmatpush.bf16.msra.mxu0 %v2703
      %4075 = vmatpush.bf16.msra.mxu0 %v2701
      %4076 = vmatpush.bf16.msra.mxu0 %v2699
      %4077 = vmatpush.bf16.msra.mxu0 %v2697
      %4078 = vmatpush.bf16.msra.mxu0 %v2695
      %4079 = vmatmul.bf16.gmra.mxu0 %v299
      %v4080 = vpop.f32.mrf.mxu0
      %v4081 = vadd.f32 %v4068, %v4080
      %v4082 = vpop.f32.mrf.mxu0
      %4083 = vdwg.mxu0
      %4084 = vmatpush.bf16.msra.mxu0 %v2725
      %4085 = vmatpush.bf16.msra.mxu0 %v2723
      %4086 = vmatpush.bf16.msra.mxu0 %v2721
      %4087 = vmatpush.bf16.msra.mxu0 %v2719
      %4088 = vmatpush.bf16.msra.mxu0 %v2717
      %4089 = vmatpush.bf16.msra.mxu0 %v2715
      %4090 = vmatpush.bf16.msra.mxu0 %v2713
      %4091 = vmatpush.bf16.msra.mxu0 %v2711
      %4092 = vmatmul.bf16.gmra.mxu0 %v300
      %v4093 = vpop.f32.mrf.mxu0
      %v4094 = vadd.f32 %v4081, %v4093
      %v4095 = vpop.f32.mrf.mxu0
      %4096 = vdwg.mxu0
      %4097 = vmatpush.bf16.msra.mxu0 %v2741
      %4098 = vmatpush.bf16.msra.mxu0 %v2739
      %4099 = vmatpush.bf16.msra.mxu0 %v2737
      %4100 = vmatpush.bf16.msra.mxu0 %v2735
      %4101 = vmatpush.bf16.msra.mxu0 %v2733
      %4102 = vmatpush.bf16.msra.mxu0 %v2731
      %4103 = vmatpush.bf16.msra.mxu0 %v2729
      %4104 = vmatpush.bf16.msra.mxu0 %v2727
      %4105 = vmatmul.bf16.gmra.mxu0 %v301
      %v4106 = vpop.f32.mrf.mxu0
      %v4107 = vadd.f32 %v4094, %v4106
      %v4108 = vpop.f32.mrf.mxu0
      %4109 = vdwg.mxu0
      %4110 = vmatpush.bf16.msra.mxu0 %v2757
      %4111 = vmatpush.bf16.msra.mxu0 %v2755
      %4112 = vmatpush.bf16.msra.mxu0 %v2753
      %4113 = vmatpush.bf16.msra.mxu0 %v2751
      %4114 = vmatpush.bf16.msra.mxu0 %v2749
      %4115 = vmatpush.bf16.msra.mxu0 %v2747
      %4116 = vmatpush.bf16.msra.mxu0 %v2745
      %4117 = vmatpush.bf16.msra.mxu0 %v2743
      %4118 = vmatmul.bf16.gmra.mxu0 %v302
      %v4119 = vpop.f32.mrf.mxu0
      %v4120 = vadd.f32 %v4107, %v4119
      %v4121 = vpop.f32.mrf.mxu0
      %4122 = vdwg.mxu0
      %4123 = vmatpush.bf16.msra.mxu0 %v2773
      %4124 = vmatpush.bf16.msra.mxu0 %v2771
      %4125 = vmatpush.bf16.msra.mxu0 %v2769
      %4126 = vmatpush.bf16.msra.mxu0 %v2767
      %4127 = vmatpush.bf16.msra.mxu0 %v2765
      %4128 = vmatpush.bf16.msra.mxu0 %v2763
      %4129 = vmatpush.bf16.msra.mxu0 %v2761
      %4130 = vmatpush.bf16.msra.mxu0 %v2759
      %4131 = vmatmul.bf16.gmra.mxu0 %v303
      %v4132 = vpop.f32.mrf.mxu0
      %v4133 = vadd.f32 %v4120, %v4132
      %v4134 = vpop.f32.mrf.mxu0
      %4135 = vdwg.mxu0
      %4136 = vmatpush.bf16.msra.mxu0 %v2789
      %4137 = vmatpush.bf16.msra.mxu0 %v2787
      %4138 = vmatpush.bf16.msra.mxu0 %v2785
      %4139 = vmatpush.bf16.msra.mxu0 %v2783
      %4140 = vmatpush.bf16.msra.mxu0 %v2781
      %4141 = vmatpush.bf16.msra.mxu0 %v2779
      %4142 = vmatpush.bf16.msra.mxu0 %v2777
      %4143 = vmatpush.bf16.msra.mxu0 %v2775
      %4144 = vmatmul.bf16.gmra.mxu0 %v304
      %v4145 = vpop.f32.mrf.mxu0
      %v4146 = vadd.f32 %v4133, %v4145
      %v4147 = vpop.f32.mrf.mxu0
      %4148 = vdwg.mxu0
      %4149 = vmatpush.bf16.msra.mxu0 %v2805
      %4150 = vmatpush.bf16.msra.mxu0 %v2803
      %4151 = vmatpush.bf16.msra.mxu0 %v2801
      %4152 = vmatpush.bf16.msra.mxu0 %v2799
      %4153 = vmatpush.bf16.msra.mxu0 %v2797
      %4154 = vmatpush.bf16.msra.mxu0 %v2795
      %4155 = vmatpush.bf16.msra.mxu0 %v2793
      %4156 = vmatpush.bf16.msra.mxu0 %v2791
      %4157 = vmatmul.bf16.gmra.mxu0 %v305
      %v4158 = vpop.f32.mrf.mxu0
      %v4159 = vadd.f32 %v4146, %v4158
      %v4160 = vpop.f32.mrf.mxu0
      %4161 = vdwg.mxu0
      %4162 = vmatpush.bf16.msra.mxu0 %v2821
      %4163 = vmatpush.bf16.msra.mxu0 %v2819
      %4164 = vmatpush.bf16.msra.mxu0 %v2817
      %4165 = vmatpush.bf16.msra.mxu0 %v2815
      %4166 = vmatpush.bf16.msra.mxu0 %v2813
      %4167 = vmatpush.bf16.msra.mxu0 %v2811
      %4168 = vmatpush.bf16.msra.mxu0 %v2809
      %4169 = vmatpush.bf16.msra.mxu0 %v2807
      %4170 = vmatmul.bf16.gmra.mxu0 %v306
      %v4171 = vpop.f32.mrf.mxu0
      %v4172 = vadd.f32 %v4159, %v4171
      %v4173 = vpop.f32.mrf.mxu0
      %4174 = vdwg.mxu0
      %4175 = vmatpush.bf16.msra.mxu0 %v2837
      %4176 = vmatpush.bf16.msra.mxu0 %v2835
      %4177 = vmatpush.bf16.msra.mxu0 %v2833
      %4178 = vmatpush.bf16.msra.mxu0 %v2831
      %4179 = vmatpush.bf16.msra.mxu0 %v2829
      %4180 = vmatpush.bf16.msra.mxu0 %v2827
      %4181 = vmatpush.bf16.msra.mxu0 %v2825
      %4182 = vmatpush.bf16.msra.mxu0 %v2823
      %4183 = vmatmul.bf16.gmra.mxu0 %v307
      %v4184 = vpop.f32.mrf.mxu0
      %v4185 = vadd.f32 %v4172, %v4184
      %v4186 = vpop.f32.mrf.mxu0
      %4187 = vdwg.mxu0
      %4188 = vmatpush.bf16.msra.mxu0 %v2853
      %4189 = vmatpush.bf16.msra.mxu0 %v2851
      %4190 = vmatpush.bf16.msra.mxu0 %v2849
      %4191 = vmatpush.bf16.msra.mxu0 %v2847
      %4192 = vmatpush.bf16.msra.mxu0 %v2845
      %4193 = vmatpush.bf16.msra.mxu0 %v2843
      %4194 = vmatpush.bf16.msra.mxu0 %v2841
      %4195 = vmatpush.bf16.msra.mxu0 %v2839
      %4196 = vmatmul.bf16.gmra.mxu0 %v308
      %v4197 = vpop.f32.mrf.mxu0
      %v4198 = vadd.f32 %v4185, %v4197
      %v4199 = vpop.f32.mrf.mxu0
      %4200 = vdwg.mxu0
      %4201 = vmatpush.bf16.msra.mxu0 %v2869
      %4202 = vmatpush.bf16.msra.mxu0 %v2867
      %4203 = vmatpush.bf16.msra.mxu0 %v2865
      %4204 = vmatpush.bf16.msra.mxu0 %v2863
      %4205 = vmatpush.bf16.msra.mxu0 %v2861
      %4206 = vmatpush.bf16.msra.mxu0 %v2859
      %4207 = vmatpush.bf16.msra.mxu0 %v2857
      %4208 = vmatpush.bf16.msra.mxu0 %v2855
      %4209 = vmatmul.bf16.gmra.mxu0 %v309
      %v4210 = vpop.f32.mrf.mxu0
      %v4211 = vadd.f32 %v4198, %v4210
      %v4212 = vpop.f32.mrf.mxu0
      %4213 = vdwg.mxu0
      %v4216 = vrot.slane %v4211, 6
      %vm4217 = vcmask 1041408
      %v4218 = vsel %vm4217, %v3795, %v4216
      %v4220 = vadd.f32 %v188, %v4218
      %4221 = vst [vmem:[%s3] sm:$0xf] %v4220
      %p4222 = scmp.eq.s32.totalorder %s14, 1
      // Predicated region
      $region37: #{pyramid_forward.3} parent=31 // pred_check
        %p4223 = pneg %p4222
      $region38: #{pyramid_forward.3} parent=31 // pred_check_branch
        %4225 = sbr.rel (%p4223) target = $region40
      $region39: #{pyramid_forward.3} parent=31 // pred_region
        %v4226 = vld [vmem:[%s3] sm:$0xf]
        %v4227 = vld [vmem:[%s2] sm:$0x3]
        %v4229 = vperm.slane %v4227, 0
        %v4230 = vperm.slane %v4227, 1
        %v4231 = vrot.slane %v4230, 6
        %v4232 = vsel %vm4217, %v4229, %v4231
        %v4234 = vadd.f32 %v4226, %v4232
        %v4235 = vmax.f32 %v4234, 0.0
        %4236 = vst [vmem:[%s3] sm:$0xf] %v4235
      $region40: #{pyramid_forward.3} parent=31 // pred_fallthru
        _
      // Predicated region
      $region41: #{pyramid_forward.3} parent=31 // pred_check
        %p4237 = pneg %p100
      $region42: #{pyramid_forward.3} parent=31 // pred_check_branch
        %4239 = sbr.rel (%p4237) target = $region44
      $region43: #{pyramid_forward.3} parent=31 // pred_region
        _
      $region44: #{pyramid_forward.3} parent=31 // pred_fallthru
        _
      // Predicated region
      $region45: #{pyramid_forward.3} parent=31 // pred_check
        %p4240 = pneg %p100
      $region46: #{pyramid_forward.3} parent=31 // pred_check_branch
        %4242 = sbr.rel (%p4240) target = $region48
      $region47: #{pyramid_forward.3} parent=31 // pred_region
        _
      $region48: #{pyramid_forward.3} parent=31 // pred_fallthru
        _
    $region32: #{pyramid_forward.3} parent=5 // pred_fallthru
      _
    %p4243 = scmp.le.s32.totalorder 2, %s9
    // Predicated region
    $region49: #{pyramid_forward.3} parent=5 // pred_check
      %p4244 = pneg %p4243
    $region50: #{pyramid_forward.3} parent=5 // pred_check_branch
      %4246 = sbr.rel (%p4244) target = $region52
    $region51: #{pyramid_forward.3} parent=5 // pred_region
      %s4247 = ssub.s32 %s9, 2
    $region52: #{pyramid_forward.3} parent=5 // pred_fallthru
      _
  $region6: #{pyramid_forward.3} parent=0 // loop_footer
    %s13 = sadd.s32 1, %s9
  $region7: #{pyramid_forward.3} parent=0 // loop_footer_branch
    %8 = sbr.rel target = $region3
  $region8: #{pyramid_forward.3} parent=0 // loop_exit
    _

</llo_original>
